<compile_context>
chip_gen: v6e
topology: v6e:2x2x1
jax: 0.10.0
libtpu: 0.0.40
codegen_flags: <defaults>
</compile_context>

<pallas_src>
import jax
import jax.numpy as jnp
from jax import lax
from jax.experimental import pallas as pl
from jax.experimental.pallas import tpu as pltpu

NSUB = 8  # fixed RK4 sub-steps per time interval


def _ode_kernel(vt_ref, y0_ref, w_ref, b_ref, out_ref):
    """Single-invocation kernel: integrates all T time points in one call.

    vt_ref : (T,)    f32 in SMEM   (time points, scalar reads)
    y0_ref : (N, D)  f32 in VMEM   (initial state)
    w_ref  : (D, D)  f32 in VMEM   (dynamics weight)
    b_ref  : (1, D)  f32 in VMEM   (dynamics bias)
    out_ref: (T, N, D) f32 in VMEM (trajectory)
    """
    T = out_ref.shape[0]
    N = out_ref.shape[1]
    D = out_ref.shape[2]
    nh = N // 2  # two independent row groups (rows of y evolve independently)

    # Hoisted once for the whole kernel: JAX does not CSE broadcast_in_dim, so
    # re-emitting this inside the substep loop would cost 4*NSUB broadcasts
    # per interval.
    b_full = jnp.broadcast_to(b_ref[...], (nh, D)).astype(jnp.float32)

    def f(y):
        # ode_func(t, y) = tanh(y @ W + b)   -- MXU matmul + EUP tanh
        return jnp.tanh(
            jnp.dot(y, w_ref[...], preferred_element_type=jnp.float32) + b_full
        )

    # t == vt[0]: trajectory starts at y0 (torchdiffeq returns y0 at vt[0]).
    out_ref[0] = y0_ref[...].astype(out_ref.dtype)

    # Two half-states -> two independent dot->tanh chains for MXU/EUP overlap.
    ya0 = y0_ref[:nh, :].astype(jnp.float32)
    yb0 = y0_ref[nh:, :].astype(jnp.float32)

    def interval(i, carry):
        ya, yb = carry
        t0 = vt_ref[i]
        t1 = vt_ref[i + 1]
        # Loop-invariant scalars hoisted out of the NSUB substep loop.
        h = (t1 - t0) / jnp.float32(NSUB)
        half_h = 0.5 * h
        h6 = h / 6.0

        # NSUB is a small fixed trip count: fully unroll so the scheduler can
        # interleave the two independent RK4 chains across VLIW slots.
        for _ in range(NSUB):
            k1a = f(ya)
            k1b = f(yb)
            k2a = f(ya + half_h * k1a)
            k2b = f(yb + half_h * k1b)
            k3a = f(ya + half_h * k2a)
            k3b = f(yb + half_h * k2b)
            k4a = f(ya + h * k3a)
            k4b = f(yb + h * k3b)
            ya = ya + h6 * (k1a + 2.0 * k2a + 2.0 * k3a + k4a)
            yb = yb + h6 * (k1b + 2.0 * k2b + 2.0 * k3b + k4b)

        # One lane-dense full-plane store per interval.
        out_ref[i + 1] = jnp.concatenate([ya, yb], axis=0).astype(out_ref.dtype)
        return ya, yb

    lax.fori_loop(0, T - 1, interval, (ya0, yb0))


def ode_dynamic_forward(vt, y0, W, b):
    """Pallas implementation of ODEDynamic.forward(vt, y0).

    vt: (T,) float32 time points
    y0: (N, D) float32 initial state
    W:  (D, D) float32 dynamics weight
    b:  (1, D) float32 dynamics bias
    returns: (T, N, D) float32 trajectory
    """
    T = vt.shape[0]
    N, D = y0.shape
    assert N % 2 == 0, "row-group interleaving assumes an even number of rows"

    return pl.pallas_call(
        _ode_kernel,
        out_shape=jax.ShapeDtypeStruct((T, N, D), jnp.float32),
        in_specs=[
            pl.BlockSpec(memory_space=pltpu.MemorySpace.SMEM),  # vt (scalars)
            pl.BlockSpec(memory_space=pltpu.MemorySpace.VMEM),  # y0
            pl.BlockSpec(memory_space=pltpu.MemorySpace.VMEM),  # W
            pl.BlockSpec(memory_space=pltpu.MemorySpace.VMEM),  # b
        ],
        out_specs=pl.BlockSpec(memory_space=pltpu.MemorySpace.VMEM),
    )(vt, y0, W, b)


def _pure_jax_reference(vt, y0, W, b):
    def f(y):
        return jnp.tanh(y @ W + b)

    def interval(y, t_pair):
        t0, t1 = t_pair
        h = (t1 - t0) / NSUB

        def sub(_, y):
            k1 = f(y)
            k2 = f(y + 0.5 * h * k1)
            k3 = f(y + 0.5 * h * k2)
            k4 = f(y + h * k3)
            return y + (h / 6.0) * (k1 + 2 * k2 + 2 * k3 + k4)

        y_new = lax.fori_loop(0, NSUB, sub, y)
        return y_new, y_new

    _, traj = lax.scan(interval, y0, (vt[:-1], vt[1:]))
    return jnp.concatenate([y0[None], traj], axis=0)


if __name__ == "__main__":
    key = jax.random.PRNGKey(0)
    k1, k2 = jax.random.split(key)

    T, N, D = 8, 16, 128
    vt = jnp.linspace(0.0, 1.0, T).astype(jnp.float32)            # time points
    y0 = (0.1 * jax.random.normal(k1, (N, D))).astype(jnp.float32)
    W = (jax.random.normal(k2, (D, D)) / jnp.sqrt(D)).astype(jnp.float32)
    b = jnp.zeros((1, D), jnp.float32)

    out = jax.block_until_ready(ode_dynamic_forward(vt, y0, W, b))
    ref = jax.block_until_ready(_pure_jax_reference(vt, y0, W, b))

    assert out.shape == (T, N, D)
    assert jnp.allclose(out[0], y0)
    assert jnp.allclose(out, ref, rtol=1e-4, atol=1e-4)

    print("KERNEL_OK")
</pallas_src>

<mosaic_0001>
module attributes {stable_mosaic.version = 11 : i64} {
  func.func @_ode_kernel(%arg0: memref<8xf32, #tpu.memory_space<smem>>, %arg1: memref<16x128xf32, #tpu.memory_space<vmem>>, %arg2: memref<128x128xf32, #tpu.memory_space<vmem>>, %arg3: memref<1x128xf32, #tpu.memory_space<vmem>>, %arg4: memref<8x16x128xf32, #tpu.memory_space<vmem>>) attributes {dimension_semantics = [], scalar_prefetch = 0 : i64, scratch_operands = 0 : i64, tpu.core_type = #tpu.core_type<tc>} {
    %c0 = arith.constant 0 : index
    %c0_0 = arith.constant 0 : index
    %0 = vector.load %arg3[%c0, %c0_0] : memref<1x128xf32, #tpu.memory_space<vmem>>, vector<1x128xf32>
    %1 = vector.shape_cast %0 : vector<1x128xf32> to vector<1x128xf32>
    %2 = vector.broadcast %1 : vector<1x128xf32> to vector<8x128xf32>
    %c0_1 = arith.constant 0 : index
    %c0_2 = arith.constant 0 : index
    %3 = vector.load %arg1[%c0_1, %c0_2] : memref<16x128xf32, #tpu.memory_space<vmem>>, vector<16x128xf32>
    %c0_3 = arith.constant 0 : index
    %c0_4 = arith.constant 0 : index
    %c0_5 = arith.constant 0 : index
    %4 = vector.load %arg4[%c0_3, %c0_4, %c0_5] : memref<8x16x128xf32, #tpu.memory_space<vmem>>, vector<1x16x128xf32>
    %5 = vector.shape_cast %4 : vector<1x16x128xf32> to vector<16x128xf32>
    %6 = vector.shape_cast %3 : vector<16x128xf32> to vector<1x16x128xf32>
    tpu.vector_store %arg4[%c0_3, %c0_4, %c0_5], %6 {strides = array<i32>} : memref<8x16x128xf32, #tpu.memory_space<vmem>>, vector<1x16x128xf32>,
    %c0_6 = arith.constant 0 : index
    %c0_7 = arith.constant 0 : index
    %7 = vector.load %arg1[%c0_6, %c0_7] : memref<16x128xf32, #tpu.memory_space<vmem>>, vector<8x128xf32>
    %c8 = arith.constant 8 : index
    %c0_8 = arith.constant 0 : index
    %8 = vector.load %arg1[%c8, %c0_8] : memref<16x128xf32, #tpu.memory_space<vmem>>, vector<8x128xf32>
    %c0_i32 = arith.constant 0 : i32
    %c7_i32 = arith.constant 7 : i32
    %9 = arith.addi %c0_i32, %c7_i32 : i32
    %c1_i32 = arith.constant 1 : i32
    %10:2 = scf.for %arg5 = %c0_i32 to %9 step %c1_i32 iter_args(%arg6 = %7, %arg7 = %8) -> (vector<8x128xf32>, vector<8x128xf32>)  : i32 {
      %11 = arith.index_cast %arg5 : i32 to index
      %12 = memref.load %arg0[%11] : memref<8xf32, #tpu.memory_space<smem>>
      %c1_i32_10 = arith.constant 1 : i32
      %13 = arith.addi %arg5, %c1_i32_10 : i32
      %14 = arith.index_cast %13 : i32 to index
      %15 = memref.load %arg0[%14] : memref<8xf32, #tpu.memory_space<smem>>
      %16 = arith.subf %15, %12 : f32
      %cst = arith.constant 8.000000e+00 : f32
      %17 = arith.divf %16, %cst : f32
      %cst_11 = arith.constant 5.000000e-01 : f32
      %18 = arith.mulf %cst_11, %17 : f32
      %cst_12 = arith.constant 6.000000e+00 : f32
      %19 = arith.divf %17, %cst_12 : f32
      %c0_13 = arith.constant 0 : index
      %c0_14 = arith.constant 0 : index
      %20 = vector.load %arg2[%c0_13, %c0_14] : memref<128x128xf32, #tpu.memory_space<vmem>>, vector<128x128xf32>
      %cst_15 = arith.constant dense<0.000000e+00> : vector<8x128xf32>
      %21 = tpu.matmul %arg6, %20, %cst_15 {dimension_numbers = #tpu.dot_dimension_numbers<[1], [0], [0], [1], [0, 0, 1, 1], [], []>} : vector<8x128xf32>, vector<128x128xf32>, vector<8x128xf32> -> vector<8x128xf32>
      %22 = arith.addf %21, %2 : vector<8x128xf32>
      %23 = math.tanh %22 : vector<8x128xf32>
      %c0_16 = arith.constant 0 : index
      %c0_17 = arith.constant 0 : index
      %24 = vector.load %arg2[%c0_16, %c0_17] : memref<128x128xf32, #tpu.memory_space<vmem>>, vector<128x128xf32>
      %cst_18 = arith.constant dense<0.000000e+00> : vector<8x128xf32>
      %25 = tpu.matmul %arg7, %24, %cst_18 {dimension_numbers = #tpu.dot_dimension_numbers<[1], [0], [0], [1], [0, 0, 1, 1], [], []>} : vector<8x128xf32>, vector<128x128xf32>, vector<8x128xf32> -> vector<8x128xf32>
      %26 = arith.addf %25, %2 : vector<8x128xf32>
      %27 = math.tanh %26 : vector<8x128xf32>
      %28 = vector.broadcast %18 : f32 to vector<8x128xf32>
      %29 = arith.mulf %28, %23 : vector<8x128xf32>
      %30 = arith.addf %arg6, %29 : vector<8x128xf32>
      %c0_19 = arith.constant 0 : index
      %c0_20 = arith.constant 0 : index
      %31 = vector.load %arg2[%c0_19, %c0_20] : memref<128x128xf32, #tpu.memory_space<vmem>>, vector<128x128xf32>
      %cst_21 = arith.constant dense<0.000000e+00> : vector<8x128xf32>
      %32 = tpu.matmul %30, %31, %cst_21 {dimension_numbers = #tpu.dot_dimension_numbers<[1], [0], [0], [1], [0, 0, 1, 1], [], []>} : vector<8x128xf32>, vector<128x128xf32>, vector<8x128xf32> -> vector<8x128xf32>
      %33 = arith.addf %32, %2 : vector<8x128xf32>
      %34 = math.tanh %33 : vector<8x128xf32>
      %35 = vector.broadcast %18 : f32 to vector<8x128xf32>
      %36 = arith.mulf %35, %27 : vector<8x128xf32>
      %37 = arith.addf %arg7, %36 : vector<8x128xf32>
      %c0_22 = arith.constant 0 : index
      %c0_23 = arith.constant 0 : index
      %38 = vector.load %arg2[%c0_22, %c0_23] : memref<128x128xf32, #tpu.memory_space<vmem>>, vector<128x128xf32>
      %cst_24 = arith.constant dense<0.000000e+00> : vector<8x128xf32>
      %39 = tpu.matmul %37, %38, %cst_24 {dimension_numbers = #tpu.dot_dimension_numbers<[1], [0], [0], [1], [0, 0, 1, 1], [], []>} : vector<8x128xf32>, vector<128x128xf32>, vector<8x128xf32> -> vector<8x128xf32>
      %40 = arith.addf %39, %2 : vector<8x128xf32>
      %41 = math.tanh %40 : vector<8x128xf32>
      %42 = vector.broadcast %18 : f32 to vector<8x128xf32>
      %43 = arith.mulf %42, %34 : vector<8x128xf32>
      %44 = arith.addf %arg6, %43 : vector<8x128xf32>
      %c0_25 = arith.constant 0 : index
      %c0_26 = arith.constant 0 : index
      %45 = vector.load %arg2[%c0_25, %c0_26] : memref<128x128xf32, #tpu.memory_space<vmem>>, vector<128x128xf32>
      %cst_27 = arith.constant dense<0.000000e+00> : vector<8x128xf32>
      %46 = tpu.matmul %44, %45, %cst_27 {dimension_numbers = #tpu.dot_dimension_numbers<[1], [0], [0], [1], [0, 0, 1, 1], [], []>} : vector<8x128xf32>, vector<128x128xf32>, vector<8x128xf32> -> vector<8x128xf32>
      %47 = arith.addf %46, %2 : vector<8x128xf32>
      %48 = math.tanh %47 : vector<8x128xf32>
      %49 = vector.broadcast %18 : f32 to vector<8x128xf32>
      %50 = arith.mulf %49, %41 : vector<8x128xf32>
      %51 = arith.addf %arg7, %50 : vector<8x128xf32>
      %c0_28 = arith.constant 0 : index
      %c0_29 = arith.constant 0 : index
      %52 = vector.load %arg2[%c0_28, %c0_29] : memref<128x128xf32, #tpu.memory_space<vmem>>, vector<128x128xf32>
      %cst_30 = arith.constant dense<0.000000e+00> : vector<8x128xf32>
      %53 = tpu.matmul %51, %52, %cst_30 {dimension_numbers = #tpu.dot_dimension_numbers<[1], [0], [0], [1], [0, 0, 1, 1], [], []>} : vector<8x128xf32>, vector<128x128xf32>, vector<8x128xf32> -> vector<8x128xf32>
      %54 = arith.addf %53, %2 : vector<8x128xf32>
      %55 = math.tanh %54 : vector<8x128xf32>
      %56 = vector.broadcast %17 : f32 to vector<8x128xf32>
      %57 = arith.mulf %56, %48 : vector<8x128xf32>
      %58 = arith.addf %arg6, %57 : vector<8x128xf32>
      %c0_31 = arith.constant 0 : index
      %c0_32 = arith.constant 0 : index
      %59 = vector.load %arg2[%c0_31, %c0_32] : memref<128x128xf32, #tpu.memory_space<vmem>>, vector<128x128xf32>
      %cst_33 = arith.constant dense<0.000000e+00> : vector<8x128xf32>
      %60 = tpu.matmul %58, %59, %cst_33 {dimension_numbers = #tpu.dot_dimension_numbers<[1], [0], [0], [1], [0, 0, 1, 1], [], []>} : vector<8x128xf32>, vector<128x128xf32>, vector<8x128xf32> -> vector<8x128xf32>
      %61 = arith.addf %60, %2 : vector<8x128xf32>
      %62 = math.tanh %61 : vector<8x128xf32>
      %63 = vector.broadcast %17 : f32 to vector<8x128xf32>
      %64 = arith.mulf %63, %55 : vector<8x128xf32>
      %65 = arith.addf %arg7, %64 : vector<8x128xf32>
      %c0_34 = arith.constant 0 : index
      %c0_35 = arith.constant 0 : index
      %66 = vector.load %arg2[%c0_34, %c0_35] : memref<128x128xf32, #tpu.memory_space<vmem>>, vector<128x128xf32>
      %cst_36 = arith.constant dense<0.000000e+00> : vector<8x128xf32>
      %67 = tpu.matmul %65, %66, %cst_36 {dimension_numbers = #tpu.dot_dimension_numbers<[1], [0], [0], [1], [0, 0, 1, 1], [], []>} : vector<8x128xf32>, vector<128x128xf32>, vector<8x128xf32> -> vector<8x128xf32>
      %68 = arith.addf %67, %2 : vector<8x128xf32>
      %69 = math.tanh %68 : vector<8x128xf32>
      %cst_37 = arith.constant 2.000000e+00 : f32
      %70 = vector.broadcast %cst_37 : f32 to vector<8x128xf32>
      %71 = arith.mulf %70, %34 : vector<8x128xf32>
      %72 = arith.addf %23, %71 : vector<8x128xf32>
      %cst_38 = arith.constant 2.000000e+00 : f32
      %73 = vector.broadcast %cst_38 : f32 to vector<8x128xf32>
      %74 = arith.mulf %73, %48 : vector<8x128xf32>
      %75 = arith.addf %72, %74 : vector<8x128xf32>
      %76 = arith.addf %75, %62 : vector<8x128xf32>
      %77 = vector.broadcast %19 : f32 to vector<8x128xf32>
      %78 = arith.mulf %77, %76 : vector<8x128xf32>
      %79 = arith.addf %arg6, %78 : vector<8x128xf32>
      %cst_39 = arith.constant 2.000000e+00 : f32
      %80 = vector.broadcast %cst_39 : f32 to vector<8x128xf32>
      %81 = arith.mulf %80, %41 : vector<8x128xf32>
      %82 = arith.addf %27, %81 : vector<8x128xf32>
      %cst_40 = arith.constant 2.000000e+00 : f32
      %83 = vector.broadcast %cst_40 : f32 to vector<8x128xf32>
      %84 = arith.mulf %83, %55 : vector<8x128xf32>
      %85 = arith.addf %82, %84 : vector<8x128xf32>
      %86 = arith.addf %85, %69 : vector<8x128xf32>
      %87 = vector.broadcast %19 : f32 to vector<8x128xf32>
      %88 = arith.mulf %87, %86 : vector<8x128xf32>
      %89 = arith.addf %arg7, %88 : vector<8x128xf32>
      %c0_41 = arith.constant 0 : index
      %c0_42 = arith.constant 0 : index
      %90 = vector.load %arg2[%c0_41, %c0_42] : memref<128x128xf32, #tpu.memory_space<vmem>>, vector<128x128xf32>
      %cst_43 = arith.constant dense<0.000000e+00> : vector<8x128xf32>
      %91 = tpu.matmul %79, %90, %cst_43 {dimension_numbers = #tpu.dot_dimension_numbers<[1], [0], [0], [1], [0, 0, 1, 1], [], []>} : vector<8x128xf32>, vector<128x128xf32>, vector<8x128xf32> -> vector<8x128xf32>
      %92 = arith.addf %91, %2 : vector<8x128xf32>
      %93 = math.tanh %92 : vector<8x128xf32>
      %c0_44 = arith.constant 0 : index
      %c0_45 = arith.constant 0 : index
      %94 = vector.load %arg2[%c0_44, %c0_45] : memref<128x128xf32, #tpu.memory_space<vmem>>, vector<128x128xf32>
      %cst_46 = arith.constant dense<0.000000e+00> : vector<8x128xf32>
      %95 = tpu.matmul %89, %94, %cst_46 {dimension_numbers = #tpu.dot_dimension_numbers<[1], [0], [0], [1], [0, 0, 1, 1], [], []>} : vector<8x128xf32>, vector<128x128xf32>, vector<8x128xf32> -> vector<8x128xf32>
      %96 = arith.addf %95, %2 : vector<8x128xf32>
      %97 = math.tanh %96 : vector<8x128xf32>
      %98 = vector.broadcast %18 : f32 to vector<8x128xf32>
      %99 = arith.mulf %98, %93 : vector<8x128xf32>
      %100 = arith.addf %79, %99 : vector<8x128xf32>
      %c0_47 = arith.constant 0 : index
      %c0_48 = arith.constant 0 : index
      %101 = vector.load %arg2[%c0_47, %c0_48] : memref<128x128xf32, #tpu.memory_space<vmem>>, vector<128x128xf32>
      %cst_49 = arith.constant dense<0.000000e+00> : vector<8x128xf32>
      %102 = tpu.matmul %100, %101, %cst_49 {dimension_numbers = #tpu.dot_dimension_numbers<[1], [0], [0], [1], [0, 0, 1, 1], [], []>} : vector<8x128xf32>, vector<128x128xf32>, vector<8x128xf32> -> vector<8x128xf32>
      %103 = arith.addf %102, %2 : vector<8x128xf32>
      %104 = math.tanh %103 : vector<8x128xf32>
      %105 = vector.broadcast %18 : f32 to vector<8x128xf32>
      %106 = arith.mulf %105, %97 : vector<8x128xf32>
      %107 = arith.addf %89, %106 : vector<8x128xf32>
      %c0_50 = arith.constant 0 : index
      %c0_51 = arith.constant 0 : index
      %108 = vector.load %arg2[%c0_50, %c0_51] : memref<128x128xf32, #tpu.memory_space<vmem>>, vector<128x128xf32>
      %cst_52 = arith.constant dense<0.000000e+00> : vector<8x128xf32>
      %109 = tpu.matmul %107, %108, %cst_52 {dimension_numbers = #tpu.dot_dimension_numbers<[1], [0], [0], [1], [0, 0, 1, 1], [], []>} : vector<8x128xf32>, vector<128x128xf32>, vector<8x128xf32> -> vector<8x128xf32>
      %110 = arith.addf %109, %2 : vector<8x128xf32>
      %111 = math.tanh %110 : vector<8x128xf32>
      %112 = vector.broadcast %18 : f32 to vector<8x128xf32>
      %113 = arith.mulf %112, %104 : vector<8x128xf32>
      %114 = arith.addf %79, %113 : vector<8x128xf32>
      %c0_53 = arith.constant 0 : index
      %c0_54 = arith.constant 0 : index
      %115 = vector.load %arg2[%c0_53, %c0_54] : memref<128x128xf32, #tpu.memory_space<vmem>>, vector<128x128xf32>
      %cst_55 = arith.constant dense<0.000000e+00> : vector<8x128xf32>
      %116 = tpu.matmul %114, %115, %cst_55 {dimension_numbers = #tpu.dot_dimension_numbers<[1], [0], [0], [1], [0, 0, 1, 1], [], []>} : vector<8x128xf32>, vector<128x128xf32>, vector<8x128xf32> -> vector<8x128xf32>
      %117 = arith.addf %116, %2 : vector<8x128xf32>
      %118 = math.tanh %117 : vector<8x128xf32>
      %119 = vector.broadcast %18 : f32 to vector<8x128xf32>
      %120 = arith.mulf %119, %111 : vector<8x128xf32>
      %121 = arith.addf %89, %120 : vector<8x128xf32>
      %c0_56 = arith.constant 0 : index
      %c0_57 = arith.constant 0 : index
      %122 = vector.load %arg2[%c0_56, %c0_57] : memref<128x128xf32, #tpu.memory_space<vmem>>, vector<128x128xf32>
      %cst_58 = arith.constant dense<0.000000e+00> : vector<8x128xf32>
      %123 = tpu.matmul %121, %122, %cst_58 {dimension_numbers = #tpu.dot_dimension_numbers<[1], [0], [0], [1], [0, 0, 1, 1], [], []>} : vector<8x128xf32>, vector<128x128xf32>, vector<8x128xf32> -> vector<8x128xf32>
      %124 = arith.addf %123, %2 : vector<8x128xf32>
      %125 = math.tanh %124 : vector<8x128xf32>
      %126 = vector.broadcast %17 : f32 to vector<8x128xf32>
      %127 = arith.mulf %126, %118 : vector<8x128xf32>
      %128 = arith.addf %79, %127 : vector<8x128xf32>
      %c0_59 = arith.constant 0 : index
      %c0_60 = arith.constant 0 : index
      %129 = vector.load %arg2[%c0_59, %c0_60] : memref<128x128xf32, #tpu.memory_space<vmem>>, vector<128x128xf32>
      %cst_61 = arith.constant dense<0.000000e+00> : vector<8x128xf32>
      %130 = tpu.matmul %128, %129, %cst_61 {dimension_numbers = #tpu.dot_dimension_numbers<[1], [0], [0], [1], [0, 0, 1, 1], [], []>} : vector<8x128xf32>, vector<128x128xf32>, vector<8x128xf32> -> vector<8x128xf32>
      %131 = arith.addf %130, %2 : vector<8x128xf32>
      %132 = math.tanh %131 : vector<8x128xf32>
      %133 = vector.broadcast %17 : f32 to vector<8x128xf32>
      %134 = arith.mulf %133, %125 : vector<8x128xf32>
      %135 = arith.addf %89, %134 : vector<8x128xf32>
      %c0_62 = arith.constant 0 : index
      %c0_63 = arith.constant 0 : index
      %136 = vector.load %arg2[%c0_62, %c0_63] : memref<128x128xf32, #tpu.memory_space<vmem>>, vector<128x128xf32>
      %cst_64 = arith.constant dense<0.000000e+00> : vector<8x128xf32>
      %137 = tpu.matmul %135, %136, %cst_64 {dimension_numbers = #tpu.dot_dimension_numbers<[1], [0], [0], [1], [0, 0, 1, 1], [], []>} : vector<8x128xf32>, vector<128x128xf32>, vector<8x128xf32> -> vector<8x128xf32>
      %138 = arith.addf %137, %2 : vector<8x128xf32>
      %139 = math.tanh %138 : vector<8x128xf32>
      %cst_65 = arith.constant 2.000000e+00 : f32
      %140 = vector.broadcast %cst_65 : f32 to vector<8x128xf32>
      %141 = arith.mulf %140, %104 : vector<8x128xf32>
      %142 = arith.addf %93, %141 : vector<8x128xf32>
      %cst_66 = arith.constant 2.000000e+00 : f32
      %143 = vector.broadcast %cst_66 : f32 to vector<8x128xf32>
      %144 = arith.mulf %143, %118 : vector<8x128xf32>
      %145 = arith.addf %142, %144 : vector<8x128xf32>
      %146 = arith.addf %145, %132 : vector<8x128xf32>
      %147 = vector.broadcast %19 : f32 to vector<8x128xf32>
      %148 = arith.mulf %147, %146 : vector<8x128xf32>
      %149 = arith.addf %79, %148 : vector<8x128xf32>
      %cst_67 = arith.constant 2.000000e+00 : f32
      %150 = vector.broadcast %cst_67 : f32 to vector<8x128xf32>
      %151 = arith.mulf %150, %111 : vector<8x128xf32>
      %152 = arith.addf %97, %151 : vector<8x128xf32>
      %cst_68 = arith.constant 2.000000e+00 : f32
      %153 = vector.broadcast %cst_68 : f32 to vector<8x128xf32>
      %154 = arith.mulf %153, %125 : vector<8x128xf32>
      %155 = arith.addf %152, %154 : vector<8x128xf32>
      %156 = arith.addf %155, %139 : vector<8x128xf32>
      %157 = vector.broadcast %19 : f32 to vector<8x128xf32>
      %158 = arith.mulf %157, %156 : vector<8x128xf32>
      %159 = arith.addf %89, %158 : vector<8x128xf32>
      %c0_69 = arith.constant 0 : index
      %c0_70 = arith.constant 0 : index
      %160 = vector.load %arg2[%c0_69, %c0_70] : memref<128x128xf32, #tpu.memory_space<vmem>>, vector<128x128xf32>
      %cst_71 = arith.constant dense<0.000000e+00> : vector<8x128xf32>
      %161 = tpu.matmul %149, %160, %cst_71 {dimension_numbers = #tpu.dot_dimension_numbers<[1], [0], [0], [1], [0, 0, 1, 1], [], []>} : vector<8x128xf32>, vector<128x128xf32>, vector<8x128xf32> -> vector<8x128xf32>
      %162 = arith.addf %161, %2 : vector<8x128xf32>
      %163 = math.tanh %162 : vector<8x128xf32>
      %c0_72 = arith.constant 0 : index
      %c0_73 = arith.constant 0 : index
      %164 = vector.load %arg2[%c0_72, %c0_73] : memref<128x128xf32, #tpu.memory_space<vmem>>, vector<128x128xf32>
      %cst_74 = arith.constant dense<0.000000e+00> : vector<8x128xf32>
      %165 = tpu.matmul %159, %164, %cst_74 {dimension_numbers = #tpu.dot_dimension_numbers<[1], [0], [0], [1], [0, 0, 1, 1], [], []>} : vector<8x128xf32>, vector<128x128xf32>, vector<8x128xf32> -> vector<8x128xf32>
      %166 = arith.addf %165, %2 : vector<8x128xf32>
      %167 = math.tanh %166 : vector<8x128xf32>
      %168 = vector.broadcast %18 : f32 to vector<8x128xf32>
      %169 = arith.mulf %168, %163 : vector<8x128xf32>
      %170 = arith.addf %149, %169 : vector<8x128xf32>
      %c0_75 = arith.constant 0 : index
      %c0_76 = arith.constant 0 : index
      %171 = vector.load %arg2[%c0_75, %c0_76] : memref<128x128xf32, #tpu.memory_space<vmem>>, vector<128x128xf32>
      %cst_77 = arith.constant dense<0.000000e+00> : vector<8x128xf32>
      %172 = tpu.matmul %170, %171, %cst_77 {dimension_numbers = #tpu.dot_dimension_numbers<[1], [0], [0], [1], [0, 0, 1, 1], [], []>} : vector<8x128xf32>, vector<128x128xf32>, vector<8x128xf32> -> vector<8x128xf32>
      %173 = arith.addf %172, %2 : vector<8x128xf32>
      %174 = math.tanh %173 : vector<8x128xf32>
      %175 = vector.broadcast %18 : f32 to vector<8x128xf32>
      %176 = arith.mulf %175, %167 : vector<8x128xf32>
      %177 = arith.addf %159, %176 : vector<8x128xf32>
      %c0_78 = arith.constant 0 : index
      %c0_79 = arith.constant 0 : index
      %178 = vector.load %arg2[%c0_78, %c0_79] : memref<128x128xf32, #tpu.memory_space<vmem>>, vector<128x128xf32>
      %cst_80 = arith.constant dense<0.000000e+00> : vector<8x128xf32>
      %179 = tpu.matmul %177, %178, %cst_80 {dimension_numbers = #tpu.dot_dimension_numbers<[1], [0], [0], [1], [0, 0, 1, 1], [], []>} : vector<8x128xf32>, vector<128x128xf32>, vector<8x128xf32> -> vector<8x128xf32>
      %180 = arith.addf %179, %2 : vector<8x128xf32>
      %181 = math.tanh %180 : vector<8x128xf32>
      %182 = vector.broadcast %18 : f32 to vector<8x128xf32>
      %183 = arith.mulf %182, %174 : vector<8x128xf32>
      %184 = arith.addf %149, %183 : vector<8x128xf32>
      %c0_81 = arith.constant 0 : index
      %c0_82 = arith.constant 0 : index
      %185 = vector.load %arg2[%c0_81, %c0_82] : memref<128x128xf32, #tpu.memory_space<vmem>>, vector<128x128xf32>
      %cst_83 = arith.constant dense<0.000000e+00> : vector<8x128xf32>
      %186 = tpu.matmul %184, %185, %cst_83 {dimension_numbers = #tpu.dot_dimension_numbers<[1], [0], [0], [1], [0, 0, 1, 1], [], []>} : vector<8x128xf32>, vector<128x128xf32>, vector<8x128xf32> -> vector<8x128xf32>
      %187 = arith.addf %186, %2 : vector<8x128xf32>
      %188 = math.tanh %187 : vector<8x128xf32>
      %189 = vector.broadcast %18 : f32 to vector<8x128xf32>
      %190 = arith.mulf %189, %181 : vector<8x128xf32>
      %191 = arith.addf %159, %190 : vector<8x128xf32>
      %c0_84 = arith.constant 0 : index
      %c0_85 = arith.constant 0 : index
      %192 = vector.load %arg2[%c0_84, %c0_85] : memref<128x128xf32, #tpu.memory_space<vmem>>, vector<128x128xf32>
      %cst_86 = arith.constant dense<0.000000e+00> : vector<8x128xf32>
      %193 = tpu.matmul %191, %192, %cst_86 {dimension_numbers = #tpu.dot_dimension_numbers<[1], [0], [0], [1], [0, 0, 1, 1], [], []>} : vector<8x128xf32>, vector<128x128xf32>, vector<8x128xf32> -> vector<8x128xf32>
      %194 = arith.addf %193, %2 : vector<8x128xf32>
      %195 = math.tanh %194 : vector<8x128xf32>
      %196 = vector.broadcast %17 : f32 to vector<8x128xf32>
      %197 = arith.mulf %196, %188 : vector<8x128xf32>
      %198 = arith.addf %149, %197 : vector<8x128xf32>
      %c0_87 = arith.constant 0 : index
      %c0_88 = arith.constant 0 : index
      %199 = vector.load %arg2[%c0_87, %c0_88] : memref<128x128xf32, #tpu.memory_space<vmem>>, vector<128x128xf32>
      %cst_89 = arith.constant dense<0.000000e+00> : vector<8x128xf32>
      %200 = tpu.matmul %198, %199, %cst_89 {dimension_numbers = #tpu.dot_dimension_numbers<[1], [0], [0], [1], [0, 0, 1, 1], [], []>} : vector<8x128xf32>, vector<128x128xf32>, vector<8x128xf32> -> vector<8x128xf32>
      %201 = arith.addf %200, %2 : vector<8x128xf32>
      %202 = math.tanh %201 : vector<8x128xf32>
      %203 = vector.broadcast %17 : f32 to vector<8x128xf32>
      %204 = arith.mulf %203, %195 : vector<8x128xf32>
      %205 = arith.addf %159, %204 : vector<8x128xf32>
      %c0_90 = arith.constant 0 : index
      %c0_91 = arith.constant 0 : index
      %206 = vector.load %arg2[%c0_90, %c0_91] : memref<128x128xf32, #tpu.memory_space<vmem>>, vector<128x128xf32>
      %cst_92 = arith.constant dense<0.000000e+00> : vector<8x128xf32>
      %207 = tpu.matmul %205, %206, %cst_92 {dimension_numbers = #tpu.dot_dimension_numbers<[1], [0], [0], [1], [0, 0, 1, 1], [], []>} : vector<8x128xf32>, vector<128x128xf32>, vector<8x128xf32> -> vector<8x128xf32>
      %208 = arith.addf %207, %2 : vector<8x128xf32>
      %209 = math.tanh %208 : vector<8x128xf32>
      %cst_93 = arith.constant 2.000000e+00 : f32
      %210 = vector.broadcast %cst_93 : f32 to vector<8x128xf32>
      %211 = arith.mulf %210, %174 : vector<8x128xf32>
      %212 = arith.addf %163, %211 : vector<8x128xf32>
      %cst_94 = arith.constant 2.000000e+00 : f32
      %213 = vector.broadcast %cst_94 : f32 to vector<8x128xf32>
      %214 = arith.mulf %213, %188 : vector<8x128xf32>
      %215 = arith.addf %212, %214 : vector<8x128xf32>
      %216 = arith.addf %215, %202 : vector<8x128xf32>
      %217 = vector.broadcast %19 : f32 to vector<8x128xf32>
      %218 = arith.mulf %217, %216 : vector<8x128xf32>
      %219 = arith.addf %149, %218 : vector<8x128xf32>
      %cst_95 = arith.constant 2.000000e+00 : f32
      %220 = vector.broadcast %cst_95 : f32 to vector<8x128xf32>
      %221 = arith.mulf %220, %181 : vector<8x128xf32>
      %222 = arith.addf %167, %221 : vector<8x128xf32>
      %cst_96 = arith.constant 2.000000e+00 : f32
      %223 = vector.broadcast %cst_96 : f32 to vector<8x128xf32>
      %224 = arith.mulf %223, %195 : vector<8x128xf32>
      %225 = arith.addf %222, %224 : vector<8x128xf32>
      %226 = arith.addf %225, %209 : vector<8x128xf32>
      %227 = vector.broadcast %19 : f32 to vector<8x128xf32>
      %228 = arith.mulf %227, %226 : vector<8x128xf32>
      %229 = arith.addf %159, %228 : vector<8x128xf32>
      %c0_97 = arith.constant 0 : index
      %c0_98 = arith.constant 0 : index
      %230 = vector.load %arg2[%c0_97, %c0_98] : memref<128x128xf32, #tpu.memory_space<vmem>>, vector<128x128xf32>
      %cst_99 = arith.constant dense<0.000000e+00> : vector<8x128xf32>
      %231 = tpu.matmul %219, %230, %cst_99 {dimension_numbers = #tpu.dot_dimension_numbers<[1], [0], [0], [1], [0, 0, 1, 1], [], []>} : vector<8x128xf32>, vector<128x128xf32>, vector<8x128xf32> -> vector<8x128xf32>
      %232 = arith.addf %231, %2 : vector<8x128xf32>
      %233 = math.tanh %232 : vector<8x128xf32>
      %c0_100 = arith.constant 0 : index
      %c0_101 = arith.constant 0 : index
      %234 = vector.load %arg2[%c0_100, %c0_101] : memref<128x128xf32, #tpu.memory_space<vmem>>, vector<128x128xf32>
      %cst_102 = arith.constant dense<0.000000e+00> : vector<8x128xf32>
      %235 = tpu.matmul %229, %234, %cst_102 {dimension_numbers = #tpu.dot_dimension_numbers<[1], [0], [0], [1], [0, 0, 1, 1], [], []>} : vector<8x128xf32>, vector<128x128xf32>, vector<8x128xf32> -> vector<8x128xf32>
      %236 = arith.addf %235, %2 : vector<8x128xf32>
      %237 = math.tanh %236 : vector<8x128xf32>
      %238 = vector.broadcast %18 : f32 to vector<8x128xf32>
      %239 = arith.mulf %238, %233 : vector<8x128xf32>
      %240 = arith.addf %219, %239 : vector<8x128xf32>
      %c0_103 = arith.constant 0 : index
      %c0_104 = arith.constant 0 : index
      %241 = vector.load %arg2[%c0_103, %c0_104] : memref<128x128xf32, #tpu.memory_space<vmem>>, vector<128x128xf32>
      %cst_105 = arith.constant dense<0.000000e+00> : vector<8x128xf32>
      %242 = tpu.matmul %240, %241, %cst_105 {dimension_numbers = #tpu.dot_dimension_numbers<[1], [0], [0], [1], [0, 0, 1, 1], [], []>} : vector<8x128xf32>, vector<128x128xf32>, vector<8x128xf32> -> vector<8x128xf32>
      %243 = arith.addf %242, %2 : vector<8x128xf32>
      %244 = math.tanh %243 : vector<8x128xf32>
      %245 = vector.broadcast %18 : f32 to vector<8x128xf32>
      %246 = arith.mulf %245, %237 : vector<8x128xf32>
      %247 = arith.addf %229, %246 : vector<8x128xf32>
      %c0_106 = arith.constant 0 : index
      %c0_107 = arith.constant 0 : index
      %248 = vector.load %arg2[%c0_106, %c0_107] : memref<128x128xf32, #tpu.memory_space<vmem>>, vector<128x128xf32>
      %cst_108 = arith.constant dense<0.000000e+00> : vector<8x128xf32>
      %249 = tpu.matmul %247, %248, %cst_108 {dimension_numbers = #tpu.dot_dimension_numbers<[1], [0], [0], [1], [0, 0, 1, 1], [], []>} : vector<8x128xf32>, vector<128x128xf32>, vector<8x128xf32> -> vector<8x128xf32>
      %250 = arith.addf %249, %2 : vector<8x128xf32>
      %251 = math.tanh %250 : vector<8x128xf32>
      %252 = vector.broadcast %18 : f32 to vector<8x128xf32>
      %253 = arith.mulf %252, %244 : vector<8x128xf32>
      %254 = arith.addf %219, %253 : vector<8x128xf32>
      %c0_109 = arith.constant 0 : index
      %c0_110 = arith.constant 0 : index
      %255 = vector.load %arg2[%c0_109, %c0_110] : memref<128x128xf32, #tpu.memory_space<vmem>>, vector<128x128xf32>
      %cst_111 = arith.constant dense<0.000000e+00> : vector<8x128xf32>
      %256 = tpu.matmul %254, %255, %cst_111 {dimension_numbers = #tpu.dot_dimension_numbers<[1], [0], [0], [1], [0, 0, 1, 1], [], []>} : vector<8x128xf32>, vector<128x128xf32>, vector<8x128xf32> -> vector<8x128xf32>
      %257 = arith.addf %256, %2 : vector<8x128xf32>
      %258 = math.tanh %257 : vector<8x128xf32>
      %259 = vector.broadcast %18 : f32 to vector<8x128xf32>
      %260 = arith.mulf %259, %251 : vector<8x128xf32>
      %261 = arith.addf %229, %260 : vector<8x128xf32>
      %c0_112 = arith.constant 0 : index
      %c0_113 = arith.constant 0 : index
      %262 = vector.load %arg2[%c0_112, %c0_113] : memref<128x128xf32, #tpu.memory_space<vmem>>, vector<128x128xf32>
      %cst_114 = arith.constant dense<0.000000e+00> : vector<8x128xf32>
      %263 = tpu.matmul %261, %262, %cst_114 {dimension_numbers = #tpu.dot_dimension_numbers<[1], [0], [0], [1], [0, 0, 1, 1], [], []>} : vector<8x128xf32>, vector<128x128xf32>, vector<8x128xf32> -> vector<8x128xf32>
      %264 = arith.addf %263, %2 : vector<8x128xf32>
      %265 = math.tanh %264 : vector<8x128xf32>
      %266 = vector.broadcast %17 : f32 to vector<8x128xf32>
      %267 = arith.mulf %266, %258 : vector<8x128xf32>
      %268 = arith.addf %219, %267 : vector<8x128xf32>
      %c0_115 = arith.constant 0 : index
      %c0_116 = arith.constant 0 : index
      %269 = vector.load %arg2[%c0_115, %c0_116] : memref<128x128xf32, #tpu.memory_space<vmem>>, vector<128x128xf32>
      %cst_117 = arith.constant dense<0.000000e+00> : vector<8x128xf32>
      %270 = tpu.matmul %268, %269, %cst_117 {dimension_numbers = #tpu.dot_dimension_numbers<[1], [0], [0], [1], [0, 0, 1, 1], [], []>} : vector<8x128xf32>, vector<128x128xf32>, vector<8x128xf32> -> vector<8x128xf32>
      %271 = arith.addf %270, %2 : vector<8x128xf32>
      %272 = math.tanh %271 : vector<8x128xf32>
      %273 = vector.broadcast %17 : f32 to vector<8x128xf32>
      %274 = arith.mulf %273, %265 : vector<8x128xf32>
      %275 = arith.addf %229, %274 : vector<8x128xf32>
      %c0_118 = arith.constant 0 : index
      %c0_119 = arith.constant 0 : index
      %276 = vector.load %arg2[%c0_118, %c0_119] : memref<128x128xf32, #tpu.memory_space<vmem>>, vector<128x128xf32>
      %cst_120 = arith.constant dense<0.000000e+00> : vector<8x128xf32>
      %277 = tpu.matmul %275, %276, %cst_120 {dimension_numbers = #tpu.dot_dimension_numbers<[1], [0], [0], [1], [0, 0, 1, 1], [], []>} : vector<8x128xf32>, vector<128x128xf32>, vector<8x128xf32> -> vector<8x128xf32>
      %278 = arith.addf %277, %2 : vector<8x128xf32>
      %279 = math.tanh %278 : vector<8x128xf32>
      %cst_121 = arith.constant 2.000000e+00 : f32
      %280 = vector.broadcast %cst_121 : f32 to vector<8x128xf32>
      %281 = arith.mulf %280, %244 : vector<8x128xf32>
      %282 = arith.addf %233, %281 : vector<8x128xf32>
      %cst_122 = arith.constant 2.000000e+00 : f32
      %283 = vector.broadcast %cst_122 : f32 to vector<8x128xf32>
      %284 = arith.mulf %283, %258 : vector<8x128xf32>
      %285 = arith.addf %282, %284 : vector<8x128xf32>
      %286 = arith.addf %285, %272 : vector<8x128xf32>
      %287 = vector.broadcast %19 : f32 to vector<8x128xf32>
      %288 = arith.mulf %287, %286 : vector<8x128xf32>
      %289 = arith.addf %219, %288 : vector<8x128xf32>
      %cst_123 = arith.constant 2.000000e+00 : f32
      %290 = vector.broadcast %cst_123 : f32 to vector<8x128xf32>
      %291 = arith.mulf %290, %251 : vector<8x128xf32>
      %292 = arith.addf %237, %291 : vector<8x128xf32>
      %cst_124 = arith.constant 2.000000e+00 : f32
      %293 = vector.broadcast %cst_124 : f32 to vector<8x128xf32>
      %294 = arith.mulf %293, %265 : vector<8x128xf32>
      %295 = arith.addf %292, %294 : vector<8x128xf32>
      %296 = arith.addf %295, %279 : vector<8x128xf32>
      %297 = vector.broadcast %19 : f32 to vector<8x128xf32>
      %298 = arith.mulf %297, %296 : vector<8x128xf32>
      %299 = arith.addf %229, %298 : vector<8x128xf32>
      %c0_125 = arith.constant 0 : index
      %c0_126 = arith.constant 0 : index
      %300 = vector.load %arg2[%c0_125, %c0_126] : memref<128x128xf32, #tpu.memory_space<vmem>>, vector<128x128xf32>
      %cst_127 = arith.constant dense<0.000000e+00> : vector<8x128xf32>
      %301 = tpu.matmul %289, %300, %cst_127 {dimension_numbers = #tpu.dot_dimension_numbers<[1], [0], [0], [1], [0, 0, 1, 1], [], []>} : vector<8x128xf32>, vector<128x128xf32>, vector<8x128xf32> -> vector<8x128xf32>
      %302 = arith.addf %301, %2 : vector<8x128xf32>
      %303 = math.tanh %302 : vector<8x128xf32>
      %c0_128 = arith.constant 0 : index
      %c0_129 = arith.constant 0 : index
      %304 = vector.load %arg2[%c0_128, %c0_129] : memref<128x128xf32, #tpu.memory_space<vmem>>, vector<128x128xf32>
      %cst_130 = arith.constant dense<0.000000e+00> : vector<8x128xf32>
      %305 = tpu.matmul %299, %304, %cst_130 {dimension_numbers = #tpu.dot_dimension_numbers<[1], [0], [0], [1], [0, 0, 1, 1], [], []>} : vector<8x128xf32>, vector<128x128xf32>, vector<8x128xf32> -> vector<8x128xf32>
      %306 = arith.addf %305, %2 : vector<8x128xf32>
      %307 = math.tanh %306 : vector<8x128xf32>
      %308 = vector.broadcast %18 : f32 to vector<8x128xf32>
      %309 = arith.mulf %308, %303 : vector<8x128xf32>
      %310 = arith.addf %289, %309 : vector<8x128xf32>
      %c0_131 = arith.constant 0 : index
      %c0_132 = arith.constant 0 : index
      %311 = vector.load %arg2[%c0_131, %c0_132] : memref<128x128xf32, #tpu.memory_space<vmem>>, vector<128x128xf32>
      %cst_133 = arith.constant dense<0.000000e+00> : vector<8x128xf32>
      %312 = tpu.matmul %310, %311, %cst_133 {dimension_numbers = #tpu.dot_dimension_numbers<[1], [0], [0], [1], [0, 0, 1, 1], [], []>} : vector<8x128xf32>, vector<128x128xf32>, vector<8x128xf32> -> vector<8x128xf32>
      %313 = arith.addf %312, %2 : vector<8x128xf32>
      %314 = math.tanh %313 : vector<8x128xf32>
      %315 = vector.broadcast %18 : f32 to vector<8x128xf32>
      %316 = arith.mulf %315, %307 : vector<8x128xf32>
      %317 = arith.addf %299, %316 : vector<8x128xf32>
      %c0_134 = arith.constant 0 : index
      %c0_135 = arith.constant 0 : index
      %318 = vector.load %arg2[%c0_134, %c0_135] : memref<128x128xf32, #tpu.memory_space<vmem>>, vector<128x128xf32>
      %cst_136 = arith.constant dense<0.000000e+00> : vector<8x128xf32>
      %319 = tpu.matmul %317, %318, %cst_136 {dimension_numbers = #tpu.dot_dimension_numbers<[1], [0], [0], [1], [0, 0, 1, 1], [], []>} : vector<8x128xf32>, vector<128x128xf32>, vector<8x128xf32> -> vector<8x128xf32>
      %320 = arith.addf %319, %2 : vector<8x128xf32>
      %321 = math.tanh %320 : vector<8x128xf32>
      %322 = vector.broadcast %18 : f32 to vector<8x128xf32>
      %323 = arith.mulf %322, %314 : vector<8x128xf32>
      %324 = arith.addf %289, %323 : vector<8x128xf32>
      %c0_137 = arith.constant 0 : index
      %c0_138 = arith.constant 0 : index
      %325 = vector.load %arg2[%c0_137, %c0_138] : memref<128x128xf32, #tpu.memory_space<vmem>>, vector<128x128xf32>
      %cst_139 = arith.constant dense<0.000000e+00> : vector<8x128xf32>
      %326 = tpu.matmul %324, %325, %cst_139 {dimension_numbers = #tpu.dot_dimension_numbers<[1], [0], [0], [1], [0, 0, 1, 1], [], []>} : vector<8x128xf32>, vector<128x128xf32>, vector<8x128xf32> -> vector<8x128xf32>
      %327 = arith.addf %326, %2 : vector<8x128xf32>
      %328 = math.tanh %327 : vector<8x128xf32>
      %329 = vector.broadcast %18 : f32 to vector<8x128xf32>
      %330 = arith.mulf %329, %321 : vector<8x128xf32>
      %331 = arith.addf %299, %330 : vector<8x128xf32>
      %c0_140 = arith.constant 0 : index
      %c0_141 = arith.constant 0 : index
      %332 = vector.load %arg2[%c0_140, %c0_141] : memref<128x128xf32, #tpu.memory_space<vmem>>, vector<128x128xf32>
      %cst_142 = arith.constant dense<0.000000e+00> : vector<8x128xf32>
      %333 = tpu.matmul %331, %332, %cst_142 {dimension_numbers = #tpu.dot_dimension_numbers<[1], [0], [0], [1], [0, 0, 1, 1], [], []>} : vector<8x128xf32>, vector<128x128xf32>, vector<8x128xf32> -> vector<8x128xf32>
      %334 = arith.addf %333, %2 : vector<8x128xf32>
      %335 = math.tanh %334 : vector<8x128xf32>
      %336 = vector.broadcast %17 : f32 to vector<8x128xf32>
      %337 = arith.mulf %336, %328 : vector<8x128xf32>
      %338 = arith.addf %289, %337 : vector<8x128xf32>
      %c0_143 = arith.constant 0 : index
      %c0_144 = arith.constant 0 : index
      %339 = vector.load %arg2[%c0_143, %c0_144] : memref<128x128xf32, #tpu.memory_space<vmem>>, vector<128x128xf32>
      %cst_145 = arith.constant dense<0.000000e+00> : vector<8x128xf32>
      %340 = tpu.matmul %338, %339, %cst_145 {dimension_numbers = #tpu.dot_dimension_numbers<[1], [0], [0], [1], [0, 0, 1, 1], [], []>} : vector<8x128xf32>, vector<128x128xf32>, vector<8x128xf32> -> vector<8x128xf32>
      %341 = arith.addf %340, %2 : vector<8x128xf32>
      %342 = math.tanh %341 : vector<8x128xf32>
      %343 = vector.broadcast %17 : f32 to vector<8x128xf32>
      %344 = arith.mulf %343, %335 : vector<8x128xf32>
      %345 = arith.addf %299, %344 : vector<8x128xf32>
      %c0_146 = arith.constant 0 : index
      %c0_147 = arith.constant 0 : index
      %346 = vector.load %arg2[%c0_146, %c0_147] : memref<128x128xf32, #tpu.memory_space<vmem>>, vector<128x128xf32>
      %cst_148 = arith.constant dense<0.000000e+00> : vector<8x128xf32>
      %347 = tpu.matmul %345, %346, %cst_148 {dimension_numbers = #tpu.dot_dimension_numbers<[1], [0], [0], [1], [0, 0, 1, 1], [], []>} : vector<8x128xf32>, vector<128x128xf32>, vector<8x128xf32> -> vector<8x128xf32>
      %348 = arith.addf %347, %2 : vector<8x128xf32>
      %349 = math.tanh %348 : vector<8x128xf32>
      %cst_149 = arith.constant 2.000000e+00 : f32
      %350 = vector.broadcast %cst_149 : f32 to vector<8x128xf32>
      %351 = arith.mulf %350, %314 : vector<8x128xf32>
      %352 = arith.addf %303, %351 : vector<8x128xf32>
      %cst_150 = arith.constant 2.000000e+00 : f32
      %353 = vector.broadcast %cst_150 : f32 to vector<8x128xf32>
      %354 = arith.mulf %353, %328 : vector<8x128xf32>
      %355 = arith.addf %352, %354 : vector<8x128xf32>
      %356 = arith.addf %355, %342 : vector<8x128xf32>
      %357 = vector.broadcast %19 : f32 to vector<8x128xf32>
      %358 = arith.mulf %357, %356 : vector<8x128xf32>
      %359 = arith.addf %289, %358 : vector<8x128xf32>
      %cst_151 = arith.constant 2.000000e+00 : f32
      %360 = vector.broadcast %cst_151 : f32 to vector<8x128xf32>
      %361 = arith.mulf %360, %321 : vector<8x128xf32>
      %362 = arith.addf %307, %361 : vector<8x128xf32>
      %cst_152 = arith.constant 2.000000e+00 : f32
      %363 = vector.broadcast %cst_152 : f32 to vector<8x128xf32>
      %364 = arith.mulf %363, %335 : vector<8x128xf32>
      %365 = arith.addf %362, %364 : vector<8x128xf32>
      %366 = arith.addf %365, %349 : vector<8x128xf32>
      %367 = vector.broadcast %19 : f32 to vector<8x128xf32>
      %368 = arith.mulf %367, %366 : vector<8x128xf32>
      %369 = arith.addf %299, %368 : vector<8x128xf32>
      %c0_153 = arith.constant 0 : index
      %c0_154 = arith.constant 0 : index
      %370 = vector.load %arg2[%c0_153, %c0_154] : memref<128x128xf32, #tpu.memory_space<vmem>>, vector<128x128xf32>
      %cst_155 = arith.constant dense<0.000000e+00> : vector<8x128xf32>
      %371 = tpu.matmul %359, %370, %cst_155 {dimension_numbers = #tpu.dot_dimension_numbers<[1], [0], [0], [1], [0, 0, 1, 1], [], []>} : vector<8x128xf32>, vector<128x128xf32>, vector<8x128xf32> -> vector<8x128xf32>
      %372 = arith.addf %371, %2 : vector<8x128xf32>
      %373 = math.tanh %372 : vector<8x128xf32>
      %c0_156 = arith.constant 0 : index
      %c0_157 = arith.constant 0 : index
      %374 = vector.load %arg2[%c0_156, %c0_157] : memref<128x128xf32, #tpu.memory_space<vmem>>, vector<128x128xf32>
      %cst_158 = arith.constant dense<0.000000e+00> : vector<8x128xf32>
      %375 = tpu.matmul %369, %374, %cst_158 {dimension_numbers = #tpu.dot_dimension_numbers<[1], [0], [0], [1], [0, 0, 1, 1], [], []>} : vector<8x128xf32>, vector<128x128xf32>, vector<8x128xf32> -> vector<8x128xf32>
      %376 = arith.addf %375, %2 : vector<8x128xf32>
      %377 = math.tanh %376 : vector<8x128xf32>
      %378 = vector.broadcast %18 : f32 to vector<8x128xf32>
      %379 = arith.mulf %378, %373 : vector<8x128xf32>
      %380 = arith.addf %359, %379 : vector<8x128xf32>
      %c0_159 = arith.constant 0 : index
      %c0_160 = arith.constant 0 : index
      %381 = vector.load %arg2[%c0_159, %c0_160] : memref<128x128xf32, #tpu.memory_space<vmem>>, vector<128x128xf32>
      %cst_161 = arith.constant dense<0.000000e+00> : vector<8x128xf32>
      %382 = tpu.matmul %380, %381, %cst_161 {dimension_numbers = #tpu.dot_dimension_numbers<[1], [0], [0], [1], [0, 0, 1, 1], [], []>} : vector<8x128xf32>, vector<128x128xf32>, vector<8x128xf32> -> vector<8x128xf32>
      %383 = arith.addf %382, %2 : vector<8x128xf32>
      %384 = math.tanh %383 : vector<8x128xf32>
      %385 = vector.broadcast %18 : f32 to vector<8x128xf32>
      %386 = arith.mulf %385, %377 : vector<8x128xf32>
      %387 = arith.addf %369, %386 : vector<8x128xf32>
      %c0_162 = arith.constant 0 : index
      %c0_163 = arith.constant 0 : index
      %388 = vector.load %arg2[%c0_162, %c0_163] : memref<128x128xf32, #tpu.memory_space<vmem>>, vector<128x128xf32>
      %cst_164 = arith.constant dense<0.000000e+00> : vector<8x128xf32>
      %389 = tpu.matmul %387, %388, %cst_164 {dimension_numbers = #tpu.dot_dimension_numbers<[1], [0], [0], [1], [0, 0, 1, 1], [], []>} : vector<8x128xf32>, vector<128x128xf32>, vector<8x128xf32> -> vector<8x128xf32>
      %390 = arith.addf %389, %2 : vector<8x128xf32>
      %391 = math.tanh %390 : vector<8x128xf32>
      %392 = vector.broadcast %18 : f32 to vector<8x128xf32>
      %393 = arith.mulf %392, %384 : vector<8x128xf32>
      %394 = arith.addf %359, %393 : vector<8x128xf32>
      %c0_165 = arith.constant 0 : index
      %c0_166 = arith.constant 0 : index
      %395 = vector.load %arg2[%c0_165, %c0_166] : memref<128x128xf32, #tpu.memory_space<vmem>>, vector<128x128xf32>
      %cst_167 = arith.constant dense<0.000000e+00> : vector<8x128xf32>
      %396 = tpu.matmul %394, %395, %cst_167 {dimension_numbers = #tpu.dot_dimension_numbers<[1], [0], [0], [1], [0, 0, 1, 1], [], []>} : vector<8x128xf32>, vector<128x128xf32>, vector<8x128xf32> -> vector<8x128xf32>
      %397 = arith.addf %396, %2 : vector<8x128xf32>
      %398 = math.tanh %397 : vector<8x128xf32>
      %399 = vector.broadcast %18 : f32 to vector<8x128xf32>
      %400 = arith.mulf %399, %391 : vector<8x128xf32>
      %401 = arith.addf %369, %400 : vector<8x128xf32>
      %c0_168 = arith.constant 0 : index
      %c0_169 = arith.constant 0 : index
      %402 = vector.load %arg2[%c0_168, %c0_169] : memref<128x128xf32, #tpu.memory_space<vmem>>, vector<128x128xf32>
      %cst_170 = arith.constant dense<0.000000e+00> : vector<8x128xf32>
      %403 = tpu.matmul %401, %402, %cst_170 {dimension_numbers = #tpu.dot_dimension_numbers<[1], [0], [0], [1], [0, 0, 1, 1], [], []>} : vector<8x128xf32>, vector<128x128xf32>, vector<8x128xf32> -> vector<8x128xf32>
      %404 = arith.addf %403, %2 : vector<8x128xf32>
      %405 = math.tanh %404 : vector<8x128xf32>
      %406 = vector.broadcast %17 : f32 to vector<8x128xf32>
      %407 = arith.mulf %406, %398 : vector<8x128xf32>
      %408 = arith.addf %359, %407 : vector<8x128xf32>
      %c0_171 = arith.constant 0 : index
      %c0_172 = arith.constant 0 : index
      %409 = vector.load %arg2[%c0_171, %c0_172] : memref<128x128xf32, #tpu.memory_space<vmem>>, vector<128x128xf32>
      %cst_173 = arith.constant dense<0.000000e+00> : vector<8x128xf32>
      %410 = tpu.matmul %408, %409, %cst_173 {dimension_numbers = #tpu.dot_dimension_numbers<[1], [0], [0], [1], [0, 0, 1, 1], [], []>} : vector<8x128xf32>, vector<128x128xf32>, vector<8x128xf32> -> vector<8x128xf32>
      %411 = arith.addf %410, %2 : vector<8x128xf32>
      %412 = math.tanh %411 : vector<8x128xf32>
      %413 = vector.broadcast %17 : f32 to vector<8x128xf32>
      %414 = arith.mulf %413, %405 : vector<8x128xf32>
      %415 = arith.addf %369, %414 : vector<8x128xf32>
      %c0_174 = arith.constant 0 : index
      %c0_175 = arith.constant 0 : index
      %416 = vector.load %arg2[%c0_174, %c0_175] : memref<128x128xf32, #tpu.memory_space<vmem>>, vector<128x128xf32>
      %cst_176 = arith.constant dense<0.000000e+00> : vector<8x128xf32>
      %417 = tpu.matmul %415, %416, %cst_176 {dimension_numbers = #tpu.dot_dimension_numbers<[1], [0], [0], [1], [0, 0, 1, 1], [], []>} : vector<8x128xf32>, vector<128x128xf32>, vector<8x128xf32> -> vector<8x128xf32>
      %418 = arith.addf %417, %2 : vector<8x128xf32>
      %419 = math.tanh %418 : vector<8x128xf32>
      %cst_177 = arith.constant 2.000000e+00 : f32
      %420 = vector.broadcast %cst_177 : f32 to vector<8x128xf32>
      %421 = arith.mulf %420, %384 : vector<8x128xf32>
      %422 = arith.addf %373, %421 : vector<8x128xf32>
      %cst_178 = arith.constant 2.000000e+00 : f32
      %423 = vector.broadcast %cst_178 : f32 to vector<8x128xf32>
      %424 = arith.mulf %423, %398 : vector<8x128xf32>
      %425 = arith.addf %422, %424 : vector<8x128xf32>
      %426 = arith.addf %425, %412 : vector<8x128xf32>
      %427 = vector.broadcast %19 : f32 to vector<8x128xf32>
      %428 = arith.mulf %427, %426 : vector<8x128xf32>
      %429 = arith.addf %359, %428 : vector<8x128xf32>
      %cst_179 = arith.constant 2.000000e+00 : f32
      %430 = vector.broadcast %cst_179 : f32 to vector<8x128xf32>
      %431 = arith.mulf %430, %391 : vector<8x128xf32>
      %432 = arith.addf %377, %431 : vector<8x128xf32>
      %cst_180 = arith.constant 2.000000e+00 : f32
      %433 = vector.broadcast %cst_180 : f32 to vector<8x128xf32>
      %434 = arith.mulf %433, %405 : vector<8x128xf32>
      %435 = arith.addf %432, %434 : vector<8x128xf32>
      %436 = arith.addf %435, %419 : vector<8x128xf32>
      %437 = vector.broadcast %19 : f32 to vector<8x128xf32>
      %438 = arith.mulf %437, %436 : vector<8x128xf32>
      %439 = arith.addf %369, %438 : vector<8x128xf32>
      %c0_181 = arith.constant 0 : index
      %c0_182 = arith.constant 0 : index
      %440 = vector.load %arg2[%c0_181, %c0_182] : memref<128x128xf32, #tpu.memory_space<vmem>>, vector<128x128xf32>
      %cst_183 = arith.constant dense<0.000000e+00> : vector<8x128xf32>
      %441 = tpu.matmul %429, %440, %cst_183 {dimension_numbers = #tpu.dot_dimension_numbers<[1], [0], [0], [1], [0, 0, 1, 1], [], []>} : vector<8x128xf32>, vector<128x128xf32>, vector<8x128xf32> -> vector<8x128xf32>
      %442 = arith.addf %441, %2 : vector<8x128xf32>
      %443 = math.tanh %442 : vector<8x128xf32>
      %c0_184 = arith.constant 0 : index
      %c0_185 = arith.constant 0 : index
      %444 = vector.load %arg2[%c0_184, %c0_185] : memref<128x128xf32, #tpu.memory_space<vmem>>, vector<128x128xf32>
      %cst_186 = arith.constant dense<0.000000e+00> : vector<8x128xf32>
      %445 = tpu.matmul %439, %444, %cst_186 {dimension_numbers = #tpu.dot_dimension_numbers<[1], [0], [0], [1], [0, 0, 1, 1], [], []>} : vector<8x128xf32>, vector<128x128xf32>, vector<8x128xf32> -> vector<8x128xf32>
      %446 = arith.addf %445, %2 : vector<8x128xf32>
      %447 = math.tanh %446 : vector<8x128xf32>
      %448 = vector.broadcast %18 : f32 to vector<8x128xf32>
      %449 = arith.mulf %448, %443 : vector<8x128xf32>
      %450 = arith.addf %429, %449 : vector<8x128xf32>
      %c0_187 = arith.constant 0 : index
      %c0_188 = arith.constant 0 : index
      %451 = vector.load %arg2[%c0_187, %c0_188] : memref<128x128xf32, #tpu.memory_space<vmem>>, vector<128x128xf32>
      %cst_189 = arith.constant dense<0.000000e+00> : vector<8x128xf32>
      %452 = tpu.matmul %450, %451, %cst_189 {dimension_numbers = #tpu.dot_dimension_numbers<[1], [0], [0], [1], [0, 0, 1, 1], [], []>} : vector<8x128xf32>, vector<128x128xf32>, vector<8x128xf32> -> vector<8x128xf32>
      %453 = arith.addf %452, %2 : vector<8x128xf32>
      %454 = math.tanh %453 : vector<8x128xf32>
      %455 = vector.broadcast %18 : f32 to vector<8x128xf32>
      %456 = arith.mulf %455, %447 : vector<8x128xf32>
      %457 = arith.addf %439, %456 : vector<8x128xf32>
      %c0_190 = arith.constant 0 : index
      %c0_191 = arith.constant 0 : index
      %458 = vector.load %arg2[%c0_190, %c0_191] : memref<128x128xf32, #tpu.memory_space<vmem>>, vector<128x128xf32>
      %cst_192 = arith.constant dense<0.000000e+00> : vector<8x128xf32>
      %459 = tpu.matmul %457, %458, %cst_192 {dimension_numbers = #tpu.dot_dimension_numbers<[1], [0], [0], [1], [0, 0, 1, 1], [], []>} : vector<8x128xf32>, vector<128x128xf32>, vector<8x128xf32> -> vector<8x128xf32>
      %460 = arith.addf %459, %2 : vector<8x128xf32>
      %461 = math.tanh %460 : vector<8x128xf32>
      %462 = vector.broadcast %18 : f32 to vector<8x128xf32>
      %463 = arith.mulf %462, %454 : vector<8x128xf32>
      %464 = arith.addf %429, %463 : vector<8x128xf32>
      %c0_193 = arith.constant 0 : index
      %c0_194 = arith.constant 0 : index
      %465 = vector.load %arg2[%c0_193, %c0_194] : memref<128x128xf32, #tpu.memory_space<vmem>>, vector<128x128xf32>
      %cst_195 = arith.constant dense<0.000000e+00> : vector<8x128xf32>
      %466 = tpu.matmul %464, %465, %cst_195 {dimension_numbers = #tpu.dot_dimension_numbers<[1], [0], [0], [1], [0, 0, 1, 1], [], []>} : vector<8x128xf32>, vector<128x128xf32>, vector<8x128xf32> -> vector<8x128xf32>
      %467 = arith.addf %466, %2 : vector<8x128xf32>
      %468 = math.tanh %467 : vector<8x128xf32>
      %469 = vector.broadcast %18 : f32 to vector<8x128xf32>
      %470 = arith.mulf %469, %461 : vector<8x128xf32>
      %471 = arith.addf %439, %470 : vector<8x128xf32>
      %c0_196 = arith.constant 0 : index
      %c0_197 = arith.constant 0 : index
      %472 = vector.load %arg2[%c0_196, %c0_197] : memref<128x128xf32, #tpu.memory_space<vmem>>, vector<128x128xf32>
      %cst_198 = arith.constant dense<0.000000e+00> : vector<8x128xf32>
      %473 = tpu.matmul %471, %472, %cst_198 {dimension_numbers = #tpu.dot_dimension_numbers<[1], [0], [0], [1], [0, 0, 1, 1], [], []>} : vector<8x128xf32>, vector<128x128xf32>, vector<8x128xf32> -> vector<8x128xf32>
      %474 = arith.addf %473, %2 : vector<8x128xf32>
      %475 = math.tanh %474 : vector<8x128xf32>
      %476 = vector.broadcast %17 : f32 to vector<8x128xf32>
      %477 = arith.mulf %476, %468 : vector<8x128xf32>
      %478 = arith.addf %429, %477 : vector<8x128xf32>
      %c0_199 = arith.constant 0 : index
      %c0_200 = arith.constant 0 : index
      %479 = vector.load %arg2[%c0_199, %c0_200] : memref<128x128xf32, #tpu.memory_space<vmem>>, vector<128x128xf32>
      %cst_201 = arith.constant dense<0.000000e+00> : vector<8x128xf32>
      %480 = tpu.matmul %478, %479, %cst_201 {dimension_numbers = #tpu.dot_dimension_numbers<[1], [0], [0], [1], [0, 0, 1, 1], [], []>} : vector<8x128xf32>, vector<128x128xf32>, vector<8x128xf32> -> vector<8x128xf32>
      %481 = arith.addf %480, %2 : vector<8x128xf32>
      %482 = math.tanh %481 : vector<8x128xf32>
      %483 = vector.broadcast %17 : f32 to vector<8x128xf32>
      %484 = arith.mulf %483, %475 : vector<8x128xf32>
      %485 = arith.addf %439, %484 : vector<8x128xf32>
      %c0_202 = arith.constant 0 : index
      %c0_203 = arith.constant 0 : index
      %486 = vector.load %arg2[%c0_202, %c0_203] : memref<128x128xf32, #tpu.memory_space<vmem>>, vector<128x128xf32>
      %cst_204 = arith.constant dense<0.000000e+00> : vector<8x128xf32>
      %487 = tpu.matmul %485, %486, %cst_204 {dimension_numbers = #tpu.dot_dimension_numbers<[1], [0], [0], [1], [0, 0, 1, 1], [], []>} : vector<8x128xf32>, vector<128x128xf32>, vector<8x128xf32> -> vector<8x128xf32>
      %488 = arith.addf %487, %2 : vector<8x128xf32>
      %489 = math.tanh %488 : vector<8x128xf32>
      %cst_205 = arith.constant 2.000000e+00 : f32
      %490 = vector.broadcast %cst_205 : f32 to vector<8x128xf32>
      %491 = arith.mulf %490, %454 : vector<8x128xf32>
      %492 = arith.addf %443, %491 : vector<8x128xf32>
      %cst_206 = arith.constant 2.000000e+00 : f32
      %493 = vector.broadcast %cst_206 : f32 to vector<8x128xf32>
      %494 = arith.mulf %493, %468 : vector<8x128xf32>
      %495 = arith.addf %492, %494 : vector<8x128xf32>
      %496 = arith.addf %495, %482 : vector<8x128xf32>
      %497 = vector.broadcast %19 : f32 to vector<8x128xf32>
      %498 = arith.mulf %497, %496 : vector<8x128xf32>
      %499 = arith.addf %429, %498 : vector<8x128xf32>
      %cst_207 = arith.constant 2.000000e+00 : f32
      %500 = vector.broadcast %cst_207 : f32 to vector<8x128xf32>
      %501 = arith.mulf %500, %461 : vector<8x128xf32>
      %502 = arith.addf %447, %501 : vector<8x128xf32>
      %cst_208 = arith.constant 2.000000e+00 : f32
      %503 = vector.broadcast %cst_208 : f32 to vector<8x128xf32>
      %504 = arith.mulf %503, %475 : vector<8x128xf32>
      %505 = arith.addf %502, %504 : vector<8x128xf32>
      %506 = arith.addf %505, %489 : vector<8x128xf32>
      %507 = vector.broadcast %19 : f32 to vector<8x128xf32>
      %508 = arith.mulf %507, %506 : vector<8x128xf32>
      %509 = arith.addf %439, %508 : vector<8x128xf32>
      %c0_209 = arith.constant 0 : index
      %c0_210 = arith.constant 0 : index
      %510 = vector.load %arg2[%c0_209, %c0_210] : memref<128x128xf32, #tpu.memory_space<vmem>>, vector<128x128xf32>
      %cst_211 = arith.constant dense<0.000000e+00> : vector<8x128xf32>
      %511 = tpu.matmul %499, %510, %cst_211 {dimension_numbers = #tpu.dot_dimension_numbers<[1], [0], [0], [1], [0, 0, 1, 1], [], []>} : vector<8x128xf32>, vector<128x128xf32>, vector<8x128xf32> -> vector<8x128xf32>
      %512 = arith.addf %511, %2 : vector<8x128xf32>
      %513 = math.tanh %512 : vector<8x128xf32>
      %c0_212 = arith.constant 0 : index
      %c0_213 = arith.constant 0 : index
      %514 = vector.load %arg2[%c0_212, %c0_213] : memref<128x128xf32, #tpu.memory_space<vmem>>, vector<128x128xf32>
      %cst_214 = arith.constant dense<0.000000e+00> : vector<8x128xf32>
      %515 = tpu.matmul %509, %514, %cst_214 {dimension_numbers = #tpu.dot_dimension_numbers<[1], [0], [0], [1], [0, 0, 1, 1], [], []>} : vector<8x128xf32>, vector<128x128xf32>, vector<8x128xf32> -> vector<8x128xf32>
      %516 = arith.addf %515, %2 : vector<8x128xf32>
      %517 = math.tanh %516 : vector<8x128xf32>
      %518 = vector.broadcast %18 : f32 to vector<8x128xf32>
      %519 = arith.mulf %518, %513 : vector<8x128xf32>
      %520 = arith.addf %499, %519 : vector<8x128xf32>
      %c0_215 = arith.constant 0 : index
      %c0_216 = arith.constant 0 : index
      %521 = vector.load %arg2[%c0_215, %c0_216] : memref<128x128xf32, #tpu.memory_space<vmem>>, vector<128x128xf32>
      %cst_217 = arith.constant dense<0.000000e+00> : vector<8x128xf32>
      %522 = tpu.matmul %520, %521, %cst_217 {dimension_numbers = #tpu.dot_dimension_numbers<[1], [0], [0], [1], [0, 0, 1, 1], [], []>} : vector<8x128xf32>, vector<128x128xf32>, vector<8x128xf32> -> vector<8x128xf32>
      %523 = arith.addf %522, %2 : vector<8x128xf32>
      %524 = math.tanh %523 : vector<8x128xf32>
      %525 = vector.broadcast %18 : f32 to vector<8x128xf32>
      %526 = arith.mulf %525, %517 : vector<8x128xf32>
      %527 = arith.addf %509, %526 : vector<8x128xf32>
      %c0_218 = arith.constant 0 : index
      %c0_219 = arith.constant 0 : index
      %528 = vector.load %arg2[%c0_218, %c0_219] : memref<128x128xf32, #tpu.memory_space<vmem>>, vector<128x128xf32>
      %cst_220 = arith.constant dense<0.000000e+00> : vector<8x128xf32>
      %529 = tpu.matmul %527, %528, %cst_220 {dimension_numbers = #tpu.dot_dimension_numbers<[1], [0], [0], [1], [0, 0, 1, 1], [], []>} : vector<8x128xf32>, vector<128x128xf32>, vector<8x128xf32> -> vector<8x128xf32>
      %530 = arith.addf %529, %2 : vector<8x128xf32>
      %531 = math.tanh %530 : vector<8x128xf32>
      %532 = vector.broadcast %18 : f32 to vector<8x128xf32>
      %533 = arith.mulf %532, %524 : vector<8x128xf32>
      %534 = arith.addf %499, %533 : vector<8x128xf32>
      %c0_221 = arith.constant 0 : index
      %c0_222 = arith.constant 0 : index
      %535 = vector.load %arg2[%c0_221, %c0_222] : memref<128x128xf32, #tpu.memory_space<vmem>>, vector<128x128xf32>
      %cst_223 = arith.constant dense<0.000000e+00> : vector<8x128xf32>
      %536 = tpu.matmul %534, %535, %cst_223 {dimension_numbers = #tpu.dot_dimension_numbers<[1], [0], [0], [1], [0, 0, 1, 1], [], []>} : vector<8x128xf32>, vector<128x128xf32>, vector<8x128xf32> -> vector<8x128xf32>
      %537 = arith.addf %536, %2 : vector<8x128xf32>
      %538 = math.tanh %537 : vector<8x128xf32>
      %539 = vector.broadcast %18 : f32 to vector<8x128xf32>
      %540 = arith.mulf %539, %531 : vector<8x128xf32>
      %541 = arith.addf %509, %540 : vector<8x128xf32>
      %c0_224 = arith.constant 0 : index
      %c0_225 = arith.constant 0 : index
      %542 = vector.load %arg2[%c0_224, %c0_225] : memref<128x128xf32, #tpu.memory_space<vmem>>, vector<128x128xf32>
      %cst_226 = arith.constant dense<0.000000e+00> : vector<8x128xf32>
      %543 = tpu.matmul %541, %542, %cst_226 {dimension_numbers = #tpu.dot_dimension_numbers<[1], [0], [0], [1], [0, 0, 1, 1], [], []>} : vector<8x128xf32>, vector<128x128xf32>, vector<8x128xf32> -> vector<8x128xf32>
      %544 = arith.addf %543, %2 : vector<8x128xf32>
      %545 = math.tanh %544 : vector<8x128xf32>
      %546 = vector.broadcast %17 : f32 to vector<8x128xf32>
      %547 = arith.mulf %546, %538 : vector<8x128xf32>
      %548 = arith.addf %499, %547 : vector<8x128xf32>
      %c0_227 = arith.constant 0 : index
      %c0_228 = arith.constant 0 : index
      %549 = vector.load %arg2[%c0_227, %c0_228] : memref<128x128xf32, #tpu.memory_space<vmem>>, vector<128x128xf32>
      %cst_229 = arith.constant dense<0.000000e+00> : vector<8x128xf32>
      %550 = tpu.matmul %548, %549, %cst_229 {dimension_numbers = #tpu.dot_dimension_numbers<[1], [0], [0], [1], [0, 0, 1, 1], [], []>} : vector<8x128xf32>, vector<128x128xf32>, vector<8x128xf32> -> vector<8x128xf32>
      %551 = arith.addf %550, %2 : vector<8x128xf32>
      %552 = math.tanh %551 : vector<8x128xf32>
      %553 = vector.broadcast %17 : f32 to vector<8x128xf32>
      %554 = arith.mulf %553, %545 : vector<8x128xf32>
      %555 = arith.addf %509, %554 : vector<8x128xf32>
      %c0_230 = arith.constant 0 : index
      %c0_231 = arith.constant 0 : index
      %556 = vector.load %arg2[%c0_230, %c0_231] : memref<128x128xf32, #tpu.memory_space<vmem>>, vector<128x128xf32>
      %cst_232 = arith.constant dense<0.000000e+00> : vector<8x128xf32>
      %557 = tpu.matmul %555, %556, %cst_232 {dimension_numbers = #tpu.dot_dimension_numbers<[1], [0], [0], [1], [0, 0, 1, 1], [], []>} : vector<8x128xf32>, vector<128x128xf32>, vector<8x128xf32> -> vector<8x128xf32>
      %558 = arith.addf %557, %2 : vector<8x128xf32>
      %559 = math.tanh %558 : vector<8x128xf32>
      %cst_233 = arith.constant 2.000000e+00 : f32
      %560 = vector.broadcast %cst_233 : f32 to vector<8x128xf32>
      %561 = arith.mulf %560, %524 : vector<8x128xf32>
      %562 = arith.addf %513, %561 : vector<8x128xf32>
      %cst_234 = arith.constant 2.000000e+00 : f32
      %563 = vector.broadcast %cst_234 : f32 to vector<8x128xf32>
      %564 = arith.mulf %563, %538 : vector<8x128xf32>
      %565 = arith.addf %562, %564 : vector<8x128xf32>
      %566 = arith.addf %565, %552 : vector<8x128xf32>
      %567 = vector.broadcast %19 : f32 to vector<8x128xf32>
      %568 = arith.mulf %567, %566 : vector<8x128xf32>
      %569 = arith.addf %499, %568 : vector<8x128xf32>
      %cst_235 = arith.constant 2.000000e+00 : f32
      %570 = vector.broadcast %cst_235 : f32 to vector<8x128xf32>
      %571 = arith.mulf %570, %531 : vector<8x128xf32>
      %572 = arith.addf %517, %571 : vector<8x128xf32>
      %cst_236 = arith.constant 2.000000e+00 : f32
      %573 = vector.broadcast %cst_236 : f32 to vector<8x128xf32>
      %574 = arith.mulf %573, %545 : vector<8x128xf32>
      %575 = arith.addf %572, %574 : vector<8x128xf32>
      %576 = arith.addf %575, %559 : vector<8x128xf32>
      %577 = vector.broadcast %19 : f32 to vector<8x128xf32>
      %578 = arith.mulf %577, %576 : vector<8x128xf32>
      %579 = arith.addf %509, %578 : vector<8x128xf32>
      %580 = tpu.concatenate %569, %579 in 0 : vector<8x128xf32>, vector<8x128xf32> -> vector<16x128xf32>
      %c1_i32_237 = arith.constant 1 : i32
      %581 = arith.addi %arg5, %c1_i32_237 : i32
      %582 = arith.index_cast %581 : i32 to index
      %c0_238 = arith.constant 0 : index
      %c0_239 = arith.constant 0 : index
      %583 = vector.load %arg4[%582, %c0_238, %c0_239] : memref<8x16x128xf32, #tpu.memory_space<vmem>>, vector<1x16x128xf32>
      %584 = vector.shape_cast %583 : vector<1x16x128xf32> to vector<16x128xf32>
      %585 = vector.shape_cast %580 : vector<16x128xf32> to vector<1x16x128xf32>
      tpu.vector_store %arg4[%582, %c0_238, %c0_239], %585 {strides = array<i32>} : memref<8x16x128xf32, #tpu.memory_space<vmem>>, vector<1x16x128xf32>,
      scf.yield %569, %579 : vector<8x128xf32>, vector<8x128xf32>
    }
    %c7_i32_9 = arith.constant 7 : i32
    return
  }
}

</mosaic_0001>

<llo_original>
// kernel: tpu_custom_call.1
$region0: #{tpu_custom_call.1}
  #allocation0 [shape = 'u32[]', space=smem, size = 0x4, offset = 0x4, fixed_abs, tag = 'smem constant byte address 0x4 - core index']
  #allocation1 [shape = 'u32[144,128]{1,0:T(1,128)}', space=vmem, size = 0x12000, scoped, tag = 'internal scratch']
  %s0 = inlined_call_operand.hbm [shape: f32[8], index: 0, kind: input, shape index: {}]
  %s1 = inlined_call_operand.hbm [shape: f32[16,128], index: 1, kind: input, shape index: {}]
  %s2 = inlined_call_operand.hbm [shape: f32[128,128], index: 2, kind: input, shape index: {}]
  %s3 = inlined_call_operand.vmem [shape: f32[1,128], index: 3, kind: input, shape index: {}]
  %s4 = inlined_call_operand.hbm [shape: f32[8,16,128], index: 4, kind: output, shape index: {}]
  %s5 = sld [smem:[#allocation0]]
  $region45: #{tpu_custom_call.1} parent=0
    _
  %s7 = ssub.s32 1, %s5
  %s8 = scalar_select 0, %s7, %s5
  $region1: #{tpu_custom_call.1} parent=0
    #allocation2 [shape = 'u8[512]{0}', space=smem, size = 0x200, scoped, tag = 'input window, operand 0, single buffered']
    #allocation3 [shape = 's32[1]{0}', space=sflag, size = 0x4, scoped, tag = 'scoped memory for tpu_custom_call.1']
    #allocation4 [shape = 's32[1]{0}', space=sflag, size = 0x4, scoped, tag = 'scoped memory for tpu_custom_call.1']
    #allocation5 [shape = 's32[1]{0}', space=sflag, size = 0x4, scoped, tag = 'scoped memory for tpu_custom_call.1']
    #allocation6 [shape = 'u8[8192]{0}', space=vmem, size = 0x2000, scoped, tag = 'input window, operand 1, single buffered']
    #allocation7 [shape = 'u8[65536]{0}', space=vmem, size = 0x10000, scoped, tag = 'input window, operand 2, single buffered']
    #allocation8 [shape = 's32[1]{0}', space=sflag, size = 0x4, scoped, tag = 'scoped memory for tpu_custom_call.1']
    #allocation9 [shape = 'u8[65536]{0}', space=vmem, size = 0x10000, scoped, tag = 'output window, operand 0, single buffered']
    %9 = vsyncpa [#allocation5], 0
    %10 = vsyncpa [#allocation3], 0
    %11 = vsyncpa [#allocation8], 0
    %12 = vsyncpa [#allocation4], 0
    // Predicated region
    $region2: #{tpu_custom_call.1} parent=1 // pred_check
      _
    $region3: #{tpu_custom_call.1} parent=1 // pred_check_branch
      %14 = sbr.rel (0) target = $region5
    $region4: #{tpu_custom_call.1} parent=1 // pred_region
      %s16 = ssub.s32 16, 16
      %17 = vsyncadd [#allocation5], %s16
      %20 = dma.hbm_to_smem %s0, 16, [#allocation2], [#allocation5]
    $region5: #{tpu_custom_call.1} parent=1 // pred_fallthru
      _
    // Predicated region
    $region6: #{tpu_custom_call.1} parent=1 // pred_check
      _
    $region7: #{tpu_custom_call.1} parent=1 // pred_check_branch
      %22 = sbr.rel (0) target = $region9
    $region8: #{tpu_custom_call.1} parent=1 // pred_region
      %s24 = ssub.s32 256, 256
      %25 = vsyncadd [#allocation3], %s24
      %s26 = sshll.u32 [#allocation6], 4
      %s27 = int_to_ptr.vmem [resolvable:$true] %s26
      %32 = dma.hbm_to_vmem [thread:$0]  %s1, 256, %s27, [#allocation3], 128, 128, 8
    $region9: #{tpu_custom_call.1} parent=1 // pred_fallthru
      _
    // Predicated region
    $region10: #{tpu_custom_call.1} parent=1 // pred_check
      _
    $region11: #{tpu_custom_call.1} parent=1 // pred_check_branch
      %34 = sbr.rel (0) target = $region13
    $region12: #{tpu_custom_call.1} parent=1 // pred_region
      %s36 = ssub.s32 2048, 2048
      %37 = vsyncadd [#allocation8], %s36
      %s38 = sshll.u32 [#allocation7], 4
      %s39 = int_to_ptr.vmem [resolvable:$true] %s38
      %44 = dma.hbm_to_vmem [thread:$0]  %s2, 2048, %s39, [#allocation8], 128, 128, 8
    $region13: #{tpu_custom_call.1} parent=1 // pred_fallthru
      _
    // Predicated region
    $region14: #{tpu_custom_call.1} parent=1 // pred_check
      _
    $region15: #{tpu_custom_call.1} parent=1 // pred_check_branch
      %46 = sbr.rel (0) target = $region17
    $region16: #{tpu_custom_call.1} parent=1 // pred_region
      _
    $region17: #{tpu_custom_call.1} parent=1 // pred_fallthru
      _
    // Predicated region
    $region18: #{tpu_custom_call.1} parent=1 // pred_check
      _
    $region19: #{tpu_custom_call.1} parent=1 // pred_check_branch
      %48 = sbr.rel (0) target = $region21
    $region20: #{tpu_custom_call.1} parent=1 // pred_region
      %49 = dma.done [#allocation5], 16
    $region21: #{tpu_custom_call.1} parent=1 // pred_fallthru
      _
    // Predicated region
    $region22: #{tpu_custom_call.1} parent=1 // pred_check
      _
    $region23: #{tpu_custom_call.1} parent=1 // pred_check_branch
      %51 = sbr.rel (0) target = $region25
    $region24: #{tpu_custom_call.1} parent=1 // pred_region
      %52 = dma.done [#allocation3], 256
    $region25: #{tpu_custom_call.1} parent=1 // pred_fallthru
      _
    // Predicated region
    $region26: #{tpu_custom_call.1} parent=1 // pred_check
      _
    $region27: #{tpu_custom_call.1} parent=1 // pred_check_branch
      %54 = sbr.rel (0) target = $region29
    $region28: #{tpu_custom_call.1} parent=1 // pred_region
      %55 = dma.done [#allocation8], 2048
    $region29: #{tpu_custom_call.1} parent=1 // pred_fallthru
      _
    %56 = sfence
    %v57 = vld [vmem:[%s3] sm:$0x1]
    %v59 = vlaneseq
    %v60 = vshrl.u32 %v59, 7
    %v61 = vsub.s32 0, %v60
    %v62 = vrot.slane %v57, %v61
    %v64 = vld [vmem:[#allocation6] sm:$0xff]
    %v65 = vld [vmem:[#allocation6 + $0x8] sm:$0xff]
    %66 = vst [vmem:[#allocation9] sm:$0xff] %v64
    %67 = vst [vmem:[#allocation9 + $0x8] sm:$0xff] %v65
    %v68 = vld [vmem:[#allocation6] sm:$0xff]
    %v69 = vld [vmem:[#allocation6 + $0x8] sm:$0xff]
    loop: start=0, step=1, limit=7
    $region30: #{tpu_custom_call.1} parent=1 // loop_pre_header
      _
    $region31: #{tpu_custom_call.1} parent=1 // loop_header
      %s71 = sphi 0, %s75
      %p72 = scmp.ge.s32.totalorder %s71, 7
      %v76 = vphi %v68, %v4852
      %v77 = vphi %v69, %v4859
    $region32: #{tpu_custom_call.1} parent=1 // loop_header_branch
      %74 = sbr.rel (%p72) target = $region36
    $region33: #{tpu_custom_call.1} parent=1 // loop_body
      %s78 = sld [smem:[#allocation2 + %s71]]
      %s79 = sadd.s32 %s71, 1
      %s80 = sld [smem:[#allocation2 + %s79]]
      %s81 = ssub.f32 %s80, %s78
      %v82 = vrcp.pop 8.0
      %s83 = vtos %v82
      %s84 = smul.f32 %s81, %s83
      %s85 = smul.f32 %s84, 0.5
      %v86 = vrcp.pop 6.0
      %s87 = vtos %v86
      %s88 = smul.f32 %s84, %s87
      %v89 = vld [vmem:[#allocation7] sm:$0xff]
      %v90 = vld [vmem:[#allocation7 + $0x8] sm:$0xff]
      %v91 = vld [vmem:[#allocation7 + $0x10] sm:$0xff]
      %v92 = vld [vmem:[#allocation7 + $0x18] sm:$0xff]
      %v93 = vld [vmem:[#allocation7 + $0x20] sm:$0xff]
      %v94 = vld [vmem:[#allocation7 + $0x28] sm:$0xff]
      %v95 = vld [vmem:[#allocation7 + $0x30] sm:$0xff]
      %v96 = vld [vmem:[#allocation7 + $0x38] sm:$0xff]
      %v97 = vld [vmem:[#allocation7 + $0x40] sm:$0xff]
      %v98 = vld [vmem:[#allocation7 + $0x48] sm:$0xff]
      %v99 = vld [vmem:[#allocation7 + $0x50] sm:$0xff]
      %v100 = vld [vmem:[#allocation7 + $0x58] sm:$0xff]
      %v101 = vld [vmem:[#allocation7 + $0x60] sm:$0xff]
      %v102 = vld [vmem:[#allocation7 + $0x68] sm:$0xff]
      %v103 = vld [vmem:[#allocation7 + $0x70] sm:$0xff]
      %v104 = vld [vmem:[#allocation7 + $0x78] sm:$0xff]
      %105 = vmatprep.subr.mxu0 0.0
      %106 = vmatpush1.msra.mxu0 %v104
      %107 = vmatprep.subr.mxu0 0.0
      %108 = vmatpush1.msra.mxu0 %v103
      %109 = vmatprep.subr.mxu0 0.0
      %110 = vmatpush1.msra.mxu0 %v102
      %111 = vmatprep.subr.mxu0 0.0
      %112 = vmatpush1.msra.mxu0 %v101
      %113 = vmatprep.subr.mxu0 0.0
      %114 = vmatpush1.msra.mxu0 %v100
      %115 = vmatprep.subr.mxu0 0.0
      %116 = vmatpush1.msra.mxu0 %v99
      %117 = vmatprep.subr.mxu0 0.0
      %118 = vmatpush1.msra.mxu0 %v98
      %119 = vmatprep.subr.mxu0 0.0
      %120 = vmatpush1.msra.mxu0 %v97
      %121 = vmatprep.subr.mxu0 0.0
      %122 = vmatpush1.msra.mxu0 %v96
      %123 = vmatprep.subr.mxu0 0.0
      %124 = vmatpush1.msra.mxu0 %v95
      %125 = vmatprep.subr.mxu0 0.0
      %126 = vmatpush1.msra.mxu0 %v94
      %127 = vmatprep.subr.mxu0 0.0
      %128 = vmatpush1.msra.mxu0 %v93
      %129 = vmatprep.subr.mxu0 0.0
      %130 = vmatpush1.msra.mxu0 %v92
      %131 = vmatprep.subr.mxu0 0.0
      %132 = vmatpush1.msra.mxu0 %v91
      %133 = vmatprep.subr.mxu0 0.0
      %134 = vmatpush1.msra.mxu0 %v90
      %135 = vmatprep.subr.mxu0 0.0
      %136 = vmatpush1.msra.mxu0 %v89
      %137 = vmatprep.subr.mxu0 0.0
      %138 = vmatpush2.msra.mxu0 0.0
      %139 = vmatprep.subr.mxu0 0.0
      %140 = vmatpush2.msra.mxu0 0.0
      %141 = vmatprep.subr.mxu0 0.0
      %142 = vmatpush2.msra.mxu0 0.0
      %143 = vmatprep.subr.mxu0 0.0
      %144 = vmatpush2.msra.mxu0 0.0
      %145 = vmatprep.subr.mxu0 0.0
      %146 = vmatpush2.msra.mxu0 0.0
      %147 = vmatprep.subr.mxu0 0.0
      %148 = vmatpush2.msra.mxu0 0.0
      %149 = vmatprep.subr.mxu0 0.0
      %150 = vmatpush2.msra.mxu0 0.0
      %151 = vmatprep.subr.mxu0 0.0
      %152 = vmatpush2.msra.mxu0 0.0
      %153 = vmatprep.subr.mxu0 0.0
      %154 = vmatpush2.msra.mxu0 0.0
      %155 = vmatprep.subr.mxu0 0.0
      %156 = vmatpush2.msra.mxu0 0.0
      %157 = vmatprep.subr.mxu0 0.0
      %158 = vmatpush2.msra.mxu0 0.0
      %159 = vmatprep.subr.mxu0 0.0
      %160 = vmatpush2.msra.mxu0 0.0
      %161 = vmatprep.subr.mxu0 0.0
      %162 = vmatpush2.msra.mxu0 0.0
      %163 = vmatprep.subr.mxu0 0.0
      %164 = vmatpush2.msra.mxu0 0.0
      %165 = vmatprep.subr.mxu0 0.0
      %166 = vmatpush2.msra.mxu0 0.0
      %167 = vmatprep.subr.mxu0 0.0
      %168 = vmatpush2.msra.mxu0 0.0
      %169 = vmatprep.mubr.f32.mxu0 0.0
      %170 = vmatmul.mubr.f32.gmra.mxu0 %v76
      %v171 = vpop.f32.mrf.mxu0
      %v172 = vadd.f32 %v62, %v171
      %v173 = vpop.f32.mrf.mxu0
      %174 = vdwg.mxu0
      %v175 = vtanh.pop %v172
      %176 = vmatprep.subr.mxu0 0.0
      %177 = vmatpush1.msra.mxu0 %v104
      %178 = vmatprep.subr.mxu0 0.0
      %179 = vmatpush1.msra.mxu0 %v103
      %180 = vmatprep.subr.mxu0 0.0
      %181 = vmatpush1.msra.mxu0 %v102
      %182 = vmatprep.subr.mxu0 0.0
      %183 = vmatpush1.msra.mxu0 %v101
      %184 = vmatprep.subr.mxu0 0.0
      %185 = vmatpush1.msra.mxu0 %v100
      %186 = vmatprep.subr.mxu0 0.0
      %187 = vmatpush1.msra.mxu0 %v99
      %188 = vmatprep.subr.mxu0 0.0
      %189 = vmatpush1.msra.mxu0 %v98
      %190 = vmatprep.subr.mxu0 0.0
      %191 = vmatpush1.msra.mxu0 %v97
      %192 = vmatprep.subr.mxu0 0.0
      %193 = vmatpush1.msra.mxu0 %v96
      %194 = vmatprep.subr.mxu0 0.0
      %195 = vmatpush1.msra.mxu0 %v95
      %196 = vmatprep.subr.mxu0 0.0
      %197 = vmatpush1.msra.mxu0 %v94
      %198 = vmatprep.subr.mxu0 0.0
      %199 = vmatpush1.msra.mxu0 %v93
      %200 = vmatprep.subr.mxu0 0.0
      %201 = vmatpush1.msra.mxu0 %v92
      %202 = vmatprep.subr.mxu0 0.0
      %203 = vmatpush1.msra.mxu0 %v91
      %204 = vmatprep.subr.mxu0 0.0
      %205 = vmatpush1.msra.mxu0 %v90
      %206 = vmatprep.subr.mxu0 0.0
      %207 = vmatpush1.msra.mxu0 %v89
      %208 = vmatprep.subr.mxu0 0.0
      %209 = vmatpush2.msra.mxu0 0.0
      %210 = vmatprep.subr.mxu0 0.0
      %211 = vmatpush2.msra.mxu0 0.0
      %212 = vmatprep.subr.mxu0 0.0
      %213 = vmatpush2.msra.mxu0 0.0
      %214 = vmatprep.subr.mxu0 0.0
      %215 = vmatpush2.msra.mxu0 0.0
      %216 = vmatprep.subr.mxu0 0.0
      %217 = vmatpush2.msra.mxu0 0.0
      %218 = vmatprep.subr.mxu0 0.0
      %219 = vmatpush2.msra.mxu0 0.0
      %220 = vmatprep.subr.mxu0 0.0
      %221 = vmatpush2.msra.mxu0 0.0
      %222 = vmatprep.subr.mxu0 0.0
      %223 = vmatpush2.msra.mxu0 0.0
      %224 = vmatprep.subr.mxu0 0.0
      %225 = vmatpush2.msra.mxu0 0.0
      %226 = vmatprep.subr.mxu0 0.0
      %227 = vmatpush2.msra.mxu0 0.0
      %228 = vmatprep.subr.mxu0 0.0
      %229 = vmatpush2.msra.mxu0 0.0
      %230 = vmatprep.subr.mxu0 0.0
      %231 = vmatpush2.msra.mxu0 0.0
      %232 = vmatprep.subr.mxu0 0.0
      %233 = vmatpush2.msra.mxu0 0.0
      %234 = vmatprep.subr.mxu0 0.0
      %235 = vmatpush2.msra.mxu0 0.0
      %236 = vmatprep.subr.mxu0 0.0
      %237 = vmatpush2.msra.mxu0 0.0
      %238 = vmatprep.subr.mxu0 0.0
      %239 = vmatpush2.msra.mxu0 0.0
      %240 = vmatprep.mubr.f32.mxu0 0.0
      %241 = vmatmul.mubr.f32.gmra.mxu0 %v77
      %v242 = vpop.f32.mrf.mxu0
      %v243 = vadd.f32 %v62, %v242
      %v244 = vpop.f32.mrf.mxu0
      %245 = vdwg.mxu0
      %v246 = vtanh.pop %v243
      %v247 = vstv %s85
      %v248 = vmul.f32 %v247, %v175
      %v249 = vadd.f32 %v76, %v248
      %250 = vmatprep.subr.mxu0 0.0
      %251 = vmatpush1.msra.mxu0 %v104
      %252 = vmatprep.subr.mxu0 0.0
      %253 = vmatpush1.msra.mxu0 %v103
      %254 = vmatprep.subr.mxu0 0.0
      %255 = vmatpush1.msra.mxu0 %v102
      %256 = vmatprep.subr.mxu0 0.0
      %257 = vmatpush1.msra.mxu0 %v101
      %258 = vmatprep.subr.mxu0 0.0
      %259 = vmatpush1.msra.mxu0 %v100
      %260 = vmatprep.subr.mxu0 0.0
      %261 = vmatpush1.msra.mxu0 %v99
      %262 = vmatprep.subr.mxu0 0.0
      %263 = vmatpush1.msra.mxu0 %v98
      %264 = vmatprep.subr.mxu0 0.0
      %265 = vmatpush1.msra.mxu0 %v97
      %266 = vmatprep.subr.mxu0 0.0
      %267 = vmatpush1.msra.mxu0 %v96
      %268 = vmatprep.subr.mxu0 0.0
      %269 = vmatpush1.msra.mxu0 %v95
      %270 = vmatprep.subr.mxu0 0.0
      %271 = vmatpush1.msra.mxu0 %v94
      %272 = vmatprep.subr.mxu0 0.0
      %273 = vmatpush1.msra.mxu0 %v93
      %274 = vmatprep.subr.mxu0 0.0
      %275 = vmatpush1.msra.mxu0 %v92
      %276 = vmatprep.subr.mxu0 0.0
      %277 = vmatpush1.msra.mxu0 %v91
      %278 = vmatprep.subr.mxu0 0.0
      %279 = vmatpush1.msra.mxu0 %v90
      %280 = vmatprep.subr.mxu0 0.0
      %281 = vmatpush1.msra.mxu0 %v89
      %282 = vmatprep.subr.mxu0 0.0
      %283 = vmatpush2.msra.mxu0 0.0
      %284 = vmatprep.subr.mxu0 0.0
      %285 = vmatpush2.msra.mxu0 0.0
      %286 = vmatprep.subr.mxu0 0.0
      %287 = vmatpush2.msra.mxu0 0.0
      %288 = vmatprep.subr.mxu0 0.0
      %289 = vmatpush2.msra.mxu0 0.0
      %290 = vmatprep.subr.mxu0 0.0
      %291 = vmatpush2.msra.mxu0 0.0
      %292 = vmatprep.subr.mxu0 0.0
      %293 = vmatpush2.msra.mxu0 0.0
      %294 = vmatprep.subr.mxu0 0.0
      %295 = vmatpush2.msra.mxu0 0.0
      %296 = vmatprep.subr.mxu0 0.0
      %297 = vmatpush2.msra.mxu0 0.0
      %298 = vmatprep.subr.mxu0 0.0
      %299 = vmatpush2.msra.mxu0 0.0
      %300 = vmatprep.subr.mxu0 0.0
      %301 = vmatpush2.msra.mxu0 0.0
      %302 = vmatprep.subr.mxu0 0.0
      %303 = vmatpush2.msra.mxu0 0.0
      %304 = vmatprep.subr.mxu0 0.0
      %305 = vmatpush2.msra.mxu0 0.0
      %306 = vmatprep.subr.mxu0 0.0
      %307 = vmatpush2.msra.mxu0 0.0
      %308 = vmatprep.subr.mxu0 0.0
      %309 = vmatpush2.msra.mxu0 0.0
      %310 = vmatprep.subr.mxu0 0.0
      %311 = vmatpush2.msra.mxu0 0.0
      %312 = vmatprep.subr.mxu0 0.0
      %313 = vmatpush2.msra.mxu0 0.0
      %314 = vmatprep.mubr.f32.mxu0 0.0
      %315 = vmatmul.mubr.f32.gmra.mxu0 %v249
      %v316 = vpop.f32.mrf.mxu0
      %v317 = vadd.f32 %v62, %v316
      %v318 = vpop.f32.mrf.mxu0
      %319 = vdwg.mxu0
      %v320 = vtanh.pop %v317
      %v321 = vmul.f32 %v247, %v246
      %v322 = vadd.f32 %v77, %v321
      %323 = vmatprep.subr.mxu0 0.0
      %324 = vmatpush1.msra.mxu0 %v104
      %325 = vmatprep.subr.mxu0 0.0
      %326 = vmatpush1.msra.mxu0 %v103
      %327 = vmatprep.subr.mxu0 0.0
      %328 = vmatpush1.msra.mxu0 %v102
      %329 = vmatprep.subr.mxu0 0.0
      %330 = vmatpush1.msra.mxu0 %v101
      %331 = vmatprep.subr.mxu0 0.0
      %332 = vmatpush1.msra.mxu0 %v100
      %333 = vmatprep.subr.mxu0 0.0
      %334 = vmatpush1.msra.mxu0 %v99
      %335 = vmatprep.subr.mxu0 0.0
      %336 = vmatpush1.msra.mxu0 %v98
      %337 = vmatprep.subr.mxu0 0.0
      %338 = vmatpush1.msra.mxu0 %v97
      %339 = vmatprep.subr.mxu0 0.0
      %340 = vmatpush1.msra.mxu0 %v96
      %341 = vmatprep.subr.mxu0 0.0
      %342 = vmatpush1.msra.mxu0 %v95
      %343 = vmatprep.subr.mxu0 0.0
      %344 = vmatpush1.msra.mxu0 %v94
      %345 = vmatprep.subr.mxu0 0.0
      %346 = vmatpush1.msra.mxu0 %v93
      %347 = vmatprep.subr.mxu0 0.0
      %348 = vmatpush1.msra.mxu0 %v92
      %349 = vmatprep.subr.mxu0 0.0
      %350 = vmatpush1.msra.mxu0 %v91
      %351 = vmatprep.subr.mxu0 0.0
      %352 = vmatpush1.msra.mxu0 %v90
      %353 = vmatprep.subr.mxu0 0.0
      %354 = vmatpush1.msra.mxu0 %v89
      %355 = vmatprep.subr.mxu0 0.0
      %356 = vmatpush2.msra.mxu0 0.0
      %357 = vmatprep.subr.mxu0 0.0
      %358 = vmatpush2.msra.mxu0 0.0
      %359 = vmatprep.subr.mxu0 0.0
      %360 = vmatpush2.msra.mxu0 0.0
      %361 = vmatprep.subr.mxu0 0.0
      %362 = vmatpush2.msra.mxu0 0.0
      %363 = vmatprep.subr.mxu0 0.0
      %364 = vmatpush2.msra.mxu0 0.0
      %365 = vmatprep.subr.mxu0 0.0
      %366 = vmatpush2.msra.mxu0 0.0
      %367 = vmatprep.subr.mxu0 0.0
      %368 = vmatpush2.msra.mxu0 0.0
      %369 = vmatprep.subr.mxu0 0.0
      %370 = vmatpush2.msra.mxu0 0.0
      %371 = vmatprep.subr.mxu0 0.0
      %372 = vmatpush2.msra.mxu0 0.0
      %373 = vmatprep.subr.mxu0 0.0
      %374 = vmatpush2.msra.mxu0 0.0
      %375 = vmatprep.subr.mxu0 0.0
      %376 = vmatpush2.msra.mxu0 0.0
      %377 = vmatprep.subr.mxu0 0.0
      %378 = vmatpush2.msra.mxu0 0.0
      %379 = vmatprep.subr.mxu0 0.0
      %380 = vmatpush2.msra.mxu0 0.0
      %381 = vmatprep.subr.mxu0 0.0
      %382 = vmatpush2.msra.mxu0 0.0
      %383 = vmatprep.subr.mxu0 0.0
      %384 = vmatpush2.msra.mxu0 0.0
      %385 = vmatprep.subr.mxu0 0.0
      %386 = vmatpush2.msra.mxu0 0.0
      %387 = vmatprep.mubr.f32.mxu0 0.0
      %388 = vmatmul.mubr.f32.gmra.mxu0 %v322
      %v389 = vpop.f32.mrf.mxu0
      %v390 = vadd.f32 %v62, %v389
      %v391 = vpop.f32.mrf.mxu0
      %392 = vdwg.mxu0
      %v393 = vtanh.pop %v390
      %v394 = vmul.f32 %v247, %v320
      %v395 = vadd.f32 %v76, %v394
      %396 = vmatprep.subr.mxu0 0.0
      %397 = vmatpush1.msra.mxu0 %v104
      %398 = vmatprep.subr.mxu0 0.0
      %399 = vmatpush1.msra.mxu0 %v103
      %400 = vmatprep.subr.mxu0 0.0
      %401 = vmatpush1.msra.mxu0 %v102
      %402 = vmatprep.subr.mxu0 0.0
      %403 = vmatpush1.msra.mxu0 %v101
      %404 = vmatprep.subr.mxu0 0.0
      %405 = vmatpush1.msra.mxu0 %v100
      %406 = vmatprep.subr.mxu0 0.0
      %407 = vmatpush1.msra.mxu0 %v99
      %408 = vmatprep.subr.mxu0 0.0
      %409 = vmatpush1.msra.mxu0 %v98
      %410 = vmatprep.subr.mxu0 0.0
      %411 = vmatpush1.msra.mxu0 %v97
      %412 = vmatprep.subr.mxu0 0.0
      %413 = vmatpush1.msra.mxu0 %v96
      %414 = vmatprep.subr.mxu0 0.0
      %415 = vmatpush1.msra.mxu0 %v95
      %416 = vmatprep.subr.mxu0 0.0
      %417 = vmatpush1.msra.mxu0 %v94
      %418 = vmatprep.subr.mxu0 0.0
      %419 = vmatpush1.msra.mxu0 %v93
      %420 = vmatprep.subr.mxu0 0.0
      %421 = vmatpush1.msra.mxu0 %v92
      %422 = vmatprep.subr.mxu0 0.0
      %423 = vmatpush1.msra.mxu0 %v91
      %424 = vmatprep.subr.mxu0 0.0
      %425 = vmatpush1.msra.mxu0 %v90
      %426 = vmatprep.subr.mxu0 0.0
      %427 = vmatpush1.msra.mxu0 %v89
      %428 = vmatprep.subr.mxu0 0.0
      %429 = vmatpush2.msra.mxu0 0.0
      %430 = vmatprep.subr.mxu0 0.0
      %431 = vmatpush2.msra.mxu0 0.0
      %432 = vmatprep.subr.mxu0 0.0
      %433 = vmatpush2.msra.mxu0 0.0
      %434 = vmatprep.subr.mxu0 0.0
      %435 = vmatpush2.msra.mxu0 0.0
      %436 = vmatprep.subr.mxu0 0.0
      %437 = vmatpush2.msra.mxu0 0.0
      %438 = vmatprep.subr.mxu0 0.0
      %439 = vmatpush2.msra.mxu0 0.0
      %440 = vmatprep.subr.mxu0 0.0
      %441 = vmatpush2.msra.mxu0 0.0
      %442 = vmatprep.subr.mxu0 0.0
      %443 = vmatpush2.msra.mxu0 0.0
      %444 = vmatprep.subr.mxu0 0.0
      %445 = vmatpush2.msra.mxu0 0.0
      %446 = vmatprep.subr.mxu0 0.0
      %447 = vmatpush2.msra.mxu0 0.0
      %448 = vmatprep.subr.mxu0 0.0
      %449 = vmatpush2.msra.mxu0 0.0
      %450 = vmatprep.subr.mxu0 0.0
      %451 = vmatpush2.msra.mxu0 0.0
      %452 = vmatprep.subr.mxu0 0.0
      %453 = vmatpush2.msra.mxu0 0.0
      %454 = vmatprep.subr.mxu0 0.0
      %455 = vmatpush2.msra.mxu0 0.0
      %456 = vmatprep.subr.mxu0 0.0
      %457 = vmatpush2.msra.mxu0 0.0
      %458 = vmatprep.subr.mxu0 0.0
      %459 = vmatpush2.msra.mxu0 0.0
      %460 = vmatprep.mubr.f32.mxu0 0.0
      %461 = vmatmul.mubr.f32.gmra.mxu0 %v395
      %v462 = vpop.f32.mrf.mxu0
      %v463 = vadd.f32 %v62, %v462
      %v464 = vpop.f32.mrf.mxu0
      %465 = vdwg.mxu0
      %v466 = vtanh.pop %v463
      %v467 = vmul.f32 %v247, %v393
      %v468 = vadd.f32 %v77, %v467
      %469 = vmatprep.subr.mxu0 0.0
      %470 = vmatpush1.msra.mxu0 %v104
      %471 = vmatprep.subr.mxu0 0.0
      %472 = vmatpush1.msra.mxu0 %v103
      %473 = vmatprep.subr.mxu0 0.0
      %474 = vmatpush1.msra.mxu0 %v102
      %475 = vmatprep.subr.mxu0 0.0
      %476 = vmatpush1.msra.mxu0 %v101
      %477 = vmatprep.subr.mxu0 0.0
      %478 = vmatpush1.msra.mxu0 %v100
      %479 = vmatprep.subr.mxu0 0.0
      %480 = vmatpush1.msra.mxu0 %v99
      %481 = vmatprep.subr.mxu0 0.0
      %482 = vmatpush1.msra.mxu0 %v98
      %483 = vmatprep.subr.mxu0 0.0
      %484 = vmatpush1.msra.mxu0 %v97
      %485 = vmatprep.subr.mxu0 0.0
      %486 = vmatpush1.msra.mxu0 %v96
      %487 = vmatprep.subr.mxu0 0.0
      %488 = vmatpush1.msra.mxu0 %v95
      %489 = vmatprep.subr.mxu0 0.0
      %490 = vmatpush1.msra.mxu0 %v94
      %491 = vmatprep.subr.mxu0 0.0
      %492 = vmatpush1.msra.mxu0 %v93
      %493 = vmatprep.subr.mxu0 0.0
      %494 = vmatpush1.msra.mxu0 %v92
      %495 = vmatprep.subr.mxu0 0.0
      %496 = vmatpush1.msra.mxu0 %v91
      %497 = vmatprep.subr.mxu0 0.0
      %498 = vmatpush1.msra.mxu0 %v90
      %499 = vmatprep.subr.mxu0 0.0
      %500 = vmatpush1.msra.mxu0 %v89
      %501 = vmatprep.subr.mxu0 0.0
      %502 = vmatpush2.msra.mxu0 0.0
      %503 = vmatprep.subr.mxu0 0.0
      %504 = vmatpush2.msra.mxu0 0.0
      %505 = vmatprep.subr.mxu0 0.0
      %506 = vmatpush2.msra.mxu0 0.0
      %507 = vmatprep.subr.mxu0 0.0
      %508 = vmatpush2.msra.mxu0 0.0
      %509 = vmatprep.subr.mxu0 0.0
      %510 = vmatpush2.msra.mxu0 0.0
      %511 = vmatprep.subr.mxu0 0.0
      %512 = vmatpush2.msra.mxu0 0.0
      %513 = vmatprep.subr.mxu0 0.0
      %514 = vmatpush2.msra.mxu0 0.0
      %515 = vmatprep.subr.mxu0 0.0
      %516 = vmatpush2.msra.mxu0 0.0
      %517 = vmatprep.subr.mxu0 0.0
      %518 = vmatpush2.msra.mxu0 0.0
      %519 = vmatprep.subr.mxu0 0.0
      %520 = vmatpush2.msra.mxu0 0.0
      %521 = vmatprep.subr.mxu0 0.0
      %522 = vmatpush2.msra.mxu0 0.0
      %523 = vmatprep.subr.mxu0 0.0
      %524 = vmatpush2.msra.mxu0 0.0
      %525 = vmatprep.subr.mxu0 0.0
      %526 = vmatpush2.msra.mxu0 0.0
      %527 = vmatprep.subr.mxu0 0.0
      %528 = vmatpush2.msra.mxu0 0.0
      %529 = vmatprep.subr.mxu0 0.0
      %530 = vmatpush2.msra.mxu0 0.0
      %531 = vmatprep.subr.mxu0 0.0
      %532 = vmatpush2.msra.mxu0 0.0
      %533 = vmatprep.mubr.f32.mxu0 0.0
      %534 = vmatmul.mubr.f32.gmra.mxu0 %v468
      %v535 = vpop.f32.mrf.mxu0
      %v536 = vadd.f32 %v62, %v535
      %v537 = vpop.f32.mrf.mxu0
      %538 = vdwg.mxu0
      %v539 = vtanh.pop %v536
      %v540 = vstv %s84
      %v541 = vmul.f32 %v540, %v466
      %v542 = vadd.f32 %v76, %v541
      %543 = vmatprep.subr.mxu0 0.0
      %544 = vmatpush1.msra.mxu0 %v104
      %545 = vmatprep.subr.mxu0 0.0
      %546 = vmatpush1.msra.mxu0 %v103
      %547 = vmatprep.subr.mxu0 0.0
      %548 = vmatpush1.msra.mxu0 %v102
      %549 = vmatprep.subr.mxu0 0.0
      %550 = vmatpush1.msra.mxu0 %v101
      %551 = vmatprep.subr.mxu0 0.0
      %552 = vmatpush1.msra.mxu0 %v100
      %553 = vmatprep.subr.mxu0 0.0
      %554 = vmatpush1.msra.mxu0 %v99
      %555 = vmatprep.subr.mxu0 0.0
      %556 = vmatpush1.msra.mxu0 %v98
      %557 = vmatprep.subr.mxu0 0.0
      %558 = vmatpush1.msra.mxu0 %v97
      %559 = vmatprep.subr.mxu0 0.0
      %560 = vmatpush1.msra.mxu0 %v96
      %561 = vmatprep.subr.mxu0 0.0
      %562 = vmatpush1.msra.mxu0 %v95
      %563 = vmatprep.subr.mxu0 0.0
      %564 = vmatpush1.msra.mxu0 %v94
      %565 = vmatprep.subr.mxu0 0.0
      %566 = vmatpush1.msra.mxu0 %v93
      %567 = vmatprep.subr.mxu0 0.0
      %568 = vmatpush1.msra.mxu0 %v92
      %569 = vmatprep.subr.mxu0 0.0
      %570 = vmatpush1.msra.mxu0 %v91
      %571 = vmatprep.subr.mxu0 0.0
      %572 = vmatpush1.msra.mxu0 %v90
      %573 = vmatprep.subr.mxu0 0.0
      %574 = vmatpush1.msra.mxu0 %v89
      %575 = vmatprep.subr.mxu0 0.0
      %576 = vmatpush2.msra.mxu0 0.0
      %577 = vmatprep.subr.mxu0 0.0
      %578 = vmatpush2.msra.mxu0 0.0
      %579 = vmatprep.subr.mxu0 0.0
      %580 = vmatpush2.msra.mxu0 0.0
      %581 = vmatprep.subr.mxu0 0.0
      %582 = vmatpush2.msra.mxu0 0.0
      %583 = vmatprep.subr.mxu0 0.0
      %584 = vmatpush2.msra.mxu0 0.0
      %585 = vmatprep.subr.mxu0 0.0
      %586 = vmatpush2.msra.mxu0 0.0
      %587 = vmatprep.subr.mxu0 0.0
      %588 = vmatpush2.msra.mxu0 0.0
      %589 = vmatprep.subr.mxu0 0.0
      %590 = vmatpush2.msra.mxu0 0.0
      %591 = vmatprep.subr.mxu0 0.0
      %592 = vmatpush2.msra.mxu0 0.0
      %593 = vmatprep.subr.mxu0 0.0
      %594 = vmatpush2.msra.mxu0 0.0
      %595 = vmatprep.subr.mxu0 0.0
      %596 = vmatpush2.msra.mxu0 0.0
      %597 = vmatprep.subr.mxu0 0.0
      %598 = vmatpush2.msra.mxu0 0.0
      %599 = vmatprep.subr.mxu0 0.0
      %600 = vmatpush2.msra.mxu0 0.0
      %601 = vmatprep.subr.mxu0 0.0
      %602 = vmatpush2.msra.mxu0 0.0
      %603 = vmatprep.subr.mxu0 0.0
      %604 = vmatpush2.msra.mxu0 0.0
      %605 = vmatprep.subr.mxu0 0.0
      %606 = vmatpush2.msra.mxu0 0.0
      %607 = vmatprep.mubr.f32.mxu0 0.0
      %608 = vmatmul.mubr.f32.gmra.mxu0 %v542
      %v609 = vpop.f32.mrf.mxu0
      %v610 = vadd.f32 %v62, %v609
      %v611 = vpop.f32.mrf.mxu0
      %612 = vdwg.mxu0
      %v613 = vtanh.pop %v610
      %v614 = vmul.f32 %v540, %v539
      %v615 = vadd.f32 %v77, %v614
      %616 = vmatprep.subr.mxu0 0.0
      %617 = vmatpush1.msra.mxu0 %v104
      %618 = vmatprep.subr.mxu0 0.0
      %619 = vmatpush1.msra.mxu0 %v103
      %620 = vmatprep.subr.mxu0 0.0
      %621 = vmatpush1.msra.mxu0 %v102
      %622 = vmatprep.subr.mxu0 0.0
      %623 = vmatpush1.msra.mxu0 %v101
      %624 = vmatprep.subr.mxu0 0.0
      %625 = vmatpush1.msra.mxu0 %v100
      %626 = vmatprep.subr.mxu0 0.0
      %627 = vmatpush1.msra.mxu0 %v99
      %628 = vmatprep.subr.mxu0 0.0
      %629 = vmatpush1.msra.mxu0 %v98
      %630 = vmatprep.subr.mxu0 0.0
      %631 = vmatpush1.msra.mxu0 %v97
      %632 = vmatprep.subr.mxu0 0.0
      %633 = vmatpush1.msra.mxu0 %v96
      %634 = vmatprep.subr.mxu0 0.0
      %635 = vmatpush1.msra.mxu0 %v95
      %636 = vmatprep.subr.mxu0 0.0
      %637 = vmatpush1.msra.mxu0 %v94
      %638 = vmatprep.subr.mxu0 0.0
      %639 = vmatpush1.msra.mxu0 %v93
      %640 = vmatprep.subr.mxu0 0.0
      %641 = vmatpush1.msra.mxu0 %v92
      %642 = vmatprep.subr.mxu0 0.0
      %643 = vmatpush1.msra.mxu0 %v91
      %644 = vmatprep.subr.mxu0 0.0
      %645 = vmatpush1.msra.mxu0 %v90
      %646 = vmatprep.subr.mxu0 0.0
      %647 = vmatpush1.msra.mxu0 %v89
      %648 = vmatprep.subr.mxu0 0.0
      %649 = vmatpush2.msra.mxu0 0.0
      %650 = vmatprep.subr.mxu0 0.0
      %651 = vmatpush2.msra.mxu0 0.0
      %652 = vmatprep.subr.mxu0 0.0
      %653 = vmatpush2.msra.mxu0 0.0
      %654 = vmatprep.subr.mxu0 0.0
      %655 = vmatpush2.msra.mxu0 0.0
      %656 = vmatprep.subr.mxu0 0.0
      %657 = vmatpush2.msra.mxu0 0.0
      %658 = vmatprep.subr.mxu0 0.0
      %659 = vmatpush2.msra.mxu0 0.0
      %660 = vmatprep.subr.mxu0 0.0
      %661 = vmatpush2.msra.mxu0 0.0
      %662 = vmatprep.subr.mxu0 0.0
      %663 = vmatpush2.msra.mxu0 0.0
      %664 = vmatprep.subr.mxu0 0.0
      %665 = vmatpush2.msra.mxu0 0.0
      %666 = vmatprep.subr.mxu0 0.0
      %667 = vmatpush2.msra.mxu0 0.0
      %668 = vmatprep.subr.mxu0 0.0
      %669 = vmatpush2.msra.mxu0 0.0
      %670 = vmatprep.subr.mxu0 0.0
      %671 = vmatpush2.msra.mxu0 0.0
      %672 = vmatprep.subr.mxu0 0.0
      %673 = vmatpush2.msra.mxu0 0.0
      %674 = vmatprep.subr.mxu0 0.0
      %675 = vmatpush2.msra.mxu0 0.0
      %676 = vmatprep.subr.mxu0 0.0
      %677 = vmatpush2.msra.mxu0 0.0
      %678 = vmatprep.subr.mxu0 0.0
      %679 = vmatpush2.msra.mxu0 0.0
      %680 = vmatprep.mubr.f32.mxu0 0.0
      %681 = vmatmul.mubr.f32.gmra.mxu0 %v615
      %v682 = vpop.f32.mrf.mxu0
      %v683 = vadd.f32 %v62, %v682
      %v684 = vpop.f32.mrf.mxu0
      %685 = vdwg.mxu0
      %v686 = vtanh.pop %v683
      %v687 = vmul.f32 %v320, 2.0
      %v688 = vadd.f32 %v175, %v687
      %v689 = vmul.f32 %v466, 2.0
      %v690 = vadd.f32 %v688, %v689
      %v691 = vadd.f32 %v690, %v613
      %v692 = vstv %s88
      %v693 = vmul.f32 %v692, %v691
      %v694 = vadd.f32 %v76, %v693
      %v695 = vmul.f32 %v393, 2.0
      %v696 = vadd.f32 %v246, %v695
      %v697 = vmul.f32 %v539, 2.0
      %v698 = vadd.f32 %v696, %v697
      %v699 = vadd.f32 %v698, %v686
      %v700 = vmul.f32 %v692, %v699
      %v701 = vadd.f32 %v77, %v700
      %702 = vmatprep.subr.mxu0 0.0
      %703 = vmatpush1.msra.mxu0 %v104
      %704 = vmatprep.subr.mxu0 0.0
      %705 = vmatpush1.msra.mxu0 %v103
      %706 = vmatprep.subr.mxu0 0.0
      %707 = vmatpush1.msra.mxu0 %v102
      %708 = vmatprep.subr.mxu0 0.0
      %709 = vmatpush1.msra.mxu0 %v101
      %710 = vmatprep.subr.mxu0 0.0
      %711 = vmatpush1.msra.mxu0 %v100
      %712 = vmatprep.subr.mxu0 0.0
      %713 = vmatpush1.msra.mxu0 %v99
      %714 = vmatprep.subr.mxu0 0.0
      %715 = vmatpush1.msra.mxu0 %v98
      %716 = vmatprep.subr.mxu0 0.0
      %717 = vmatpush1.msra.mxu0 %v97
      %718 = vmatprep.subr.mxu0 0.0
      %719 = vmatpush1.msra.mxu0 %v96
      %720 = vmatprep.subr.mxu0 0.0
      %721 = vmatpush1.msra.mxu0 %v95
      %722 = vmatprep.subr.mxu0 0.0
      %723 = vmatpush1.msra.mxu0 %v94
      %724 = vmatprep.subr.mxu0 0.0
      %725 = vmatpush1.msra.mxu0 %v93
      %726 = vmatprep.subr.mxu0 0.0
      %727 = vmatpush1.msra.mxu0 %v92
      %728 = vmatprep.subr.mxu0 0.0
      %729 = vmatpush1.msra.mxu0 %v91
      %730 = vmatprep.subr.mxu0 0.0
      %731 = vmatpush1.msra.mxu0 %v90
      %732 = vmatprep.subr.mxu0 0.0
      %733 = vmatpush1.msra.mxu0 %v89
      %734 = vmatprep.subr.mxu0 0.0
      %735 = vmatpush2.msra.mxu0 0.0
      %736 = vmatprep.subr.mxu0 0.0
      %737 = vmatpush2.msra.mxu0 0.0
      %738 = vmatprep.subr.mxu0 0.0
      %739 = vmatpush2.msra.mxu0 0.0
      %740 = vmatprep.subr.mxu0 0.0
      %741 = vmatpush2.msra.mxu0 0.0
      %742 = vmatprep.subr.mxu0 0.0
      %743 = vmatpush2.msra.mxu0 0.0
      %744 = vmatprep.subr.mxu0 0.0
      %745 = vmatpush2.msra.mxu0 0.0
      %746 = vmatprep.subr.mxu0 0.0
      %747 = vmatpush2.msra.mxu0 0.0
      %748 = vmatprep.subr.mxu0 0.0
      %749 = vmatpush2.msra.mxu0 0.0
      %750 = vmatprep.subr.mxu0 0.0
      %751 = vmatpush2.msra.mxu0 0.0
      %752 = vmatprep.subr.mxu0 0.0
      %753 = vmatpush2.msra.mxu0 0.0
      %754 = vmatprep.subr.mxu0 0.0
      %755 = vmatpush2.msra.mxu0 0.0
      %756 = vmatprep.subr.mxu0 0.0
      %757 = vmatpush2.msra.mxu0 0.0
      %758 = vmatprep.subr.mxu0 0.0
      %759 = vmatpush2.msra.mxu0 0.0
      %760 = vmatprep.subr.mxu0 0.0
      %761 = vmatpush2.msra.mxu0 0.0
      %762 = vmatprep.subr.mxu0 0.0
      %763 = vmatpush2.msra.mxu0 0.0
      %764 = vmatprep.subr.mxu0 0.0
      %765 = vmatpush2.msra.mxu0 0.0
      %766 = vmatprep.mubr.f32.mxu0 0.0
      %767 = vmatmul.mubr.f32.gmra.mxu0 %v694
      %v768 = vpop.f32.mrf.mxu0
      %v769 = vadd.f32 %v62, %v768
      %v770 = vpop.f32.mrf.mxu0
      %771 = vdwg.mxu0
      %v772 = vtanh.pop %v769
      %773 = vmatprep.subr.mxu0 0.0
      %774 = vmatpush1.msra.mxu0 %v104
      %775 = vmatprep.subr.mxu0 0.0
      %776 = vmatpush1.msra.mxu0 %v103
      %777 = vmatprep.subr.mxu0 0.0
      %778 = vmatpush1.msra.mxu0 %v102
      %779 = vmatprep.subr.mxu0 0.0
      %780 = vmatpush1.msra.mxu0 %v101
      %781 = vmatprep.subr.mxu0 0.0
      %782 = vmatpush1.msra.mxu0 %v100
      %783 = vmatprep.subr.mxu0 0.0
      %784 = vmatpush1.msra.mxu0 %v99
      %785 = vmatprep.subr.mxu0 0.0
      %786 = vmatpush1.msra.mxu0 %v98
      %787 = vmatprep.subr.mxu0 0.0
      %788 = vmatpush1.msra.mxu0 %v97
      %789 = vmatprep.subr.mxu0 0.0
      %790 = vmatpush1.msra.mxu0 %v96
      %791 = vmatprep.subr.mxu0 0.0
      %792 = vmatpush1.msra.mxu0 %v95
      %793 = vmatprep.subr.mxu0 0.0
      %794 = vmatpush1.msra.mxu0 %v94
      %795 = vmatprep.subr.mxu0 0.0
      %796 = vmatpush1.msra.mxu0 %v93
      %797 = vmatprep.subr.mxu0 0.0
      %798 = vmatpush1.msra.mxu0 %v92
      %799 = vmatprep.subr.mxu0 0.0
      %800 = vmatpush1.msra.mxu0 %v91
      %801 = vmatprep.subr.mxu0 0.0
      %802 = vmatpush1.msra.mxu0 %v90
      %803 = vmatprep.subr.mxu0 0.0
      %804 = vmatpush1.msra.mxu0 %v89
      %805 = vmatprep.subr.mxu0 0.0
      %806 = vmatpush2.msra.mxu0 0.0
      %807 = vmatprep.subr.mxu0 0.0
      %808 = vmatpush2.msra.mxu0 0.0
      %809 = vmatprep.subr.mxu0 0.0
      %810 = vmatpush2.msra.mxu0 0.0
      %811 = vmatprep.subr.mxu0 0.0
      %812 = vmatpush2.msra.mxu0 0.0
      %813 = vmatprep.subr.mxu0 0.0
      %814 = vmatpush2.msra.mxu0 0.0
      %815 = vmatprep.subr.mxu0 0.0
      %816 = vmatpush2.msra.mxu0 0.0
      %817 = vmatprep.subr.mxu0 0.0
      %818 = vmatpush2.msra.mxu0 0.0
      %819 = vmatprep.subr.mxu0 0.0
      %820 = vmatpush2.msra.mxu0 0.0
      %821 = vmatprep.subr.mxu0 0.0
      %822 = vmatpush2.msra.mxu0 0.0
      %823 = vmatprep.subr.mxu0 0.0
      %824 = vmatpush2.msra.mxu0 0.0
      %825 = vmatprep.subr.mxu0 0.0
      %826 = vmatpush2.msra.mxu0 0.0
      %827 = vmatprep.subr.mxu0 0.0
      %828 = vmatpush2.msra.mxu0 0.0
      %829 = vmatprep.subr.mxu0 0.0
      %830 = vmatpush2.msra.mxu0 0.0
      %831 = vmatprep.subr.mxu0 0.0
      %832 = vmatpush2.msra.mxu0 0.0
      %833 = vmatprep.subr.mxu0 0.0
      %834 = vmatpush2.msra.mxu0 0.0
      %835 = vmatprep.subr.mxu0 0.0
      %836 = vmatpush2.msra.mxu0 0.0
      %837 = vmatprep.mubr.f32.mxu0 0.0
      %838 = vmatmul.mubr.f32.gmra.mxu0 %v701
      %v839 = vpop.f32.mrf.mxu0
      %v840 = vadd.f32 %v62, %v839
      %v841 = vpop.f32.mrf.mxu0
      %842 = vdwg.mxu0
      %v843 = vtanh.pop %v840
      %v844 = vmul.f32 %v247, %v772
      %v845 = vadd.f32 %v694, %v844
      %846 = vmatprep.subr.mxu0 0.0
      %847 = vmatpush1.msra.mxu0 %v104
      %848 = vmatprep.subr.mxu0 0.0
      %849 = vmatpush1.msra.mxu0 %v103
      %850 = vmatprep.subr.mxu0 0.0
      %851 = vmatpush1.msra.mxu0 %v102
      %852 = vmatprep.subr.mxu0 0.0
      %853 = vmatpush1.msra.mxu0 %v101
      %854 = vmatprep.subr.mxu0 0.0
      %855 = vmatpush1.msra.mxu0 %v100
      %856 = vmatprep.subr.mxu0 0.0
      %857 = vmatpush1.msra.mxu0 %v99
      %858 = vmatprep.subr.mxu0 0.0
      %859 = vmatpush1.msra.mxu0 %v98
      %860 = vmatprep.subr.mxu0 0.0
      %861 = vmatpush1.msra.mxu0 %v97
      %862 = vmatprep.subr.mxu0 0.0
      %863 = vmatpush1.msra.mxu0 %v96
      %864 = vmatprep.subr.mxu0 0.0
      %865 = vmatpush1.msra.mxu0 %v95
      %866 = vmatprep.subr.mxu0 0.0
      %867 = vmatpush1.msra.mxu0 %v94
      %868 = vmatprep.subr.mxu0 0.0
      %869 = vmatpush1.msra.mxu0 %v93
      %870 = vmatprep.subr.mxu0 0.0
      %871 = vmatpush1.msra.mxu0 %v92
      %872 = vmatprep.subr.mxu0 0.0
      %873 = vmatpush1.msra.mxu0 %v91
      %874 = vmatprep.subr.mxu0 0.0
      %875 = vmatpush1.msra.mxu0 %v90
      %876 = vmatprep.subr.mxu0 0.0
      %877 = vmatpush1.msra.mxu0 %v89
      %878 = vmatprep.subr.mxu0 0.0
      %879 = vmatpush2.msra.mxu0 0.0
      %880 = vmatprep.subr.mxu0 0.0
      %881 = vmatpush2.msra.mxu0 0.0
      %882 = vmatprep.subr.mxu0 0.0
      %883 = vmatpush2.msra.mxu0 0.0
      %884 = vmatprep.subr.mxu0 0.0
      %885 = vmatpush2.msra.mxu0 0.0
      %886 = vmatprep.subr.mxu0 0.0
      %887 = vmatpush2.msra.mxu0 0.0
      %888 = vmatprep.subr.mxu0 0.0
      %889 = vmatpush2.msra.mxu0 0.0
      %890 = vmatprep.subr.mxu0 0.0
      %891 = vmatpush2.msra.mxu0 0.0
      %892 = vmatprep.subr.mxu0 0.0
      %893 = vmatpush2.msra.mxu0 0.0
      %894 = vmatprep.subr.mxu0 0.0
      %895 = vmatpush2.msra.mxu0 0.0
      %896 = vmatprep.subr.mxu0 0.0
      %897 = vmatpush2.msra.mxu0 0.0
      %898 = vmatprep.subr.mxu0 0.0
      %899 = vmatpush2.msra.mxu0 0.0
      %900 = vmatprep.subr.mxu0 0.0
      %901 = vmatpush2.msra.mxu0 0.0
      %902 = vmatprep.subr.mxu0 0.0
      %903 = vmatpush2.msra.mxu0 0.0
      %904 = vmatprep.subr.mxu0 0.0
      %905 = vmatpush2.msra.mxu0 0.0
      %906 = vmatprep.subr.mxu0 0.0
      %907 = vmatpush2.msra.mxu0 0.0
      %908 = vmatprep.subr.mxu0 0.0
      %909 = vmatpush2.msra.mxu0 0.0
      %910 = vmatprep.mubr.f32.mxu0 0.0
      %911 = vmatmul.mubr.f32.gmra.mxu0 %v845
      %v912 = vpop.f32.mrf.mxu0
      %v913 = vadd.f32 %v62, %v912
      %v914 = vpop.f32.mrf.mxu0
      %915 = vdwg.mxu0
      %v916 = vtanh.pop %v913
      %v917 = vmul.f32 %v247, %v843
      %v918 = vadd.f32 %v701, %v917
      %919 = vmatprep.subr.mxu0 0.0
      %920 = vmatpush1.msra.mxu0 %v104
      %921 = vmatprep.subr.mxu0 0.0
      %922 = vmatpush1.msra.mxu0 %v103
      %923 = vmatprep.subr.mxu0 0.0
      %924 = vmatpush1.msra.mxu0 %v102
      %925 = vmatprep.subr.mxu0 0.0
      %926 = vmatpush1.msra.mxu0 %v101
      %927 = vmatprep.subr.mxu0 0.0
      %928 = vmatpush1.msra.mxu0 %v100
      %929 = vmatprep.subr.mxu0 0.0
      %930 = vmatpush1.msra.mxu0 %v99
      %931 = vmatprep.subr.mxu0 0.0
      %932 = vmatpush1.msra.mxu0 %v98
      %933 = vmatprep.subr.mxu0 0.0
      %934 = vmatpush1.msra.mxu0 %v97
      %935 = vmatprep.subr.mxu0 0.0
      %936 = vmatpush1.msra.mxu0 %v96
      %937 = vmatprep.subr.mxu0 0.0
      %938 = vmatpush1.msra.mxu0 %v95
      %939 = vmatprep.subr.mxu0 0.0
      %940 = vmatpush1.msra.mxu0 %v94
      %941 = vmatprep.subr.mxu0 0.0
      %942 = vmatpush1.msra.mxu0 %v93
      %943 = vmatprep.subr.mxu0 0.0
      %944 = vmatpush1.msra.mxu0 %v92
      %945 = vmatprep.subr.mxu0 0.0
      %946 = vmatpush1.msra.mxu0 %v91
      %947 = vmatprep.subr.mxu0 0.0
      %948 = vmatpush1.msra.mxu0 %v90
      %949 = vmatprep.subr.mxu0 0.0
      %950 = vmatpush1.msra.mxu0 %v89
      %951 = vmatprep.subr.mxu0 0.0
      %952 = vmatpush2.msra.mxu0 0.0
      %953 = vmatprep.subr.mxu0 0.0
      %954 = vmatpush2.msra.mxu0 0.0
      %955 = vmatprep.subr.mxu0 0.0
      %956 = vmatpush2.msra.mxu0 0.0
      %957 = vmatprep.subr.mxu0 0.0
      %958 = vmatpush2.msra.mxu0 0.0
      %959 = vmatprep.subr.mxu0 0.0
      %960 = vmatpush2.msra.mxu0 0.0
      %961 = vmatprep.subr.mxu0 0.0
      %962 = vmatpush2.msra.mxu0 0.0
      %963 = vmatprep.subr.mxu0 0.0
      %964 = vmatpush2.msra.mxu0 0.0
      %965 = vmatprep.subr.mxu0 0.0
      %966 = vmatpush2.msra.mxu0 0.0
      %967 = vmatprep.subr.mxu0 0.0
      %968 = vmatpush2.msra.mxu0 0.0
      %969 = vmatprep.subr.mxu0 0.0
      %970 = vmatpush2.msra.mxu0 0.0
      %971 = vmatprep.subr.mxu0 0.0
      %972 = vmatpush2.msra.mxu0 0.0
      %973 = vmatprep.subr.mxu0 0.0
      %974 = vmatpush2.msra.mxu0 0.0
      %975 = vmatprep.subr.mxu0 0.0
      %976 = vmatpush2.msra.mxu0 0.0
      %977 = vmatprep.subr.mxu0 0.0
      %978 = vmatpush2.msra.mxu0 0.0
      %979 = vmatprep.subr.mxu0 0.0
      %980 = vmatpush2.msra.mxu0 0.0
      %981 = vmatprep.subr.mxu0 0.0
      %982 = vmatpush2.msra.mxu0 0.0
      %983 = vmatprep.mubr.f32.mxu0 0.0
      %984 = vmatmul.mubr.f32.gmra.mxu0 %v918
      %v985 = vpop.f32.mrf.mxu0
      %v986 = vadd.f32 %v62, %v985
      %v987 = vpop.f32.mrf.mxu0
      %988 = vdwg.mxu0
      %v989 = vtanh.pop %v986
      %v990 = vmul.f32 %v247, %v916
      %v991 = vadd.f32 %v694, %v990
      %992 = vmatprep.subr.mxu0 0.0
      %993 = vmatpush1.msra.mxu0 %v104
      %994 = vmatprep.subr.mxu0 0.0
      %995 = vmatpush1.msra.mxu0 %v103
      %996 = vmatprep.subr.mxu0 0.0
      %997 = vmatpush1.msra.mxu0 %v102
      %998 = vmatprep.subr.mxu0 0.0
      %999 = vmatpush1.msra.mxu0 %v101
      %1000 = vmatprep.subr.mxu0 0.0
      %1001 = vmatpush1.msra.mxu0 %v100
      %1002 = vmatprep.subr.mxu0 0.0
      %1003 = vmatpush1.msra.mxu0 %v99
      %1004 = vmatprep.subr.mxu0 0.0
      %1005 = vmatpush1.msra.mxu0 %v98
      %1006 = vmatprep.subr.mxu0 0.0
      %1007 = vmatpush1.msra.mxu0 %v97
      %1008 = vmatprep.subr.mxu0 0.0
      %1009 = vmatpush1.msra.mxu0 %v96
      %1010 = vmatprep.subr.mxu0 0.0
      %1011 = vmatpush1.msra.mxu0 %v95
      %1012 = vmatprep.subr.mxu0 0.0
      %1013 = vmatpush1.msra.mxu0 %v94
      %1014 = vmatprep.subr.mxu0 0.0
      %1015 = vmatpush1.msra.mxu0 %v93
      %1016 = vmatprep.subr.mxu0 0.0
      %1017 = vmatpush1.msra.mxu0 %v92
      %1018 = vmatprep.subr.mxu0 0.0
      %1019 = vmatpush1.msra.mxu0 %v91
      %1020 = vmatprep.subr.mxu0 0.0
      %1021 = vmatpush1.msra.mxu0 %v90
      %1022 = vmatprep.subr.mxu0 0.0
      %1023 = vmatpush1.msra.mxu0 %v89
      %1024 = vmatprep.subr.mxu0 0.0
      %1025 = vmatpush2.msra.mxu0 0.0
      %1026 = vmatprep.subr.mxu0 0.0
      %1027 = vmatpush2.msra.mxu0 0.0
      %1028 = vmatprep.subr.mxu0 0.0
      %1029 = vmatpush2.msra.mxu0 0.0
      %1030 = vmatprep.subr.mxu0 0.0
      %1031 = vmatpush2.msra.mxu0 0.0
      %1032 = vmatprep.subr.mxu0 0.0
      %1033 = vmatpush2.msra.mxu0 0.0
      %1034 = vmatprep.subr.mxu0 0.0
      %1035 = vmatpush2.msra.mxu0 0.0
      %1036 = vmatprep.subr.mxu0 0.0
      %1037 = vmatpush2.msra.mxu0 0.0
      %1038 = vmatprep.subr.mxu0 0.0
      %1039 = vmatpush2.msra.mxu0 0.0
      %1040 = vmatprep.subr.mxu0 0.0
      %1041 = vmatpush2.msra.mxu0 0.0
      %1042 = vmatprep.subr.mxu0 0.0
      %1043 = vmatpush2.msra.mxu0 0.0
      %1044 = vmatprep.subr.mxu0 0.0
      %1045 = vmatpush2.msra.mxu0 0.0
      %1046 = vmatprep.subr.mxu0 0.0
      %1047 = vmatpush2.msra.mxu0 0.0
      %1048 = vmatprep.subr.mxu0 0.0
      %1049 = vmatpush2.msra.mxu0 0.0
      %1050 = vmatprep.subr.mxu0 0.0
      %1051 = vmatpush2.msra.mxu0 0.0
      %1052 = vmatprep.subr.mxu0 0.0
      %1053 = vmatpush2.msra.mxu0 0.0
      %1054 = vmatprep.subr.mxu0 0.0
      %1055 = vmatpush2.msra.mxu0 0.0
      %1056 = vmatprep.mubr.f32.mxu0 0.0
      %1057 = vmatmul.mubr.f32.gmra.mxu0 %v991
      %v1058 = vpop.f32.mrf.mxu0
      %v1059 = vadd.f32 %v62, %v1058
      %v1060 = vpop.f32.mrf.mxu0
      %1061 = vdwg.mxu0
      %v1062 = vtanh.pop %v1059
      %v1063 = vmul.f32 %v247, %v989
      %v1064 = vadd.f32 %v701, %v1063
      %1065 = vmatprep.subr.mxu0 0.0
      %1066 = vmatpush1.msra.mxu0 %v104
      %1067 = vmatprep.subr.mxu0 0.0
      %1068 = vmatpush1.msra.mxu0 %v103
      %1069 = vmatprep.subr.mxu0 0.0
      %1070 = vmatpush1.msra.mxu0 %v102
      %1071 = vmatprep.subr.mxu0 0.0
      %1072 = vmatpush1.msra.mxu0 %v101
      %1073 = vmatprep.subr.mxu0 0.0
      %1074 = vmatpush1.msra.mxu0 %v100
      %1075 = vmatprep.subr.mxu0 0.0
      %1076 = vmatpush1.msra.mxu0 %v99
      %1077 = vmatprep.subr.mxu0 0.0
      %1078 = vmatpush1.msra.mxu0 %v98
      %1079 = vmatprep.subr.mxu0 0.0
      %1080 = vmatpush1.msra.mxu0 %v97
      %1081 = vmatprep.subr.mxu0 0.0
      %1082 = vmatpush1.msra.mxu0 %v96
      %1083 = vmatprep.subr.mxu0 0.0
      %1084 = vmatpush1.msra.mxu0 %v95
      %1085 = vmatprep.subr.mxu0 0.0
      %1086 = vmatpush1.msra.mxu0 %v94
      %1087 = vmatprep.subr.mxu0 0.0
      %1088 = vmatpush1.msra.mxu0 %v93
      %1089 = vmatprep.subr.mxu0 0.0
      %1090 = vmatpush1.msra.mxu0 %v92
      %1091 = vmatprep.subr.mxu0 0.0
      %1092 = vmatpush1.msra.mxu0 %v91
      %1093 = vmatprep.subr.mxu0 0.0
      %1094 = vmatpush1.msra.mxu0 %v90
      %1095 = vmatprep.subr.mxu0 0.0
      %1096 = vmatpush1.msra.mxu0 %v89
      %1097 = vmatprep.subr.mxu0 0.0
      %1098 = vmatpush2.msra.mxu0 0.0
      %1099 = vmatprep.subr.mxu0 0.0
      %1100 = vmatpush2.msra.mxu0 0.0
      %1101 = vmatprep.subr.mxu0 0.0
      %1102 = vmatpush2.msra.mxu0 0.0
      %1103 = vmatprep.subr.mxu0 0.0
      %1104 = vmatpush2.msra.mxu0 0.0
      %1105 = vmatprep.subr.mxu0 0.0
      %1106 = vmatpush2.msra.mxu0 0.0
      %1107 = vmatprep.subr.mxu0 0.0
      %1108 = vmatpush2.msra.mxu0 0.0
      %1109 = vmatprep.subr.mxu0 0.0
      %1110 = vmatpush2.msra.mxu0 0.0
      %1111 = vmatprep.subr.mxu0 0.0
      %1112 = vmatpush2.msra.mxu0 0.0
      %1113 = vmatprep.subr.mxu0 0.0
      %1114 = vmatpush2.msra.mxu0 0.0
      %1115 = vmatprep.subr.mxu0 0.0
      %1116 = vmatpush2.msra.mxu0 0.0
      %1117 = vmatprep.subr.mxu0 0.0
      %1118 = vmatpush2.msra.mxu0 0.0
      %1119 = vmatprep.subr.mxu0 0.0
      %1120 = vmatpush2.msra.mxu0 0.0
      %1121 = vmatprep.subr.mxu0 0.0
      %1122 = vmatpush2.msra.mxu0 0.0
      %1123 = vmatprep.subr.mxu0 0.0
      %1124 = vmatpush2.msra.mxu0 0.0
      %1125 = vmatprep.subr.mxu0 0.0
      %1126 = vmatpush2.msra.mxu0 0.0
      %1127 = vmatprep.subr.mxu0 0.0
      %1128 = vmatpush2.msra.mxu0 0.0
      %1129 = vmatprep.mubr.f32.mxu0 0.0
      %1130 = vmatmul.mubr.f32.gmra.mxu0 %v1064
      %v1131 = vpop.f32.mrf.mxu0
      %v1132 = vadd.f32 %v62, %v1131
      %v1133 = vpop.f32.mrf.mxu0
      %1134 = vdwg.mxu0
      %v1135 = vtanh.pop %v1132
      %v1136 = vmul.f32 %v540, %v1062
      %v1137 = vadd.f32 %v694, %v1136
      %1138 = vmatprep.subr.mxu0 0.0
      %1139 = vmatpush1.msra.mxu0 %v104
      %1140 = vmatprep.subr.mxu0 0.0
      %1141 = vmatpush1.msra.mxu0 %v103
      %1142 = vmatprep.subr.mxu0 0.0
      %1143 = vmatpush1.msra.mxu0 %v102
      %1144 = vmatprep.subr.mxu0 0.0
      %1145 = vmatpush1.msra.mxu0 %v101
      %1146 = vmatprep.subr.mxu0 0.0
      %1147 = vmatpush1.msra.mxu0 %v100
      %1148 = vmatprep.subr.mxu0 0.0
      %1149 = vmatpush1.msra.mxu0 %v99
      %1150 = vmatprep.subr.mxu0 0.0
      %1151 = vmatpush1.msra.mxu0 %v98
      %1152 = vmatprep.subr.mxu0 0.0
      %1153 = vmatpush1.msra.mxu0 %v97
      %1154 = vmatprep.subr.mxu0 0.0
      %1155 = vmatpush1.msra.mxu0 %v96
      %1156 = vmatprep.subr.mxu0 0.0
      %1157 = vmatpush1.msra.mxu0 %v95
      %1158 = vmatprep.subr.mxu0 0.0
      %1159 = vmatpush1.msra.mxu0 %v94
      %1160 = vmatprep.subr.mxu0 0.0
      %1161 = vmatpush1.msra.mxu0 %v93
      %1162 = vmatprep.subr.mxu0 0.0
      %1163 = vmatpush1.msra.mxu0 %v92
      %1164 = vmatprep.subr.mxu0 0.0
      %1165 = vmatpush1.msra.mxu0 %v91
      %1166 = vmatprep.subr.mxu0 0.0
      %1167 = vmatpush1.msra.mxu0 %v90
      %1168 = vmatprep.subr.mxu0 0.0
      %1169 = vmatpush1.msra.mxu0 %v89
      %1170 = vmatprep.subr.mxu0 0.0
      %1171 = vmatpush2.msra.mxu0 0.0
      %1172 = vmatprep.subr.mxu0 0.0
      %1173 = vmatpush2.msra.mxu0 0.0
      %1174 = vmatprep.subr.mxu0 0.0
      %1175 = vmatpush2.msra.mxu0 0.0
      %1176 = vmatprep.subr.mxu0 0.0
      %1177 = vmatpush2.msra.mxu0 0.0
      %1178 = vmatprep.subr.mxu0 0.0
      %1179 = vmatpush2.msra.mxu0 0.0
      %1180 = vmatprep.subr.mxu0 0.0
      %1181 = vmatpush2.msra.mxu0 0.0
      %1182 = vmatprep.subr.mxu0 0.0
      %1183 = vmatpush2.msra.mxu0 0.0
      %1184 = vmatprep.subr.mxu0 0.0
      %1185 = vmatpush2.msra.mxu0 0.0
      %1186 = vmatprep.subr.mxu0 0.0
      %1187 = vmatpush2.msra.mxu0 0.0
      %1188 = vmatprep.subr.mxu0 0.0
      %1189 = vmatpush2.msra.mxu0 0.0
      %1190 = vmatprep.subr.mxu0 0.0
      %1191 = vmatpush2.msra.mxu0 0.0
      %1192 = vmatprep.subr.mxu0 0.0
      %1193 = vmatpush2.msra.mxu0 0.0
      %1194 = vmatprep.subr.mxu0 0.0
      %1195 = vmatpush2.msra.mxu0 0.0
      %1196 = vmatprep.subr.mxu0 0.0
      %1197 = vmatpush2.msra.mxu0 0.0
      %1198 = vmatprep.subr.mxu0 0.0
      %1199 = vmatpush2.msra.mxu0 0.0
      %1200 = vmatprep.subr.mxu0 0.0
      %1201 = vmatpush2.msra.mxu0 0.0
      %1202 = vmatprep.mubr.f32.mxu0 0.0
      %1203 = vmatmul.mubr.f32.gmra.mxu0 %v1137
      %v1204 = vpop.f32.mrf.mxu0
      %v1205 = vadd.f32 %v62, %v1204
      %v1206 = vpop.f32.mrf.mxu0
      %1207 = vdwg.mxu0
      %v1208 = vtanh.pop %v1205
      %v1209 = vmul.f32 %v540, %v1135
      %v1210 = vadd.f32 %v701, %v1209
      %1211 = vmatprep.subr.mxu0 0.0
      %1212 = vmatpush1.msra.mxu0 %v104
      %1213 = vmatprep.subr.mxu0 0.0
      %1214 = vmatpush1.msra.mxu0 %v103
      %1215 = vmatprep.subr.mxu0 0.0
      %1216 = vmatpush1.msra.mxu0 %v102
      %1217 = vmatprep.subr.mxu0 0.0
      %1218 = vmatpush1.msra.mxu0 %v101
      %1219 = vmatprep.subr.mxu0 0.0
      %1220 = vmatpush1.msra.mxu0 %v100
      %1221 = vmatprep.subr.mxu0 0.0
      %1222 = vmatpush1.msra.mxu0 %v99
      %1223 = vmatprep.subr.mxu0 0.0
      %1224 = vmatpush1.msra.mxu0 %v98
      %1225 = vmatprep.subr.mxu0 0.0
      %1226 = vmatpush1.msra.mxu0 %v97
      %1227 = vmatprep.subr.mxu0 0.0
      %1228 = vmatpush1.msra.mxu0 %v96
      %1229 = vmatprep.subr.mxu0 0.0
      %1230 = vmatpush1.msra.mxu0 %v95
      %1231 = vmatprep.subr.mxu0 0.0
      %1232 = vmatpush1.msra.mxu0 %v94
      %1233 = vmatprep.subr.mxu0 0.0
      %1234 = vmatpush1.msra.mxu0 %v93
      %1235 = vmatprep.subr.mxu0 0.0
      %1236 = vmatpush1.msra.mxu0 %v92
      %1237 = vmatprep.subr.mxu0 0.0
      %1238 = vmatpush1.msra.mxu0 %v91
      %1239 = vmatprep.subr.mxu0 0.0
      %1240 = vmatpush1.msra.mxu0 %v90
      %1241 = vmatprep.subr.mxu0 0.0
      %1242 = vmatpush1.msra.mxu0 %v89
      %1243 = vmatprep.subr.mxu0 0.0
      %1244 = vmatpush2.msra.mxu0 0.0
      %1245 = vmatprep.subr.mxu0 0.0
      %1246 = vmatpush2.msra.mxu0 0.0
      %1247 = vmatprep.subr.mxu0 0.0
      %1248 = vmatpush2.msra.mxu0 0.0
      %1249 = vmatprep.subr.mxu0 0.0
      %1250 = vmatpush2.msra.mxu0 0.0
      %1251 = vmatprep.subr.mxu0 0.0
      %1252 = vmatpush2.msra.mxu0 0.0
      %1253 = vmatprep.subr.mxu0 0.0
      %1254 = vmatpush2.msra.mxu0 0.0
      %1255 = vmatprep.subr.mxu0 0.0
      %1256 = vmatpush2.msra.mxu0 0.0
      %1257 = vmatprep.subr.mxu0 0.0
      %1258 = vmatpush2.msra.mxu0 0.0
      %1259 = vmatprep.subr.mxu0 0.0
      %1260 = vmatpush2.msra.mxu0 0.0
      %1261 = vmatprep.subr.mxu0 0.0
      %1262 = vmatpush2.msra.mxu0 0.0
      %1263 = vmatprep.subr.mxu0 0.0
      %1264 = vmatpush2.msra.mxu0 0.0
      %1265 = vmatprep.subr.mxu0 0.0
      %1266 = vmatpush2.msra.mxu0 0.0
      %1267 = vmatprep.subr.mxu0 0.0
      %1268 = vmatpush2.msra.mxu0 0.0
      %1269 = vmatprep.subr.mxu0 0.0
      %1270 = vmatpush2.msra.mxu0 0.0
      %1271 = vmatprep.subr.mxu0 0.0
      %1272 = vmatpush2.msra.mxu0 0.0
      %1273 = vmatprep.subr.mxu0 0.0
      %1274 = vmatpush2.msra.mxu0 0.0
      %1275 = vmatprep.mubr.f32.mxu0 0.0
      %1276 = vmatmul.mubr.f32.gmra.mxu0 %v1210
      %v1277 = vpop.f32.mrf.mxu0
      %v1278 = vadd.f32 %v62, %v1277
      %v1279 = vpop.f32.mrf.mxu0
      %1280 = vdwg.mxu0
      %v1281 = vtanh.pop %v1278
      %v1282 = vmul.f32 %v916, 2.0
      %v1283 = vadd.f32 %v772, %v1282
      %v1284 = vmul.f32 %v1062, 2.0
      %v1285 = vadd.f32 %v1283, %v1284
      %v1286 = vadd.f32 %v1285, %v1208
      %v1287 = vmul.f32 %v692, %v1286
      %v1288 = vadd.f32 %v694, %v1287
      %v1289 = vmul.f32 %v989, 2.0
      %v1290 = vadd.f32 %v843, %v1289
      %v1291 = vmul.f32 %v1135, 2.0
      %v1292 = vadd.f32 %v1290, %v1291
      %v1293 = vadd.f32 %v1292, %v1281
      %v1294 = vmul.f32 %v692, %v1293
      %v1295 = vadd.f32 %v701, %v1294
      %1296 = vmatprep.subr.mxu0 0.0
      %1297 = vmatpush1.msra.mxu0 %v104
      %1298 = vmatprep.subr.mxu0 0.0
      %1299 = vmatpush1.msra.mxu0 %v103
      %1300 = vmatprep.subr.mxu0 0.0
      %1301 = vmatpush1.msra.mxu0 %v102
      %1302 = vmatprep.subr.mxu0 0.0
      %1303 = vmatpush1.msra.mxu0 %v101
      %1304 = vmatprep.subr.mxu0 0.0
      %1305 = vmatpush1.msra.mxu0 %v100
      %1306 = vmatprep.subr.mxu0 0.0
      %1307 = vmatpush1.msra.mxu0 %v99
      %1308 = vmatprep.subr.mxu0 0.0
      %1309 = vmatpush1.msra.mxu0 %v98
      %1310 = vmatprep.subr.mxu0 0.0
      %1311 = vmatpush1.msra.mxu0 %v97
      %1312 = vmatprep.subr.mxu0 0.0
      %1313 = vmatpush1.msra.mxu0 %v96
      %1314 = vmatprep.subr.mxu0 0.0
      %1315 = vmatpush1.msra.mxu0 %v95
      %1316 = vmatprep.subr.mxu0 0.0
      %1317 = vmatpush1.msra.mxu0 %v94
      %1318 = vmatprep.subr.mxu0 0.0
      %1319 = vmatpush1.msra.mxu0 %v93
      %1320 = vmatprep.subr.mxu0 0.0
      %1321 = vmatpush1.msra.mxu0 %v92
      %1322 = vmatprep.subr.mxu0 0.0
      %1323 = vmatpush1.msra.mxu0 %v91
      %1324 = vmatprep.subr.mxu0 0.0
      %1325 = vmatpush1.msra.mxu0 %v90
      %1326 = vmatprep.subr.mxu0 0.0
      %1327 = vmatpush1.msra.mxu0 %v89
      %1328 = vmatprep.subr.mxu0 0.0
      %1329 = vmatpush2.msra.mxu0 0.0
      %1330 = vmatprep.subr.mxu0 0.0
      %1331 = vmatpush2.msra.mxu0 0.0
      %1332 = vmatprep.subr.mxu0 0.0
      %1333 = vmatpush2.msra.mxu0 0.0
      %1334 = vmatprep.subr.mxu0 0.0
      %1335 = vmatpush2.msra.mxu0 0.0
      %1336 = vmatprep.subr.mxu0 0.0
      %1337 = vmatpush2.msra.mxu0 0.0
      %1338 = vmatprep.subr.mxu0 0.0
      %1339 = vmatpush2.msra.mxu0 0.0
      %1340 = vmatprep.subr.mxu0 0.0
      %1341 = vmatpush2.msra.mxu0 0.0
      %1342 = vmatprep.subr.mxu0 0.0
      %1343 = vmatpush2.msra.mxu0 0.0
      %1344 = vmatprep.subr.mxu0 0.0
      %1345 = vmatpush2.msra.mxu0 0.0
      %1346 = vmatprep.subr.mxu0 0.0
      %1347 = vmatpush2.msra.mxu0 0.0
      %1348 = vmatprep.subr.mxu0 0.0
      %1349 = vmatpush2.msra.mxu0 0.0
      %1350 = vmatprep.subr.mxu0 0.0
      %1351 = vmatpush2.msra.mxu0 0.0
      %1352 = vmatprep.subr.mxu0 0.0
      %1353 = vmatpush2.msra.mxu0 0.0
      %1354 = vmatprep.subr.mxu0 0.0
      %1355 = vmatpush2.msra.mxu0 0.0
      %1356 = vmatprep.subr.mxu0 0.0
      %1357 = vmatpush2.msra.mxu0 0.0
      %1358 = vmatprep.subr.mxu0 0.0
      %1359 = vmatpush2.msra.mxu0 0.0
      %1360 = vmatprep.mubr.f32.mxu0 0.0
      %1361 = vmatmul.mubr.f32.gmra.mxu0 %v1288
      %v1362 = vpop.f32.mrf.mxu0
      %v1363 = vadd.f32 %v62, %v1362
      %v1364 = vpop.f32.mrf.mxu0
      %1365 = vdwg.mxu0
      %v1366 = vtanh.pop %v1363
      %1367 = vmatprep.subr.mxu0 0.0
      %1368 = vmatpush1.msra.mxu0 %v104
      %1369 = vmatprep.subr.mxu0 0.0
      %1370 = vmatpush1.msra.mxu0 %v103
      %1371 = vmatprep.subr.mxu0 0.0
      %1372 = vmatpush1.msra.mxu0 %v102
      %1373 = vmatprep.subr.mxu0 0.0
      %1374 = vmatpush1.msra.mxu0 %v101
      %1375 = vmatprep.subr.mxu0 0.0
      %1376 = vmatpush1.msra.mxu0 %v100
      %1377 = vmatprep.subr.mxu0 0.0
      %1378 = vmatpush1.msra.mxu0 %v99
      %1379 = vmatprep.subr.mxu0 0.0
      %1380 = vmatpush1.msra.mxu0 %v98
      %1381 = vmatprep.subr.mxu0 0.0
      %1382 = vmatpush1.msra.mxu0 %v97
      %1383 = vmatprep.subr.mxu0 0.0
      %1384 = vmatpush1.msra.mxu0 %v96
      %1385 = vmatprep.subr.mxu0 0.0
      %1386 = vmatpush1.msra.mxu0 %v95
      %1387 = vmatprep.subr.mxu0 0.0
      %1388 = vmatpush1.msra.mxu0 %v94
      %1389 = vmatprep.subr.mxu0 0.0
      %1390 = vmatpush1.msra.mxu0 %v93
      %1391 = vmatprep.subr.mxu0 0.0
      %1392 = vmatpush1.msra.mxu0 %v92
      %1393 = vmatprep.subr.mxu0 0.0
      %1394 = vmatpush1.msra.mxu0 %v91
      %1395 = vmatprep.subr.mxu0 0.0
      %1396 = vmatpush1.msra.mxu0 %v90
      %1397 = vmatprep.subr.mxu0 0.0
      %1398 = vmatpush1.msra.mxu0 %v89
      %1399 = vmatprep.subr.mxu0 0.0
      %1400 = vmatpush2.msra.mxu0 0.0
      %1401 = vmatprep.subr.mxu0 0.0
      %1402 = vmatpush2.msra.mxu0 0.0
      %1403 = vmatprep.subr.mxu0 0.0
      %1404 = vmatpush2.msra.mxu0 0.0
      %1405 = vmatprep.subr.mxu0 0.0
      %1406 = vmatpush2.msra.mxu0 0.0
      %1407 = vmatprep.subr.mxu0 0.0
      %1408 = vmatpush2.msra.mxu0 0.0
      %1409 = vmatprep.subr.mxu0 0.0
      %1410 = vmatpush2.msra.mxu0 0.0
      %1411 = vmatprep.subr.mxu0 0.0
      %1412 = vmatpush2.msra.mxu0 0.0
      %1413 = vmatprep.subr.mxu0 0.0
      %1414 = vmatpush2.msra.mxu0 0.0
      %1415 = vmatprep.subr.mxu0 0.0
      %1416 = vmatpush2.msra.mxu0 0.0
      %1417 = vmatprep.subr.mxu0 0.0
      %1418 = vmatpush2.msra.mxu0 0.0
      %1419 = vmatprep.subr.mxu0 0.0
      %1420 = vmatpush2.msra.mxu0 0.0
      %1421 = vmatprep.subr.mxu0 0.0
      %1422 = vmatpush2.msra.mxu0 0.0
      %1423 = vmatprep.subr.mxu0 0.0
      %1424 = vmatpush2.msra.mxu0 0.0
      %1425 = vmatprep.subr.mxu0 0.0
      %1426 = vmatpush2.msra.mxu0 0.0
      %1427 = vmatprep.subr.mxu0 0.0
      %1428 = vmatpush2.msra.mxu0 0.0
      %1429 = vmatprep.subr.mxu0 0.0
      %1430 = vmatpush2.msra.mxu0 0.0
      %1431 = vmatprep.mubr.f32.mxu0 0.0
      %1432 = vmatmul.mubr.f32.gmra.mxu0 %v1295
      %v1433 = vpop.f32.mrf.mxu0
      %v1434 = vadd.f32 %v62, %v1433
      %v1435 = vpop.f32.mrf.mxu0
      %1436 = vdwg.mxu0
      %v1437 = vtanh.pop %v1434
      %v1438 = vmul.f32 %v247, %v1366
      %v1439 = vadd.f32 %v1288, %v1438
      %1440 = vmatprep.subr.mxu0 0.0
      %1441 = vmatpush1.msra.mxu0 %v104
      %1442 = vmatprep.subr.mxu0 0.0
      %1443 = vmatpush1.msra.mxu0 %v103
      %1444 = vmatprep.subr.mxu0 0.0
      %1445 = vmatpush1.msra.mxu0 %v102
      %1446 = vmatprep.subr.mxu0 0.0
      %1447 = vmatpush1.msra.mxu0 %v101
      %1448 = vmatprep.subr.mxu0 0.0
      %1449 = vmatpush1.msra.mxu0 %v100
      %1450 = vmatprep.subr.mxu0 0.0
      %1451 = vmatpush1.msra.mxu0 %v99
      %1452 = vmatprep.subr.mxu0 0.0
      %1453 = vmatpush1.msra.mxu0 %v98
      %1454 = vmatprep.subr.mxu0 0.0
      %1455 = vmatpush1.msra.mxu0 %v97
      %1456 = vmatprep.subr.mxu0 0.0
      %1457 = vmatpush1.msra.mxu0 %v96
      %1458 = vmatprep.subr.mxu0 0.0
      %1459 = vmatpush1.msra.mxu0 %v95
      %1460 = vmatprep.subr.mxu0 0.0
      %1461 = vmatpush1.msra.mxu0 %v94
      %1462 = vmatprep.subr.mxu0 0.0
      %1463 = vmatpush1.msra.mxu0 %v93
      %1464 = vmatprep.subr.mxu0 0.0
      %1465 = vmatpush1.msra.mxu0 %v92
      %1466 = vmatprep.subr.mxu0 0.0
      %1467 = vmatpush1.msra.mxu0 %v91
      %1468 = vmatprep.subr.mxu0 0.0
      %1469 = vmatpush1.msra.mxu0 %v90
      %1470 = vmatprep.subr.mxu0 0.0
      %1471 = vmatpush1.msra.mxu0 %v89
      %1472 = vmatprep.subr.mxu0 0.0
      %1473 = vmatpush2.msra.mxu0 0.0
      %1474 = vmatprep.subr.mxu0 0.0
      %1475 = vmatpush2.msra.mxu0 0.0
      %1476 = vmatprep.subr.mxu0 0.0
      %1477 = vmatpush2.msra.mxu0 0.0
      %1478 = vmatprep.subr.mxu0 0.0
      %1479 = vmatpush2.msra.mxu0 0.0
      %1480 = vmatprep.subr.mxu0 0.0
      %1481 = vmatpush2.msra.mxu0 0.0
      %1482 = vmatprep.subr.mxu0 0.0
      %1483 = vmatpush2.msra.mxu0 0.0
      %1484 = vmatprep.subr.mxu0 0.0
      %1485 = vmatpush2.msra.mxu0 0.0
      %1486 = vmatprep.subr.mxu0 0.0
      %1487 = vmatpush2.msra.mxu0 0.0
      %1488 = vmatprep.subr.mxu0 0.0
      %1489 = vmatpush2.msra.mxu0 0.0
      %1490 = vmatprep.subr.mxu0 0.0
      %1491 = vmatpush2.msra.mxu0 0.0
      %1492 = vmatprep.subr.mxu0 0.0
      %1493 = vmatpush2.msra.mxu0 0.0
      %1494 = vmatprep.subr.mxu0 0.0
      %1495 = vmatpush2.msra.mxu0 0.0
      %1496 = vmatprep.subr.mxu0 0.0
      %1497 = vmatpush2.msra.mxu0 0.0
      %1498 = vmatprep.subr.mxu0 0.0
      %1499 = vmatpush2.msra.mxu0 0.0
      %1500 = vmatprep.subr.mxu0 0.0
      %1501 = vmatpush2.msra.mxu0 0.0
      %1502 = vmatprep.subr.mxu0 0.0
      %1503 = vmatpush2.msra.mxu0 0.0
      %1504 = vmatprep.mubr.f32.mxu0 0.0
      %1505 = vmatmul.mubr.f32.gmra.mxu0 %v1439
      %v1506 = vpop.f32.mrf.mxu0
      %v1507 = vadd.f32 %v62, %v1506
      %v1508 = vpop.f32.mrf.mxu0
      %1509 = vdwg.mxu0
      %v1510 = vtanh.pop %v1507
      %v1511 = vmul.f32 %v247, %v1437
      %v1512 = vadd.f32 %v1295, %v1511
      %1513 = vmatprep.subr.mxu0 0.0
      %1514 = vmatpush1.msra.mxu0 %v104
      %1515 = vmatprep.subr.mxu0 0.0
      %1516 = vmatpush1.msra.mxu0 %v103
      %1517 = vmatprep.subr.mxu0 0.0
      %1518 = vmatpush1.msra.mxu0 %v102
      %1519 = vmatprep.subr.mxu0 0.0
      %1520 = vmatpush1.msra.mxu0 %v101
      %1521 = vmatprep.subr.mxu0 0.0
      %1522 = vmatpush1.msra.mxu0 %v100
      %1523 = vmatprep.subr.mxu0 0.0
      %1524 = vmatpush1.msra.mxu0 %v99
      %1525 = vmatprep.subr.mxu0 0.0
      %1526 = vmatpush1.msra.mxu0 %v98
      %1527 = vmatprep.subr.mxu0 0.0
      %1528 = vmatpush1.msra.mxu0 %v97
      %1529 = vmatprep.subr.mxu0 0.0
      %1530 = vmatpush1.msra.mxu0 %v96
      %1531 = vmatprep.subr.mxu0 0.0
      %1532 = vmatpush1.msra.mxu0 %v95
      %1533 = vmatprep.subr.mxu0 0.0
      %1534 = vmatpush1.msra.mxu0 %v94
      %1535 = vmatprep.subr.mxu0 0.0
      %1536 = vmatpush1.msra.mxu0 %v93
      %1537 = vmatprep.subr.mxu0 0.0
      %1538 = vmatpush1.msra.mxu0 %v92
      %1539 = vmatprep.subr.mxu0 0.0
      %1540 = vmatpush1.msra.mxu0 %v91
      %1541 = vmatprep.subr.mxu0 0.0
      %1542 = vmatpush1.msra.mxu0 %v90
      %1543 = vmatprep.subr.mxu0 0.0
      %1544 = vmatpush1.msra.mxu0 %v89
      %1545 = vmatprep.subr.mxu0 0.0
      %1546 = vmatpush2.msra.mxu0 0.0
      %1547 = vmatprep.subr.mxu0 0.0
      %1548 = vmatpush2.msra.mxu0 0.0
      %1549 = vmatprep.subr.mxu0 0.0
      %1550 = vmatpush2.msra.mxu0 0.0
      %1551 = vmatprep.subr.mxu0 0.0
      %1552 = vmatpush2.msra.mxu0 0.0
      %1553 = vmatprep.subr.mxu0 0.0
      %1554 = vmatpush2.msra.mxu0 0.0
      %1555 = vmatprep.subr.mxu0 0.0
      %1556 = vmatpush2.msra.mxu0 0.0
      %1557 = vmatprep.subr.mxu0 0.0
      %1558 = vmatpush2.msra.mxu0 0.0
      %1559 = vmatprep.subr.mxu0 0.0
      %1560 = vmatpush2.msra.mxu0 0.0
      %1561 = vmatprep.subr.mxu0 0.0
      %1562 = vmatpush2.msra.mxu0 0.0
      %1563 = vmatprep.subr.mxu0 0.0
      %1564 = vmatpush2.msra.mxu0 0.0
      %1565 = vmatprep.subr.mxu0 0.0
      %1566 = vmatpush2.msra.mxu0 0.0
      %1567 = vmatprep.subr.mxu0 0.0
      %1568 = vmatpush2.msra.mxu0 0.0
      %1569 = vmatprep.subr.mxu0 0.0
      %1570 = vmatpush2.msra.mxu0 0.0
      %1571 = vmatprep.subr.mxu0 0.0
      %1572 = vmatpush2.msra.mxu0 0.0
      %1573 = vmatprep.subr.mxu0 0.0
      %1574 = vmatpush2.msra.mxu0 0.0
      %1575 = vmatprep.subr.mxu0 0.0
      %1576 = vmatpush2.msra.mxu0 0.0
      %1577 = vmatprep.mubr.f32.mxu0 0.0
      %1578 = vmatmul.mubr.f32.gmra.mxu0 %v1512
      %v1579 = vpop.f32.mrf.mxu0
      %v1580 = vadd.f32 %v62, %v1579
      %v1581 = vpop.f32.mrf.mxu0
      %1582 = vdwg.mxu0
      %v1583 = vtanh.pop %v1580
      %v1584 = vmul.f32 %v247, %v1510
      %v1585 = vadd.f32 %v1288, %v1584
      %1586 = vmatprep.subr.mxu0 0.0
      %1587 = vmatpush1.msra.mxu0 %v104
      %1588 = vmatprep.subr.mxu0 0.0
      %1589 = vmatpush1.msra.mxu0 %v103
      %1590 = vmatprep.subr.mxu0 0.0
      %1591 = vmatpush1.msra.mxu0 %v102
      %1592 = vmatprep.subr.mxu0 0.0
      %1593 = vmatpush1.msra.mxu0 %v101
      %1594 = vmatprep.subr.mxu0 0.0
      %1595 = vmatpush1.msra.mxu0 %v100
      %1596 = vmatprep.subr.mxu0 0.0
      %1597 = vmatpush1.msra.mxu0 %v99
      %1598 = vmatprep.subr.mxu0 0.0
      %1599 = vmatpush1.msra.mxu0 %v98
      %1600 = vmatprep.subr.mxu0 0.0
      %1601 = vmatpush1.msra.mxu0 %v97
      %1602 = vmatprep.subr.mxu0 0.0
      %1603 = vmatpush1.msra.mxu0 %v96
      %1604 = vmatprep.subr.mxu0 0.0
      %1605 = vmatpush1.msra.mxu0 %v95
      %1606 = vmatprep.subr.mxu0 0.0
      %1607 = vmatpush1.msra.mxu0 %v94
      %1608 = vmatprep.subr.mxu0 0.0
      %1609 = vmatpush1.msra.mxu0 %v93
      %1610 = vmatprep.subr.mxu0 0.0
      %1611 = vmatpush1.msra.mxu0 %v92
      %1612 = vmatprep.subr.mxu0 0.0
      %1613 = vmatpush1.msra.mxu0 %v91
      %1614 = vmatprep.subr.mxu0 0.0
      %1615 = vmatpush1.msra.mxu0 %v90
      %1616 = vmatprep.subr.mxu0 0.0
      %1617 = vmatpush1.msra.mxu0 %v89
      %1618 = vmatprep.subr.mxu0 0.0
      %1619 = vmatpush2.msra.mxu0 0.0
      %1620 = vmatprep.subr.mxu0 0.0
      %1621 = vmatpush2.msra.mxu0 0.0
      %1622 = vmatprep.subr.mxu0 0.0
      %1623 = vmatpush2.msra.mxu0 0.0
      %1624 = vmatprep.subr.mxu0 0.0
      %1625 = vmatpush2.msra.mxu0 0.0
      %1626 = vmatprep.subr.mxu0 0.0
      %1627 = vmatpush2.msra.mxu0 0.0
      %1628 = vmatprep.subr.mxu0 0.0
      %1629 = vmatpush2.msra.mxu0 0.0
      %1630 = vmatprep.subr.mxu0 0.0
      %1631 = vmatpush2.msra.mxu0 0.0
      %1632 = vmatprep.subr.mxu0 0.0
      %1633 = vmatpush2.msra.mxu0 0.0
      %1634 = vmatprep.subr.mxu0 0.0
      %1635 = vmatpush2.msra.mxu0 0.0
      %1636 = vmatprep.subr.mxu0 0.0
      %1637 = vmatpush2.msra.mxu0 0.0
      %1638 = vmatprep.subr.mxu0 0.0
      %1639 = vmatpush2.msra.mxu0 0.0
      %1640 = vmatprep.subr.mxu0 0.0
      %1641 = vmatpush2.msra.mxu0 0.0
      %1642 = vmatprep.subr.mxu0 0.0
      %1643 = vmatpush2.msra.mxu0 0.0
      %1644 = vmatprep.subr.mxu0 0.0
      %1645 = vmatpush2.msra.mxu0 0.0
      %1646 = vmatprep.subr.mxu0 0.0
      %1647 = vmatpush2.msra.mxu0 0.0
      %1648 = vmatprep.subr.mxu0 0.0
      %1649 = vmatpush2.msra.mxu0 0.0
      %1650 = vmatprep.mubr.f32.mxu0 0.0
      %1651 = vmatmul.mubr.f32.gmra.mxu0 %v1585
      %v1652 = vpop.f32.mrf.mxu0
      %v1653 = vadd.f32 %v62, %v1652
      %v1654 = vpop.f32.mrf.mxu0
      %1655 = vdwg.mxu0
      %v1656 = vtanh.pop %v1653
      %v1657 = vmul.f32 %v247, %v1583
      %v1658 = vadd.f32 %v1295, %v1657
      %1659 = vmatprep.subr.mxu0 0.0
      %1660 = vmatpush1.msra.mxu0 %v104
      %1661 = vmatprep.subr.mxu0 0.0
      %1662 = vmatpush1.msra.mxu0 %v103
      %1663 = vmatprep.subr.mxu0 0.0
      %1664 = vmatpush1.msra.mxu0 %v102
      %1665 = vmatprep.subr.mxu0 0.0
      %1666 = vmatpush1.msra.mxu0 %v101
      %1667 = vmatprep.subr.mxu0 0.0
      %1668 = vmatpush1.msra.mxu0 %v100
      %1669 = vmatprep.subr.mxu0 0.0
      %1670 = vmatpush1.msra.mxu0 %v99
      %1671 = vmatprep.subr.mxu0 0.0
      %1672 = vmatpush1.msra.mxu0 %v98
      %1673 = vmatprep.subr.mxu0 0.0
      %1674 = vmatpush1.msra.mxu0 %v97
      %1675 = vmatprep.subr.mxu0 0.0
      %1676 = vmatpush1.msra.mxu0 %v96
      %1677 = vmatprep.subr.mxu0 0.0
      %1678 = vmatpush1.msra.mxu0 %v95
      %1679 = vmatprep.subr.mxu0 0.0
      %1680 = vmatpush1.msra.mxu0 %v94
      %1681 = vmatprep.subr.mxu0 0.0
      %1682 = vmatpush1.msra.mxu0 %v93
      %1683 = vmatprep.subr.mxu0 0.0
      %1684 = vmatpush1.msra.mxu0 %v92
      %1685 = vmatprep.subr.mxu0 0.0
      %1686 = vmatpush1.msra.mxu0 %v91
      %1687 = vmatprep.subr.mxu0 0.0
      %1688 = vmatpush1.msra.mxu0 %v90
      %1689 = vmatprep.subr.mxu0 0.0
      %1690 = vmatpush1.msra.mxu0 %v89
      %1691 = vmatprep.subr.mxu0 0.0
      %1692 = vmatpush2.msra.mxu0 0.0
      %1693 = vmatprep.subr.mxu0 0.0
      %1694 = vmatpush2.msra.mxu0 0.0
      %1695 = vmatprep.subr.mxu0 0.0
      %1696 = vmatpush2.msra.mxu0 0.0
      %1697 = vmatprep.subr.mxu0 0.0
      %1698 = vmatpush2.msra.mxu0 0.0
      %1699 = vmatprep.subr.mxu0 0.0
      %1700 = vmatpush2.msra.mxu0 0.0
      %1701 = vmatprep.subr.mxu0 0.0
      %1702 = vmatpush2.msra.mxu0 0.0
      %1703 = vmatprep.subr.mxu0 0.0
      %1704 = vmatpush2.msra.mxu0 0.0
      %1705 = vmatprep.subr.mxu0 0.0
      %1706 = vmatpush2.msra.mxu0 0.0
      %1707 = vmatprep.subr.mxu0 0.0
      %1708 = vmatpush2.msra.mxu0 0.0
      %1709 = vmatprep.subr.mxu0 0.0
      %1710 = vmatpush2.msra.mxu0 0.0
      %1711 = vmatprep.subr.mxu0 0.0
      %1712 = vmatpush2.msra.mxu0 0.0
      %1713 = vmatprep.subr.mxu0 0.0
      %1714 = vmatpush2.msra.mxu0 0.0
      %1715 = vmatprep.subr.mxu0 0.0
      %1716 = vmatpush2.msra.mxu0 0.0
      %1717 = vmatprep.subr.mxu0 0.0
      %1718 = vmatpush2.msra.mxu0 0.0
      %1719 = vmatprep.subr.mxu0 0.0
      %1720 = vmatpush2.msra.mxu0 0.0
      %1721 = vmatprep.subr.mxu0 0.0
      %1722 = vmatpush2.msra.mxu0 0.0
      %1723 = vmatprep.mubr.f32.mxu0 0.0
      %1724 = vmatmul.mubr.f32.gmra.mxu0 %v1658
      %v1725 = vpop.f32.mrf.mxu0
      %v1726 = vadd.f32 %v62, %v1725
      %v1727 = vpop.f32.mrf.mxu0
      %1728 = vdwg.mxu0
      %v1729 = vtanh.pop %v1726
      %v1730 = vmul.f32 %v540, %v1656
      %v1731 = vadd.f32 %v1288, %v1730
      %1732 = vmatprep.subr.mxu0 0.0
      %1733 = vmatpush1.msra.mxu0 %v104
      %1734 = vmatprep.subr.mxu0 0.0
      %1735 = vmatpush1.msra.mxu0 %v103
      %1736 = vmatprep.subr.mxu0 0.0
      %1737 = vmatpush1.msra.mxu0 %v102
      %1738 = vmatprep.subr.mxu0 0.0
      %1739 = vmatpush1.msra.mxu0 %v101
      %1740 = vmatprep.subr.mxu0 0.0
      %1741 = vmatpush1.msra.mxu0 %v100
      %1742 = vmatprep.subr.mxu0 0.0
      %1743 = vmatpush1.msra.mxu0 %v99
      %1744 = vmatprep.subr.mxu0 0.0
      %1745 = vmatpush1.msra.mxu0 %v98
      %1746 = vmatprep.subr.mxu0 0.0
      %1747 = vmatpush1.msra.mxu0 %v97
      %1748 = vmatprep.subr.mxu0 0.0
      %1749 = vmatpush1.msra.mxu0 %v96
      %1750 = vmatprep.subr.mxu0 0.0
      %1751 = vmatpush1.msra.mxu0 %v95
      %1752 = vmatprep.subr.mxu0 0.0
      %1753 = vmatpush1.msra.mxu0 %v94
      %1754 = vmatprep.subr.mxu0 0.0
      %1755 = vmatpush1.msra.mxu0 %v93
      %1756 = vmatprep.subr.mxu0 0.0
      %1757 = vmatpush1.msra.mxu0 %v92
      %1758 = vmatprep.subr.mxu0 0.0
      %1759 = vmatpush1.msra.mxu0 %v91
      %1760 = vmatprep.subr.mxu0 0.0
      %1761 = vmatpush1.msra.mxu0 %v90
      %1762 = vmatprep.subr.mxu0 0.0
      %1763 = vmatpush1.msra.mxu0 %v89
      %1764 = vmatprep.subr.mxu0 0.0
      %1765 = vmatpush2.msra.mxu0 0.0
      %1766 = vmatprep.subr.mxu0 0.0
      %1767 = vmatpush2.msra.mxu0 0.0
      %1768 = vmatprep.subr.mxu0 0.0
      %1769 = vmatpush2.msra.mxu0 0.0
      %1770 = vmatprep.subr.mxu0 0.0
      %1771 = vmatpush2.msra.mxu0 0.0
      %1772 = vmatprep.subr.mxu0 0.0
      %1773 = vmatpush2.msra.mxu0 0.0
      %1774 = vmatprep.subr.mxu0 0.0
      %1775 = vmatpush2.msra.mxu0 0.0
      %1776 = vmatprep.subr.mxu0 0.0
      %1777 = vmatpush2.msra.mxu0 0.0
      %1778 = vmatprep.subr.mxu0 0.0
      %1779 = vmatpush2.msra.mxu0 0.0
      %1780 = vmatprep.subr.mxu0 0.0
      %1781 = vmatpush2.msra.mxu0 0.0
      %1782 = vmatprep.subr.mxu0 0.0
      %1783 = vmatpush2.msra.mxu0 0.0
      %1784 = vmatprep.subr.mxu0 0.0
      %1785 = vmatpush2.msra.mxu0 0.0
      %1786 = vmatprep.subr.mxu0 0.0
      %1787 = vmatpush2.msra.mxu0 0.0
      %1788 = vmatprep.subr.mxu0 0.0
      %1789 = vmatpush2.msra.mxu0 0.0
      %1790 = vmatprep.subr.mxu0 0.0
      %1791 = vmatpush2.msra.mxu0 0.0
      %1792 = vmatprep.subr.mxu0 0.0
      %1793 = vmatpush2.msra.mxu0 0.0
      %1794 = vmatprep.subr.mxu0 0.0
      %1795 = vmatpush2.msra.mxu0 0.0
      %1796 = vmatprep.mubr.f32.mxu0 0.0
      %1797 = vmatmul.mubr.f32.gmra.mxu0 %v1731
      %v1798 = vpop.f32.mrf.mxu0
      %v1799 = vadd.f32 %v62, %v1798
      %v1800 = vpop.f32.mrf.mxu0
      %1801 = vdwg.mxu0
      %v1802 = vtanh.pop %v1799
      %v1803 = vmul.f32 %v540, %v1729
      %v1804 = vadd.f32 %v1295, %v1803
      %1805 = vmatprep.subr.mxu0 0.0
      %1806 = vmatpush1.msra.mxu0 %v104
      %1807 = vmatprep.subr.mxu0 0.0
      %1808 = vmatpush1.msra.mxu0 %v103
      %1809 = vmatprep.subr.mxu0 0.0
      %1810 = vmatpush1.msra.mxu0 %v102
      %1811 = vmatprep.subr.mxu0 0.0
      %1812 = vmatpush1.msra.mxu0 %v101
      %1813 = vmatprep.subr.mxu0 0.0
      %1814 = vmatpush1.msra.mxu0 %v100
      %1815 = vmatprep.subr.mxu0 0.0
      %1816 = vmatpush1.msra.mxu0 %v99
      %1817 = vmatprep.subr.mxu0 0.0
      %1818 = vmatpush1.msra.mxu0 %v98
      %1819 = vmatprep.subr.mxu0 0.0
      %1820 = vmatpush1.msra.mxu0 %v97
      %1821 = vmatprep.subr.mxu0 0.0
      %1822 = vmatpush1.msra.mxu0 %v96
      %1823 = vmatprep.subr.mxu0 0.0
      %1824 = vmatpush1.msra.mxu0 %v95
      %1825 = vmatprep.subr.mxu0 0.0
      %1826 = vmatpush1.msra.mxu0 %v94
      %1827 = vmatprep.subr.mxu0 0.0
      %1828 = vmatpush1.msra.mxu0 %v93
      %1829 = vmatprep.subr.mxu0 0.0
      %1830 = vmatpush1.msra.mxu0 %v92
      %1831 = vmatprep.subr.mxu0 0.0
      %1832 = vmatpush1.msra.mxu0 %v91
      %1833 = vmatprep.subr.mxu0 0.0
      %1834 = vmatpush1.msra.mxu0 %v90
      %1835 = vmatprep.subr.mxu0 0.0
      %1836 = vmatpush1.msra.mxu0 %v89
      %1837 = vmatprep.subr.mxu0 0.0
      %1838 = vmatpush2.msra.mxu0 0.0
      %1839 = vmatprep.subr.mxu0 0.0
      %1840 = vmatpush2.msra.mxu0 0.0
      %1841 = vmatprep.subr.mxu0 0.0
      %1842 = vmatpush2.msra.mxu0 0.0
      %1843 = vmatprep.subr.mxu0 0.0
      %1844 = vmatpush2.msra.mxu0 0.0
      %1845 = vmatprep.subr.mxu0 0.0
      %1846 = vmatpush2.msra.mxu0 0.0
      %1847 = vmatprep.subr.mxu0 0.0
      %1848 = vmatpush2.msra.mxu0 0.0
      %1849 = vmatprep.subr.mxu0 0.0
      %1850 = vmatpush2.msra.mxu0 0.0
      %1851 = vmatprep.subr.mxu0 0.0
      %1852 = vmatpush2.msra.mxu0 0.0
      %1853 = vmatprep.subr.mxu0 0.0
      %1854 = vmatpush2.msra.mxu0 0.0
      %1855 = vmatprep.subr.mxu0 0.0
      %1856 = vmatpush2.msra.mxu0 0.0
      %1857 = vmatprep.subr.mxu0 0.0
      %1858 = vmatpush2.msra.mxu0 0.0
      %1859 = vmatprep.subr.mxu0 0.0
      %1860 = vmatpush2.msra.mxu0 0.0
      %1861 = vmatprep.subr.mxu0 0.0
      %1862 = vmatpush2.msra.mxu0 0.0
      %1863 = vmatprep.subr.mxu0 0.0
      %1864 = vmatpush2.msra.mxu0 0.0
      %1865 = vmatprep.subr.mxu0 0.0
      %1866 = vmatpush2.msra.mxu0 0.0
      %1867 = vmatprep.subr.mxu0 0.0
      %1868 = vmatpush2.msra.mxu0 0.0
      %1869 = vmatprep.mubr.f32.mxu0 0.0
      %1870 = vmatmul.mubr.f32.gmra.mxu0 %v1804
      %v1871 = vpop.f32.mrf.mxu0
      %v1872 = vadd.f32 %v62, %v1871
      %v1873 = vpop.f32.mrf.mxu0
      %1874 = vdwg.mxu0
      %v1875 = vtanh.pop %v1872
      %v1876 = vmul.f32 %v1510, 2.0
      %v1877 = vadd.f32 %v1366, %v1876
      %v1878 = vmul.f32 %v1656, 2.0
      %v1879 = vadd.f32 %v1877, %v1878
      %v1880 = vadd.f32 %v1879, %v1802
      %v1881 = vmul.f32 %v692, %v1880
      %v1882 = vadd.f32 %v1288, %v1881
      %v1883 = vmul.f32 %v1583, 2.0
      %v1884 = vadd.f32 %v1437, %v1883
      %v1885 = vmul.f32 %v1729, 2.0
      %v1886 = vadd.f32 %v1884, %v1885
      %v1887 = vadd.f32 %v1886, %v1875
      %v1888 = vmul.f32 %v692, %v1887
      %v1889 = vadd.f32 %v1295, %v1888
      %1890 = vmatprep.subr.mxu0 0.0
      %1891 = vmatpush1.msra.mxu0 %v104
      %1892 = vmatprep.subr.mxu0 0.0
      %1893 = vmatpush1.msra.mxu0 %v103
      %1894 = vmatprep.subr.mxu0 0.0
      %1895 = vmatpush1.msra.mxu0 %v102
      %1896 = vmatprep.subr.mxu0 0.0
      %1897 = vmatpush1.msra.mxu0 %v101
      %1898 = vmatprep.subr.mxu0 0.0
      %1899 = vmatpush1.msra.mxu0 %v100
      %1900 = vmatprep.subr.mxu0 0.0
      %1901 = vmatpush1.msra.mxu0 %v99
      %1902 = vmatprep.subr.mxu0 0.0
      %1903 = vmatpush1.msra.mxu0 %v98
      %1904 = vmatprep.subr.mxu0 0.0
      %1905 = vmatpush1.msra.mxu0 %v97
      %1906 = vmatprep.subr.mxu0 0.0
      %1907 = vmatpush1.msra.mxu0 %v96
      %1908 = vmatprep.subr.mxu0 0.0
      %1909 = vmatpush1.msra.mxu0 %v95
      %1910 = vmatprep.subr.mxu0 0.0
      %1911 = vmatpush1.msra.mxu0 %v94
      %1912 = vmatprep.subr.mxu0 0.0
      %1913 = vmatpush1.msra.mxu0 %v93
      %1914 = vmatprep.subr.mxu0 0.0
      %1915 = vmatpush1.msra.mxu0 %v92
      %1916 = vmatprep.subr.mxu0 0.0
      %1917 = vmatpush1.msra.mxu0 %v91
      %1918 = vmatprep.subr.mxu0 0.0
      %1919 = vmatpush1.msra.mxu0 %v90
      %1920 = vmatprep.subr.mxu0 0.0
      %1921 = vmatpush1.msra.mxu0 %v89
      %1922 = vmatprep.subr.mxu0 0.0
      %1923 = vmatpush2.msra.mxu0 0.0
      %1924 = vmatprep.subr.mxu0 0.0
      %1925 = vmatpush2.msra.mxu0 0.0
      %1926 = vmatprep.subr.mxu0 0.0
      %1927 = vmatpush2.msra.mxu0 0.0
      %1928 = vmatprep.subr.mxu0 0.0
      %1929 = vmatpush2.msra.mxu0 0.0
      %1930 = vmatprep.subr.mxu0 0.0
      %1931 = vmatpush2.msra.mxu0 0.0
      %1932 = vmatprep.subr.mxu0 0.0
      %1933 = vmatpush2.msra.mxu0 0.0
      %1934 = vmatprep.subr.mxu0 0.0
      %1935 = vmatpush2.msra.mxu0 0.0
      %1936 = vmatprep.subr.mxu0 0.0
      %1937 = vmatpush2.msra.mxu0 0.0
      %1938 = vmatprep.subr.mxu0 0.0
      %1939 = vmatpush2.msra.mxu0 0.0
      %1940 = vmatprep.subr.mxu0 0.0
      %1941 = vmatpush2.msra.mxu0 0.0
      %1942 = vmatprep.subr.mxu0 0.0
      %1943 = vmatpush2.msra.mxu0 0.0
      %1944 = vmatprep.subr.mxu0 0.0
      %1945 = vmatpush2.msra.mxu0 0.0
      %1946 = vmatprep.subr.mxu0 0.0
      %1947 = vmatpush2.msra.mxu0 0.0
      %1948 = vmatprep.subr.mxu0 0.0
      %1949 = vmatpush2.msra.mxu0 0.0
      %1950 = vmatprep.subr.mxu0 0.0
      %1951 = vmatpush2.msra.mxu0 0.0
      %1952 = vmatprep.subr.mxu0 0.0
      %1953 = vmatpush2.msra.mxu0 0.0
      %1954 = vmatprep.mubr.f32.mxu0 0.0
      %1955 = vmatmul.mubr.f32.gmra.mxu0 %v1882
      %v1956 = vpop.f32.mrf.mxu0
      %v1957 = vadd.f32 %v62, %v1956
      %v1958 = vpop.f32.mrf.mxu0
      %1959 = vdwg.mxu0
      %v1960 = vtanh.pop %v1957
      %1961 = vmatprep.subr.mxu0 0.0
      %1962 = vmatpush1.msra.mxu0 %v104
      %1963 = vmatprep.subr.mxu0 0.0
      %1964 = vmatpush1.msra.mxu0 %v103
      %1965 = vmatprep.subr.mxu0 0.0
      %1966 = vmatpush1.msra.mxu0 %v102
      %1967 = vmatprep.subr.mxu0 0.0
      %1968 = vmatpush1.msra.mxu0 %v101
      %1969 = vmatprep.subr.mxu0 0.0
      %1970 = vmatpush1.msra.mxu0 %v100
      %1971 = vmatprep.subr.mxu0 0.0
      %1972 = vmatpush1.msra.mxu0 %v99
      %1973 = vmatprep.subr.mxu0 0.0
      %1974 = vmatpush1.msra.mxu0 %v98
      %1975 = vmatprep.subr.mxu0 0.0
      %1976 = vmatpush1.msra.mxu0 %v97
      %1977 = vmatprep.subr.mxu0 0.0
      %1978 = vmatpush1.msra.mxu0 %v96
      %1979 = vmatprep.subr.mxu0 0.0
      %1980 = vmatpush1.msra.mxu0 %v95
      %1981 = vmatprep.subr.mxu0 0.0
      %1982 = vmatpush1.msra.mxu0 %v94
      %1983 = vmatprep.subr.mxu0 0.0
      %1984 = vmatpush1.msra.mxu0 %v93
      %1985 = vmatprep.subr.mxu0 0.0
      %1986 = vmatpush1.msra.mxu0 %v92
      %1987 = vmatprep.subr.mxu0 0.0
      %1988 = vmatpush1.msra.mxu0 %v91
      %1989 = vmatprep.subr.mxu0 0.0
      %1990 = vmatpush1.msra.mxu0 %v90
      %1991 = vmatprep.subr.mxu0 0.0
      %1992 = vmatpush1.msra.mxu0 %v89
      %1993 = vmatprep.subr.mxu0 0.0
      %1994 = vmatpush2.msra.mxu0 0.0
      %1995 = vmatprep.subr.mxu0 0.0
      %1996 = vmatpush2.msra.mxu0 0.0
      %1997 = vmatprep.subr.mxu0 0.0
      %1998 = vmatpush2.msra.mxu0 0.0
      %1999 = vmatprep.subr.mxu0 0.0
      %2000 = vmatpush2.msra.mxu0 0.0
      %2001 = vmatprep.subr.mxu0 0.0
      %2002 = vmatpush2.msra.mxu0 0.0
      %2003 = vmatprep.subr.mxu0 0.0
      %2004 = vmatpush2.msra.mxu0 0.0
      %2005 = vmatprep.subr.mxu0 0.0
      %2006 = vmatpush2.msra.mxu0 0.0
      %2007 = vmatprep.subr.mxu0 0.0
      %2008 = vmatpush2.msra.mxu0 0.0
      %2009 = vmatprep.subr.mxu0 0.0
      %2010 = vmatpush2.msra.mxu0 0.0
      %2011 = vmatprep.subr.mxu0 0.0
      %2012 = vmatpush2.msra.mxu0 0.0
      %2013 = vmatprep.subr.mxu0 0.0
      %2014 = vmatpush2.msra.mxu0 0.0
      %2015 = vmatprep.subr.mxu0 0.0
      %2016 = vmatpush2.msra.mxu0 0.0
      %2017 = vmatprep.subr.mxu0 0.0
      %2018 = vmatpush2.msra.mxu0 0.0
      %2019 = vmatprep.subr.mxu0 0.0
      %2020 = vmatpush2.msra.mxu0 0.0
      %2021 = vmatprep.subr.mxu0 0.0
      %2022 = vmatpush2.msra.mxu0 0.0
      %2023 = vmatprep.subr.mxu0 0.0
      %2024 = vmatpush2.msra.mxu0 0.0
      %2025 = vmatprep.mubr.f32.mxu0 0.0
      %2026 = vmatmul.mubr.f32.gmra.mxu0 %v1889
      %v2027 = vpop.f32.mrf.mxu0
      %v2028 = vadd.f32 %v62, %v2027
      %v2029 = vpop.f32.mrf.mxu0
      %2030 = vdwg.mxu0
      %v2031 = vtanh.pop %v2028
      %v2032 = vmul.f32 %v247, %v1960
      %v2033 = vadd.f32 %v1882, %v2032
      %2034 = vmatprep.subr.mxu0 0.0
      %2035 = vmatpush1.msra.mxu0 %v104
      %2036 = vmatprep.subr.mxu0 0.0
      %2037 = vmatpush1.msra.mxu0 %v103
      %2038 = vmatprep.subr.mxu0 0.0
      %2039 = vmatpush1.msra.mxu0 %v102
      %2040 = vmatprep.subr.mxu0 0.0
      %2041 = vmatpush1.msra.mxu0 %v101
      %2042 = vmatprep.subr.mxu0 0.0
      %2043 = vmatpush1.msra.mxu0 %v100
      %2044 = vmatprep.subr.mxu0 0.0
      %2045 = vmatpush1.msra.mxu0 %v99
      %2046 = vmatprep.subr.mxu0 0.0
      %2047 = vmatpush1.msra.mxu0 %v98
      %2048 = vmatprep.subr.mxu0 0.0
      %2049 = vmatpush1.msra.mxu0 %v97
      %2050 = vmatprep.subr.mxu0 0.0
      %2051 = vmatpush1.msra.mxu0 %v96
      %2052 = vmatprep.subr.mxu0 0.0
      %2053 = vmatpush1.msra.mxu0 %v95
      %2054 = vmatprep.subr.mxu0 0.0
      %2055 = vmatpush1.msra.mxu0 %v94
      %2056 = vmatprep.subr.mxu0 0.0
      %2057 = vmatpush1.msra.mxu0 %v93
      %2058 = vmatprep.subr.mxu0 0.0
      %2059 = vmatpush1.msra.mxu0 %v92
      %2060 = vmatprep.subr.mxu0 0.0
      %2061 = vmatpush1.msra.mxu0 %v91
      %2062 = vmatprep.subr.mxu0 0.0
      %2063 = vmatpush1.msra.mxu0 %v90
      %2064 = vmatprep.subr.mxu0 0.0
      %2065 = vmatpush1.msra.mxu0 %v89
      %2066 = vmatprep.subr.mxu0 0.0
      %2067 = vmatpush2.msra.mxu0 0.0
      %2068 = vmatprep.subr.mxu0 0.0
      %2069 = vmatpush2.msra.mxu0 0.0
      %2070 = vmatprep.subr.mxu0 0.0
      %2071 = vmatpush2.msra.mxu0 0.0
      %2072 = vmatprep.subr.mxu0 0.0
      %2073 = vmatpush2.msra.mxu0 0.0
      %2074 = vmatprep.subr.mxu0 0.0
      %2075 = vmatpush2.msra.mxu0 0.0
      %2076 = vmatprep.subr.mxu0 0.0
      %2077 = vmatpush2.msra.mxu0 0.0
      %2078 = vmatprep.subr.mxu0 0.0
      %2079 = vmatpush2.msra.mxu0 0.0
      %2080 = vmatprep.subr.mxu0 0.0
      %2081 = vmatpush2.msra.mxu0 0.0
      %2082 = vmatprep.subr.mxu0 0.0
      %2083 = vmatpush2.msra.mxu0 0.0
      %2084 = vmatprep.subr.mxu0 0.0
      %2085 = vmatpush2.msra.mxu0 0.0
      %2086 = vmatprep.subr.mxu0 0.0
      %2087 = vmatpush2.msra.mxu0 0.0
      %2088 = vmatprep.subr.mxu0 0.0
      %2089 = vmatpush2.msra.mxu0 0.0
      %2090 = vmatprep.subr.mxu0 0.0
      %2091 = vmatpush2.msra.mxu0 0.0
      %2092 = vmatprep.subr.mxu0 0.0
      %2093 = vmatpush2.msra.mxu0 0.0
      %2094 = vmatprep.subr.mxu0 0.0
      %2095 = vmatpush2.msra.mxu0 0.0
      %2096 = vmatprep.subr.mxu0 0.0
      %2097 = vmatpush2.msra.mxu0 0.0
      %2098 = vmatprep.mubr.f32.mxu0 0.0
      %2099 = vmatmul.mubr.f32.gmra.mxu0 %v2033
      %v2100 = vpop.f32.mrf.mxu0
      %v2101 = vadd.f32 %v62, %v2100
      %v2102 = vpop.f32.mrf.mxu0
      %2103 = vdwg.mxu0
      %v2104 = vtanh.pop %v2101
      %v2105 = vmul.f32 %v247, %v2031
      %v2106 = vadd.f32 %v1889, %v2105
      %2107 = vmatprep.subr.mxu0 0.0
      %2108 = vmatpush1.msra.mxu0 %v104
      %2109 = vmatprep.subr.mxu0 0.0
      %2110 = vmatpush1.msra.mxu0 %v103
      %2111 = vmatprep.subr.mxu0 0.0
      %2112 = vmatpush1.msra.mxu0 %v102
      %2113 = vmatprep.subr.mxu0 0.0
      %2114 = vmatpush1.msra.mxu0 %v101
      %2115 = vmatprep.subr.mxu0 0.0
      %2116 = vmatpush1.msra.mxu0 %v100
      %2117 = vmatprep.subr.mxu0 0.0
      %2118 = vmatpush1.msra.mxu0 %v99
      %2119 = vmatprep.subr.mxu0 0.0
      %2120 = vmatpush1.msra.mxu0 %v98
      %2121 = vmatprep.subr.mxu0 0.0
      %2122 = vmatpush1.msra.mxu0 %v97
      %2123 = vmatprep.subr.mxu0 0.0
      %2124 = vmatpush1.msra.mxu0 %v96
      %2125 = vmatprep.subr.mxu0 0.0
      %2126 = vmatpush1.msra.mxu0 %v95
      %2127 = vmatprep.subr.mxu0 0.0
      %2128 = vmatpush1.msra.mxu0 %v94
      %2129 = vmatprep.subr.mxu0 0.0
      %2130 = vmatpush1.msra.mxu0 %v93
      %2131 = vmatprep.subr.mxu0 0.0
      %2132 = vmatpush1.msra.mxu0 %v92
      %2133 = vmatprep.subr.mxu0 0.0
      %2134 = vmatpush1.msra.mxu0 %v91
      %2135 = vmatprep.subr.mxu0 0.0
      %2136 = vmatpush1.msra.mxu0 %v90
      %2137 = vmatprep.subr.mxu0 0.0
      %2138 = vmatpush1.msra.mxu0 %v89
      %2139 = vmatprep.subr.mxu0 0.0
      %2140 = vmatpush2.msra.mxu0 0.0
      %2141 = vmatprep.subr.mxu0 0.0
      %2142 = vmatpush2.msra.mxu0 0.0
      %2143 = vmatprep.subr.mxu0 0.0
      %2144 = vmatpush2.msra.mxu0 0.0
      %2145 = vmatprep.subr.mxu0 0.0
      %2146 = vmatpush2.msra.mxu0 0.0
      %2147 = vmatprep.subr.mxu0 0.0
      %2148 = vmatpush2.msra.mxu0 0.0
      %2149 = vmatprep.subr.mxu0 0.0
      %2150 = vmatpush2.msra.mxu0 0.0
      %2151 = vmatprep.subr.mxu0 0.0
      %2152 = vmatpush2.msra.mxu0 0.0
      %2153 = vmatprep.subr.mxu0 0.0
      %2154 = vmatpush2.msra.mxu0 0.0
      %2155 = vmatprep.subr.mxu0 0.0
      %2156 = vmatpush2.msra.mxu0 0.0
      %2157 = vmatprep.subr.mxu0 0.0
      %2158 = vmatpush2.msra.mxu0 0.0
      %2159 = vmatprep.subr.mxu0 0.0
      %2160 = vmatpush2.msra.mxu0 0.0
      %2161 = vmatprep.subr.mxu0 0.0
      %2162 = vmatpush2.msra.mxu0 0.0
      %2163 = vmatprep.subr.mxu0 0.0
      %2164 = vmatpush2.msra.mxu0 0.0
      %2165 = vmatprep.subr.mxu0 0.0
      %2166 = vmatpush2.msra.mxu0 0.0
      %2167 = vmatprep.subr.mxu0 0.0
      %2168 = vmatpush2.msra.mxu0 0.0
      %2169 = vmatprep.subr.mxu0 0.0
      %2170 = vmatpush2.msra.mxu0 0.0
      %2171 = vmatprep.mubr.f32.mxu0 0.0
      %2172 = vmatmul.mubr.f32.gmra.mxu0 %v2106
      %v2173 = vpop.f32.mrf.mxu0
      %v2174 = vadd.f32 %v62, %v2173
      %v2175 = vpop.f32.mrf.mxu0
      %2176 = vdwg.mxu0
      %v2177 = vtanh.pop %v2174
      %v2178 = vmul.f32 %v247, %v2104
      %v2179 = vadd.f32 %v1882, %v2178
      %2180 = vmatprep.subr.mxu0 0.0
      %2181 = vmatpush1.msra.mxu0 %v104
      %2182 = vmatprep.subr.mxu0 0.0
      %2183 = vmatpush1.msra.mxu0 %v103
      %2184 = vmatprep.subr.mxu0 0.0
      %2185 = vmatpush1.msra.mxu0 %v102
      %2186 = vmatprep.subr.mxu0 0.0
      %2187 = vmatpush1.msra.mxu0 %v101
      %2188 = vmatprep.subr.mxu0 0.0
      %2189 = vmatpush1.msra.mxu0 %v100
      %2190 = vmatprep.subr.mxu0 0.0
      %2191 = vmatpush1.msra.mxu0 %v99
      %2192 = vmatprep.subr.mxu0 0.0
      %2193 = vmatpush1.msra.mxu0 %v98
      %2194 = vmatprep.subr.mxu0 0.0
      %2195 = vmatpush1.msra.mxu0 %v97
      %2196 = vmatprep.subr.mxu0 0.0
      %2197 = vmatpush1.msra.mxu0 %v96
      %2198 = vmatprep.subr.mxu0 0.0
      %2199 = vmatpush1.msra.mxu0 %v95
      %2200 = vmatprep.subr.mxu0 0.0
      %2201 = vmatpush1.msra.mxu0 %v94
      %2202 = vmatprep.subr.mxu0 0.0
      %2203 = vmatpush1.msra.mxu0 %v93
      %2204 = vmatprep.subr.mxu0 0.0
      %2205 = vmatpush1.msra.mxu0 %v92
      %2206 = vmatprep.subr.mxu0 0.0
      %2207 = vmatpush1.msra.mxu0 %v91
      %2208 = vmatprep.subr.mxu0 0.0
      %2209 = vmatpush1.msra.mxu0 %v90
      %2210 = vmatprep.subr.mxu0 0.0
      %2211 = vmatpush1.msra.mxu0 %v89
      %2212 = vmatprep.subr.mxu0 0.0
      %2213 = vmatpush2.msra.mxu0 0.0
      %2214 = vmatprep.subr.mxu0 0.0
      %2215 = vmatpush2.msra.mxu0 0.0
      %2216 = vmatprep.subr.mxu0 0.0
      %2217 = vmatpush2.msra.mxu0 0.0
      %2218 = vmatprep.subr.mxu0 0.0
      %2219 = vmatpush2.msra.mxu0 0.0
      %2220 = vmatprep.subr.mxu0 0.0
      %2221 = vmatpush2.msra.mxu0 0.0
      %2222 = vmatprep.subr.mxu0 0.0
      %2223 = vmatpush2.msra.mxu0 0.0
      %2224 = vmatprep.subr.mxu0 0.0
      %2225 = vmatpush2.msra.mxu0 0.0
      %2226 = vmatprep.subr.mxu0 0.0
      %2227 = vmatpush2.msra.mxu0 0.0
      %2228 = vmatprep.subr.mxu0 0.0
      %2229 = vmatpush2.msra.mxu0 0.0
      %2230 = vmatprep.subr.mxu0 0.0
      %2231 = vmatpush2.msra.mxu0 0.0
      %2232 = vmatprep.subr.mxu0 0.0
      %2233 = vmatpush2.msra.mxu0 0.0
      %2234 = vmatprep.subr.mxu0 0.0
      %2235 = vmatpush2.msra.mxu0 0.0
      %2236 = vmatprep.subr.mxu0 0.0
      %2237 = vmatpush2.msra.mxu0 0.0
      %2238 = vmatprep.subr.mxu0 0.0
      %2239 = vmatpush2.msra.mxu0 0.0
      %2240 = vmatprep.subr.mxu0 0.0
      %2241 = vmatpush2.msra.mxu0 0.0
      %2242 = vmatprep.subr.mxu0 0.0
      %2243 = vmatpush2.msra.mxu0 0.0
      %2244 = vmatprep.mubr.f32.mxu0 0.0
      %2245 = vmatmul.mubr.f32.gmra.mxu0 %v2179
      %v2246 = vpop.f32.mrf.mxu0
      %v2247 = vadd.f32 %v62, %v2246
      %v2248 = vpop.f32.mrf.mxu0
      %2249 = vdwg.mxu0
      %v2250 = vtanh.pop %v2247
      %v2251 = vmul.f32 %v247, %v2177
      %v2252 = vadd.f32 %v1889, %v2251
      %2253 = vmatprep.subr.mxu0 0.0
      %2254 = vmatpush1.msra.mxu0 %v104
      %2255 = vmatprep.subr.mxu0 0.0
      %2256 = vmatpush1.msra.mxu0 %v103
      %2257 = vmatprep.subr.mxu0 0.0
      %2258 = vmatpush1.msra.mxu0 %v102
      %2259 = vmatprep.subr.mxu0 0.0
      %2260 = vmatpush1.msra.mxu0 %v101
      %2261 = vmatprep.subr.mxu0 0.0
      %2262 = vmatpush1.msra.mxu0 %v100
      %2263 = vmatprep.subr.mxu0 0.0
      %2264 = vmatpush1.msra.mxu0 %v99
      %2265 = vmatprep.subr.mxu0 0.0
      %2266 = vmatpush1.msra.mxu0 %v98
      %2267 = vmatprep.subr.mxu0 0.0
      %2268 = vmatpush1.msra.mxu0 %v97
      %2269 = vmatprep.subr.mxu0 0.0
      %2270 = vmatpush1.msra.mxu0 %v96
      %2271 = vmatprep.subr.mxu0 0.0
      %2272 = vmatpush1.msra.mxu0 %v95
      %2273 = vmatprep.subr.mxu0 0.0
      %2274 = vmatpush1.msra.mxu0 %v94
      %2275 = vmatprep.subr.mxu0 0.0
      %2276 = vmatpush1.msra.mxu0 %v93
      %2277 = vmatprep.subr.mxu0 0.0
      %2278 = vmatpush1.msra.mxu0 %v92
      %2279 = vmatprep.subr.mxu0 0.0
      %2280 = vmatpush1.msra.mxu0 %v91
      %2281 = vmatprep.subr.mxu0 0.0
      %2282 = vmatpush1.msra.mxu0 %v90
      %2283 = vmatprep.subr.mxu0 0.0
      %2284 = vmatpush1.msra.mxu0 %v89
      %2285 = vmatprep.subr.mxu0 0.0
      %2286 = vmatpush2.msra.mxu0 0.0
      %2287 = vmatprep.subr.mxu0 0.0
      %2288 = vmatpush2.msra.mxu0 0.0
      %2289 = vmatprep.subr.mxu0 0.0
      %2290 = vmatpush2.msra.mxu0 0.0
      %2291 = vmatprep.subr.mxu0 0.0
      %2292 = vmatpush2.msra.mxu0 0.0
      %2293 = vmatprep.subr.mxu0 0.0
      %2294 = vmatpush2.msra.mxu0 0.0
      %2295 = vmatprep.subr.mxu0 0.0
      %2296 = vmatpush2.msra.mxu0 0.0
      %2297 = vmatprep.subr.mxu0 0.0
      %2298 = vmatpush2.msra.mxu0 0.0
      %2299 = vmatprep.subr.mxu0 0.0
      %2300 = vmatpush2.msra.mxu0 0.0
      %2301 = vmatprep.subr.mxu0 0.0
      %2302 = vmatpush2.msra.mxu0 0.0
      %2303 = vmatprep.subr.mxu0 0.0
      %2304 = vmatpush2.msra.mxu0 0.0
      %2305 = vmatprep.subr.mxu0 0.0
      %2306 = vmatpush2.msra.mxu0 0.0
      %2307 = vmatprep.subr.mxu0 0.0
      %2308 = vmatpush2.msra.mxu0 0.0
      %2309 = vmatprep.subr.mxu0 0.0
      %2310 = vmatpush2.msra.mxu0 0.0
      %2311 = vmatprep.subr.mxu0 0.0
      %2312 = vmatpush2.msra.mxu0 0.0
      %2313 = vmatprep.subr.mxu0 0.0
      %2314 = vmatpush2.msra.mxu0 0.0
      %2315 = vmatprep.subr.mxu0 0.0
      %2316 = vmatpush2.msra.mxu0 0.0
      %2317 = vmatprep.mubr.f32.mxu0 0.0
      %2318 = vmatmul.mubr.f32.gmra.mxu0 %v2252
      %v2319 = vpop.f32.mrf.mxu0
      %v2320 = vadd.f32 %v62, %v2319
      %v2321 = vpop.f32.mrf.mxu0
      %2322 = vdwg.mxu0
      %v2323 = vtanh.pop %v2320
      %v2324 = vmul.f32 %v540, %v2250
      %v2325 = vadd.f32 %v1882, %v2324
      %2326 = vmatprep.subr.mxu0 0.0
      %2327 = vmatpush1.msra.mxu0 %v104
      %2328 = vmatprep.subr.mxu0 0.0
      %2329 = vmatpush1.msra.mxu0 %v103
      %2330 = vmatprep.subr.mxu0 0.0
      %2331 = vmatpush1.msra.mxu0 %v102
      %2332 = vmatprep.subr.mxu0 0.0
      %2333 = vmatpush1.msra.mxu0 %v101
      %2334 = vmatprep.subr.mxu0 0.0
      %2335 = vmatpush1.msra.mxu0 %v100
      %2336 = vmatprep.subr.mxu0 0.0
      %2337 = vmatpush1.msra.mxu0 %v99
      %2338 = vmatprep.subr.mxu0 0.0
      %2339 = vmatpush1.msra.mxu0 %v98
      %2340 = vmatprep.subr.mxu0 0.0
      %2341 = vmatpush1.msra.mxu0 %v97
      %2342 = vmatprep.subr.mxu0 0.0
      %2343 = vmatpush1.msra.mxu0 %v96
      %2344 = vmatprep.subr.mxu0 0.0
      %2345 = vmatpush1.msra.mxu0 %v95
      %2346 = vmatprep.subr.mxu0 0.0
      %2347 = vmatpush1.msra.mxu0 %v94
      %2348 = vmatprep.subr.mxu0 0.0
      %2349 = vmatpush1.msra.mxu0 %v93
      %2350 = vmatprep.subr.mxu0 0.0
      %2351 = vmatpush1.msra.mxu0 %v92
      %2352 = vmatprep.subr.mxu0 0.0
      %2353 = vmatpush1.msra.mxu0 %v91
      %2354 = vmatprep.subr.mxu0 0.0
      %2355 = vmatpush1.msra.mxu0 %v90
      %2356 = vmatprep.subr.mxu0 0.0
      %2357 = vmatpush1.msra.mxu0 %v89
      %2358 = vmatprep.subr.mxu0 0.0
      %2359 = vmatpush2.msra.mxu0 0.0
      %2360 = vmatprep.subr.mxu0 0.0
      %2361 = vmatpush2.msra.mxu0 0.0
      %2362 = vmatprep.subr.mxu0 0.0
      %2363 = vmatpush2.msra.mxu0 0.0
      %2364 = vmatprep.subr.mxu0 0.0
      %2365 = vmatpush2.msra.mxu0 0.0
      %2366 = vmatprep.subr.mxu0 0.0
      %2367 = vmatpush2.msra.mxu0 0.0
      %2368 = vmatprep.subr.mxu0 0.0
      %2369 = vmatpush2.msra.mxu0 0.0
      %2370 = vmatprep.subr.mxu0 0.0
      %2371 = vmatpush2.msra.mxu0 0.0
      %2372 = vmatprep.subr.mxu0 0.0
      %2373 = vmatpush2.msra.mxu0 0.0
      %2374 = vmatprep.subr.mxu0 0.0
      %2375 = vmatpush2.msra.mxu0 0.0
      %2376 = vmatprep.subr.mxu0 0.0
      %2377 = vmatpush2.msra.mxu0 0.0
      %2378 = vmatprep.subr.mxu0 0.0
      %2379 = vmatpush2.msra.mxu0 0.0
      %2380 = vmatprep.subr.mxu0 0.0
      %2381 = vmatpush2.msra.mxu0 0.0
      %2382 = vmatprep.subr.mxu0 0.0
      %2383 = vmatpush2.msra.mxu0 0.0
      %2384 = vmatprep.subr.mxu0 0.0
      %2385 = vmatpush2.msra.mxu0 0.0
      %2386 = vmatprep.subr.mxu0 0.0
      %2387 = vmatpush2.msra.mxu0 0.0
      %2388 = vmatprep.subr.mxu0 0.0
      %2389 = vmatpush2.msra.mxu0 0.0
      %2390 = vmatprep.mubr.f32.mxu0 0.0
      %2391 = vmatmul.mubr.f32.gmra.mxu0 %v2325
      %v2392 = vpop.f32.mrf.mxu0
      %v2393 = vadd.f32 %v62, %v2392
      %v2394 = vpop.f32.mrf.mxu0
      %2395 = vdwg.mxu0
      %v2396 = vtanh.pop %v2393
      %v2397 = vmul.f32 %v540, %v2323
      %v2398 = vadd.f32 %v1889, %v2397
      %2399 = vmatprep.subr.mxu0 0.0
      %2400 = vmatpush1.msra.mxu0 %v104
      %2401 = vmatprep.subr.mxu0 0.0
      %2402 = vmatpush1.msra.mxu0 %v103
      %2403 = vmatprep.subr.mxu0 0.0
      %2404 = vmatpush1.msra.mxu0 %v102
      %2405 = vmatprep.subr.mxu0 0.0
      %2406 = vmatpush1.msra.mxu0 %v101
      %2407 = vmatprep.subr.mxu0 0.0
      %2408 = vmatpush1.msra.mxu0 %v100
      %2409 = vmatprep.subr.mxu0 0.0
      %2410 = vmatpush1.msra.mxu0 %v99
      %2411 = vmatprep.subr.mxu0 0.0
      %2412 = vmatpush1.msra.mxu0 %v98
      %2413 = vmatprep.subr.mxu0 0.0
      %2414 = vmatpush1.msra.mxu0 %v97
      %2415 = vmatprep.subr.mxu0 0.0
      %2416 = vmatpush1.msra.mxu0 %v96
      %2417 = vmatprep.subr.mxu0 0.0
      %2418 = vmatpush1.msra.mxu0 %v95
      %2419 = vmatprep.subr.mxu0 0.0
      %2420 = vmatpush1.msra.mxu0 %v94
      %2421 = vmatprep.subr.mxu0 0.0
      %2422 = vmatpush1.msra.mxu0 %v93
      %2423 = vmatprep.subr.mxu0 0.0
      %2424 = vmatpush1.msra.mxu0 %v92
      %2425 = vmatprep.subr.mxu0 0.0
      %2426 = vmatpush1.msra.mxu0 %v91
      %2427 = vmatprep.subr.mxu0 0.0
      %2428 = vmatpush1.msra.mxu0 %v90
      %2429 = vmatprep.subr.mxu0 0.0
      %2430 = vmatpush1.msra.mxu0 %v89
      %2431 = vmatprep.subr.mxu0 0.0
      %2432 = vmatpush2.msra.mxu0 0.0
      %2433 = vmatprep.subr.mxu0 0.0
      %2434 = vmatpush2.msra.mxu0 0.0
      %2435 = vmatprep.subr.mxu0 0.0
      %2436 = vmatpush2.msra.mxu0 0.0
      %2437 = vmatprep.subr.mxu0 0.0
      %2438 = vmatpush2.msra.mxu0 0.0
      %2439 = vmatprep.subr.mxu0 0.0
      %2440 = vmatpush2.msra.mxu0 0.0
      %2441 = vmatprep.subr.mxu0 0.0
      %2442 = vmatpush2.msra.mxu0 0.0
      %2443 = vmatprep.subr.mxu0 0.0
      %2444 = vmatpush2.msra.mxu0 0.0
      %2445 = vmatprep.subr.mxu0 0.0
      %2446 = vmatpush2.msra.mxu0 0.0
      %2447 = vmatprep.subr.mxu0 0.0
      %2448 = vmatpush2.msra.mxu0 0.0
      %2449 = vmatprep.subr.mxu0 0.0
      %2450 = vmatpush2.msra.mxu0 0.0
      %2451 = vmatprep.subr.mxu0 0.0
      %2452 = vmatpush2.msra.mxu0 0.0
      %2453 = vmatprep.subr.mxu0 0.0
      %2454 = vmatpush2.msra.mxu0 0.0
      %2455 = vmatprep.subr.mxu0 0.0
      %2456 = vmatpush2.msra.mxu0 0.0
      %2457 = vmatprep.subr.mxu0 0.0
      %2458 = vmatpush2.msra.mxu0 0.0
      %2459 = vmatprep.subr.mxu0 0.0
      %2460 = vmatpush2.msra.mxu0 0.0
      %2461 = vmatprep.subr.mxu0 0.0
      %2462 = vmatpush2.msra.mxu0 0.0
      %2463 = vmatprep.mubr.f32.mxu0 0.0
      %2464 = vmatmul.mubr.f32.gmra.mxu0 %v2398
      %v2465 = vpop.f32.mrf.mxu0
      %v2466 = vadd.f32 %v62, %v2465
      %v2467 = vpop.f32.mrf.mxu0
      %2468 = vdwg.mxu0
      %v2469 = vtanh.pop %v2466
      %v2470 = vmul.f32 %v2104, 2.0
      %v2471 = vadd.f32 %v1960, %v2470
      %v2472 = vmul.f32 %v2250, 2.0
      %v2473 = vadd.f32 %v2471, %v2472
      %v2474 = vadd.f32 %v2473, %v2396
      %v2475 = vmul.f32 %v692, %v2474
      %v2476 = vadd.f32 %v1882, %v2475
      %v2477 = vmul.f32 %v2177, 2.0
      %v2478 = vadd.f32 %v2031, %v2477
      %v2479 = vmul.f32 %v2323, 2.0
      %v2480 = vadd.f32 %v2478, %v2479
      %v2481 = vadd.f32 %v2480, %v2469
      %v2482 = vmul.f32 %v692, %v2481
      %v2483 = vadd.f32 %v1889, %v2482
      %2484 = vmatprep.subr.mxu0 0.0
      %2485 = vmatpush1.msra.mxu0 %v104
      %2486 = vmatprep.subr.mxu0 0.0
      %2487 = vmatpush1.msra.mxu0 %v103
      %2488 = vmatprep.subr.mxu0 0.0
      %2489 = vmatpush1.msra.mxu0 %v102
      %2490 = vmatprep.subr.mxu0 0.0
      %2491 = vmatpush1.msra.mxu0 %v101
      %2492 = vmatprep.subr.mxu0 0.0
      %2493 = vmatpush1.msra.mxu0 %v100
      %2494 = vmatprep.subr.mxu0 0.0
      %2495 = vmatpush1.msra.mxu0 %v99
      %2496 = vmatprep.subr.mxu0 0.0
      %2497 = vmatpush1.msra.mxu0 %v98
      %2498 = vmatprep.subr.mxu0 0.0
      %2499 = vmatpush1.msra.mxu0 %v97
      %2500 = vmatprep.subr.mxu0 0.0
      %2501 = vmatpush1.msra.mxu0 %v96
      %2502 = vmatprep.subr.mxu0 0.0
      %2503 = vmatpush1.msra.mxu0 %v95
      %2504 = vmatprep.subr.mxu0 0.0
      %2505 = vmatpush1.msra.mxu0 %v94
      %2506 = vmatprep.subr.mxu0 0.0
      %2507 = vmatpush1.msra.mxu0 %v93
      %2508 = vmatprep.subr.mxu0 0.0
      %2509 = vmatpush1.msra.mxu0 %v92
      %2510 = vmatprep.subr.mxu0 0.0
      %2511 = vmatpush1.msra.mxu0 %v91
      %2512 = vmatprep.subr.mxu0 0.0
      %2513 = vmatpush1.msra.mxu0 %v90
      %2514 = vmatprep.subr.mxu0 0.0
      %2515 = vmatpush1.msra.mxu0 %v89
      %2516 = vmatprep.subr.mxu0 0.0
      %2517 = vmatpush2.msra.mxu0 0.0
      %2518 = vmatprep.subr.mxu0 0.0
      %2519 = vmatpush2.msra.mxu0 0.0
      %2520 = vmatprep.subr.mxu0 0.0
      %2521 = vmatpush2.msra.mxu0 0.0
      %2522 = vmatprep.subr.mxu0 0.0
      %2523 = vmatpush2.msra.mxu0 0.0
      %2524 = vmatprep.subr.mxu0 0.0
      %2525 = vmatpush2.msra.mxu0 0.0
      %2526 = vmatprep.subr.mxu0 0.0
      %2527 = vmatpush2.msra.mxu0 0.0
      %2528 = vmatprep.subr.mxu0 0.0
      %2529 = vmatpush2.msra.mxu0 0.0
      %2530 = vmatprep.subr.mxu0 0.0
      %2531 = vmatpush2.msra.mxu0 0.0
      %2532 = vmatprep.subr.mxu0 0.0
      %2533 = vmatpush2.msra.mxu0 0.0
      %2534 = vmatprep.subr.mxu0 0.0
      %2535 = vmatpush2.msra.mxu0 0.0
      %2536 = vmatprep.subr.mxu0 0.0
      %2537 = vmatpush2.msra.mxu0 0.0
      %2538 = vmatprep.subr.mxu0 0.0
      %2539 = vmatpush2.msra.mxu0 0.0
      %2540 = vmatprep.subr.mxu0 0.0
      %2541 = vmatpush2.msra.mxu0 0.0
      %2542 = vmatprep.subr.mxu0 0.0
      %2543 = vmatpush2.msra.mxu0 0.0
      %2544 = vmatprep.subr.mxu0 0.0
      %2545 = vmatpush2.msra.mxu0 0.0
      %2546 = vmatprep.subr.mxu0 0.0
      %2547 = vmatpush2.msra.mxu0 0.0
      %2548 = vmatprep.mubr.f32.mxu0 0.0
      %2549 = vmatmul.mubr.f32.gmra.mxu0 %v2476
      %v2550 = vpop.f32.mrf.mxu0
      %v2551 = vadd.f32 %v62, %v2550
      %v2552 = vpop.f32.mrf.mxu0
      %2553 = vdwg.mxu0
      %v2554 = vtanh.pop %v2551
      %2555 = vmatprep.subr.mxu0 0.0
      %2556 = vmatpush1.msra.mxu0 %v104
      %2557 = vmatprep.subr.mxu0 0.0
      %2558 = vmatpush1.msra.mxu0 %v103
      %2559 = vmatprep.subr.mxu0 0.0
      %2560 = vmatpush1.msra.mxu0 %v102
      %2561 = vmatprep.subr.mxu0 0.0
      %2562 = vmatpush1.msra.mxu0 %v101
      %2563 = vmatprep.subr.mxu0 0.0
      %2564 = vmatpush1.msra.mxu0 %v100
      %2565 = vmatprep.subr.mxu0 0.0
      %2566 = vmatpush1.msra.mxu0 %v99
      %2567 = vmatprep.subr.mxu0 0.0
      %2568 = vmatpush1.msra.mxu0 %v98
      %2569 = vmatprep.subr.mxu0 0.0
      %2570 = vmatpush1.msra.mxu0 %v97
      %2571 = vmatprep.subr.mxu0 0.0
      %2572 = vmatpush1.msra.mxu0 %v96
      %2573 = vmatprep.subr.mxu0 0.0
      %2574 = vmatpush1.msra.mxu0 %v95
      %2575 = vmatprep.subr.mxu0 0.0
      %2576 = vmatpush1.msra.mxu0 %v94
      %2577 = vmatprep.subr.mxu0 0.0
      %2578 = vmatpush1.msra.mxu0 %v93
      %2579 = vmatprep.subr.mxu0 0.0
      %2580 = vmatpush1.msra.mxu0 %v92
      %2581 = vmatprep.subr.mxu0 0.0
      %2582 = vmatpush1.msra.mxu0 %v91
      %2583 = vmatprep.subr.mxu0 0.0
      %2584 = vmatpush1.msra.mxu0 %v90
      %2585 = vmatprep.subr.mxu0 0.0
      %2586 = vmatpush1.msra.mxu0 %v89
      %2587 = vmatprep.subr.mxu0 0.0
      %2588 = vmatpush2.msra.mxu0 0.0
      %2589 = vmatprep.subr.mxu0 0.0
      %2590 = vmatpush2.msra.mxu0 0.0
      %2591 = vmatprep.subr.mxu0 0.0
      %2592 = vmatpush2.msra.mxu0 0.0
      %2593 = vmatprep.subr.mxu0 0.0
      %2594 = vmatpush2.msra.mxu0 0.0
      %2595 = vmatprep.subr.mxu0 0.0
      %2596 = vmatpush2.msra.mxu0 0.0
      %2597 = vmatprep.subr.mxu0 0.0
      %2598 = vmatpush2.msra.mxu0 0.0
      %2599 = vmatprep.subr.mxu0 0.0
      %2600 = vmatpush2.msra.mxu0 0.0
      %2601 = vmatprep.subr.mxu0 0.0
      %2602 = vmatpush2.msra.mxu0 0.0
      %2603 = vmatprep.subr.mxu0 0.0
      %2604 = vmatpush2.msra.mxu0 0.0
      %2605 = vmatprep.subr.mxu0 0.0
      %2606 = vmatpush2.msra.mxu0 0.0
      %2607 = vmatprep.subr.mxu0 0.0
      %2608 = vmatpush2.msra.mxu0 0.0
      %2609 = vmatprep.subr.mxu0 0.0
      %2610 = vmatpush2.msra.mxu0 0.0
      %2611 = vmatprep.subr.mxu0 0.0
      %2612 = vmatpush2.msra.mxu0 0.0
      %2613 = vmatprep.subr.mxu0 0.0
      %2614 = vmatpush2.msra.mxu0 0.0
      %2615 = vmatprep.subr.mxu0 0.0
      %2616 = vmatpush2.msra.mxu0 0.0
      %2617 = vmatprep.subr.mxu0 0.0
      %2618 = vmatpush2.msra.mxu0 0.0
      %2619 = vmatprep.mubr.f32.mxu0 0.0
      %2620 = vmatmul.mubr.f32.gmra.mxu0 %v2483
      %v2621 = vpop.f32.mrf.mxu0
      %v2622 = vadd.f32 %v62, %v2621
      %v2623 = vpop.f32.mrf.mxu0
      %2624 = vdwg.mxu0
      %v2625 = vtanh.pop %v2622
      %v2626 = vmul.f32 %v247, %v2554
      %v2627 = vadd.f32 %v2476, %v2626
      %2628 = vmatprep.subr.mxu0 0.0
      %2629 = vmatpush1.msra.mxu0 %v104
      %2630 = vmatprep.subr.mxu0 0.0
      %2631 = vmatpush1.msra.mxu0 %v103
      %2632 = vmatprep.subr.mxu0 0.0
      %2633 = vmatpush1.msra.mxu0 %v102
      %2634 = vmatprep.subr.mxu0 0.0
      %2635 = vmatpush1.msra.mxu0 %v101
      %2636 = vmatprep.subr.mxu0 0.0
      %2637 = vmatpush1.msra.mxu0 %v100
      %2638 = vmatprep.subr.mxu0 0.0
      %2639 = vmatpush1.msra.mxu0 %v99
      %2640 = vmatprep.subr.mxu0 0.0
      %2641 = vmatpush1.msra.mxu0 %v98
      %2642 = vmatprep.subr.mxu0 0.0
      %2643 = vmatpush1.msra.mxu0 %v97
      %2644 = vmatprep.subr.mxu0 0.0
      %2645 = vmatpush1.msra.mxu0 %v96
      %2646 = vmatprep.subr.mxu0 0.0
      %2647 = vmatpush1.msra.mxu0 %v95
      %2648 = vmatprep.subr.mxu0 0.0
      %2649 = vmatpush1.msra.mxu0 %v94
      %2650 = vmatprep.subr.mxu0 0.0
      %2651 = vmatpush1.msra.mxu0 %v93
      %2652 = vmatprep.subr.mxu0 0.0
      %2653 = vmatpush1.msra.mxu0 %v92
      %2654 = vmatprep.subr.mxu0 0.0
      %2655 = vmatpush1.msra.mxu0 %v91
      %2656 = vmatprep.subr.mxu0 0.0
      %2657 = vmatpush1.msra.mxu0 %v90
      %2658 = vmatprep.subr.mxu0 0.0
      %2659 = vmatpush1.msra.mxu0 %v89
      %2660 = vmatprep.subr.mxu0 0.0
      %2661 = vmatpush2.msra.mxu0 0.0
      %2662 = vmatprep.subr.mxu0 0.0
      %2663 = vmatpush2.msra.mxu0 0.0
      %2664 = vmatprep.subr.mxu0 0.0
      %2665 = vmatpush2.msra.mxu0 0.0
      %2666 = vmatprep.subr.mxu0 0.0
      %2667 = vmatpush2.msra.mxu0 0.0
      %2668 = vmatprep.subr.mxu0 0.0
      %2669 = vmatpush2.msra.mxu0 0.0
      %2670 = vmatprep.subr.mxu0 0.0
      %2671 = vmatpush2.msra.mxu0 0.0
      %2672 = vmatprep.subr.mxu0 0.0
      %2673 = vmatpush2.msra.mxu0 0.0
      %2674 = vmatprep.subr.mxu0 0.0
      %2675 = vmatpush2.msra.mxu0 0.0
      %2676 = vmatprep.subr.mxu0 0.0
      %2677 = vmatpush2.msra.mxu0 0.0
      %2678 = vmatprep.subr.mxu0 0.0
      %2679 = vmatpush2.msra.mxu0 0.0
      %2680 = vmatprep.subr.mxu0 0.0
      %2681 = vmatpush2.msra.mxu0 0.0
      %2682 = vmatprep.subr.mxu0 0.0
      %2683 = vmatpush2.msra.mxu0 0.0
      %2684 = vmatprep.subr.mxu0 0.0
      %2685 = vmatpush2.msra.mxu0 0.0
      %2686 = vmatprep.subr.mxu0 0.0
      %2687 = vmatpush2.msra.mxu0 0.0
      %2688 = vmatprep.subr.mxu0 0.0
      %2689 = vmatpush2.msra.mxu0 0.0
      %2690 = vmatprep.subr.mxu0 0.0
      %2691 = vmatpush2.msra.mxu0 0.0
      %2692 = vmatprep.mubr.f32.mxu0 0.0
      %2693 = vmatmul.mubr.f32.gmra.mxu0 %v2627
      %v2694 = vpop.f32.mrf.mxu0
      %v2695 = vadd.f32 %v62, %v2694
      %v2696 = vpop.f32.mrf.mxu0
      %2697 = vdwg.mxu0
      %v2698 = vtanh.pop %v2695
      %v2699 = vmul.f32 %v247, %v2625
      %v2700 = vadd.f32 %v2483, %v2699
      %2701 = vmatprep.subr.mxu0 0.0
      %2702 = vmatpush1.msra.mxu0 %v104
      %2703 = vmatprep.subr.mxu0 0.0
      %2704 = vmatpush1.msra.mxu0 %v103
      %2705 = vmatprep.subr.mxu0 0.0
      %2706 = vmatpush1.msra.mxu0 %v102
      %2707 = vmatprep.subr.mxu0 0.0
      %2708 = vmatpush1.msra.mxu0 %v101
      %2709 = vmatprep.subr.mxu0 0.0
      %2710 = vmatpush1.msra.mxu0 %v100
      %2711 = vmatprep.subr.mxu0 0.0
      %2712 = vmatpush1.msra.mxu0 %v99
      %2713 = vmatprep.subr.mxu0 0.0
      %2714 = vmatpush1.msra.mxu0 %v98
      %2715 = vmatprep.subr.mxu0 0.0
      %2716 = vmatpush1.msra.mxu0 %v97
      %2717 = vmatprep.subr.mxu0 0.0
      %2718 = vmatpush1.msra.mxu0 %v96
      %2719 = vmatprep.subr.mxu0 0.0
      %2720 = vmatpush1.msra.mxu0 %v95
      %2721 = vmatprep.subr.mxu0 0.0
      %2722 = vmatpush1.msra.mxu0 %v94
      %2723 = vmatprep.subr.mxu0 0.0
      %2724 = vmatpush1.msra.mxu0 %v93
      %2725 = vmatprep.subr.mxu0 0.0
      %2726 = vmatpush1.msra.mxu0 %v92
      %2727 = vmatprep.subr.mxu0 0.0
      %2728 = vmatpush1.msra.mxu0 %v91
      %2729 = vmatprep.subr.mxu0 0.0
      %2730 = vmatpush1.msra.mxu0 %v90
      %2731 = vmatprep.subr.mxu0 0.0
      %2732 = vmatpush1.msra.mxu0 %v89
      %2733 = vmatprep.subr.mxu0 0.0
      %2734 = vmatpush2.msra.mxu0 0.0
      %2735 = vmatprep.subr.mxu0 0.0
      %2736 = vmatpush2.msra.mxu0 0.0
      %2737 = vmatprep.subr.mxu0 0.0
      %2738 = vmatpush2.msra.mxu0 0.0
      %2739 = vmatprep.subr.mxu0 0.0
      %2740 = vmatpush2.msra.mxu0 0.0
      %2741 = vmatprep.subr.mxu0 0.0
      %2742 = vmatpush2.msra.mxu0 0.0
      %2743 = vmatprep.subr.mxu0 0.0
      %2744 = vmatpush2.msra.mxu0 0.0
      %2745 = vmatprep.subr.mxu0 0.0
      %2746 = vmatpush2.msra.mxu0 0.0
      %2747 = vmatprep.subr.mxu0 0.0
      %2748 = vmatpush2.msra.mxu0 0.0
      %2749 = vmatprep.subr.mxu0 0.0
      %2750 = vmatpush2.msra.mxu0 0.0
      %2751 = vmatprep.subr.mxu0 0.0
      %2752 = vmatpush2.msra.mxu0 0.0
      %2753 = vmatprep.subr.mxu0 0.0
      %2754 = vmatpush2.msra.mxu0 0.0
      %2755 = vmatprep.subr.mxu0 0.0
      %2756 = vmatpush2.msra.mxu0 0.0
      %2757 = vmatprep.subr.mxu0 0.0
      %2758 = vmatpush2.msra.mxu0 0.0
      %2759 = vmatprep.subr.mxu0 0.0
      %2760 = vmatpush2.msra.mxu0 0.0
      %2761 = vmatprep.subr.mxu0 0.0
      %2762 = vmatpush2.msra.mxu0 0.0
      %2763 = vmatprep.subr.mxu0 0.0
      %2764 = vmatpush2.msra.mxu0 0.0
      %2765 = vmatprep.mubr.f32.mxu0 0.0
      %2766 = vmatmul.mubr.f32.gmra.mxu0 %v2700
      %v2767 = vpop.f32.mrf.mxu0
      %v2768 = vadd.f32 %v62, %v2767
      %v2769 = vpop.f32.mrf.mxu0
      %2770 = vdwg.mxu0
      %v2771 = vtanh.pop %v2768
      %v2772 = vmul.f32 %v247, %v2698
      %v2773 = vadd.f32 %v2476, %v2772
      %2774 = vmatprep.subr.mxu0 0.0
      %2775 = vmatpush1.msra.mxu0 %v104
      %2776 = vmatprep.subr.mxu0 0.0
      %2777 = vmatpush1.msra.mxu0 %v103
      %2778 = vmatprep.subr.mxu0 0.0
      %2779 = vmatpush1.msra.mxu0 %v102
      %2780 = vmatprep.subr.mxu0 0.0
      %2781 = vmatpush1.msra.mxu0 %v101
      %2782 = vmatprep.subr.mxu0 0.0
      %2783 = vmatpush1.msra.mxu0 %v100
      %2784 = vmatprep.subr.mxu0 0.0
      %2785 = vmatpush1.msra.mxu0 %v99
      %2786 = vmatprep.subr.mxu0 0.0
      %2787 = vmatpush1.msra.mxu0 %v98
      %2788 = vmatprep.subr.mxu0 0.0
      %2789 = vmatpush1.msra.mxu0 %v97
      %2790 = vmatprep.subr.mxu0 0.0
      %2791 = vmatpush1.msra.mxu0 %v96
      %2792 = vmatprep.subr.mxu0 0.0
      %2793 = vmatpush1.msra.mxu0 %v95
      %2794 = vmatprep.subr.mxu0 0.0
      %2795 = vmatpush1.msra.mxu0 %v94
      %2796 = vmatprep.subr.mxu0 0.0
      %2797 = vmatpush1.msra.mxu0 %v93
      %2798 = vmatprep.subr.mxu0 0.0
      %2799 = vmatpush1.msra.mxu0 %v92
      %2800 = vmatprep.subr.mxu0 0.0
      %2801 = vmatpush1.msra.mxu0 %v91
      %2802 = vmatprep.subr.mxu0 0.0
      %2803 = vmatpush1.msra.mxu0 %v90
      %2804 = vmatprep.subr.mxu0 0.0
      %2805 = vmatpush1.msra.mxu0 %v89
      %2806 = vmatprep.subr.mxu0 0.0
      %2807 = vmatpush2.msra.mxu0 0.0
      %2808 = vmatprep.subr.mxu0 0.0
      %2809 = vmatpush2.msra.mxu0 0.0
      %2810 = vmatprep.subr.mxu0 0.0
      %2811 = vmatpush2.msra.mxu0 0.0
      %2812 = vmatprep.subr.mxu0 0.0
      %2813 = vmatpush2.msra.mxu0 0.0
      %2814 = vmatprep.subr.mxu0 0.0
      %2815 = vmatpush2.msra.mxu0 0.0
      %2816 = vmatprep.subr.mxu0 0.0
      %2817 = vmatpush2.msra.mxu0 0.0
      %2818 = vmatprep.subr.mxu0 0.0
      %2819 = vmatpush2.msra.mxu0 0.0
      %2820 = vmatprep.subr.mxu0 0.0
      %2821 = vmatpush2.msra.mxu0 0.0
      %2822 = vmatprep.subr.mxu0 0.0
      %2823 = vmatpush2.msra.mxu0 0.0
      %2824 = vmatprep.subr.mxu0 0.0
      %2825 = vmatpush2.msra.mxu0 0.0
      %2826 = vmatprep.subr.mxu0 0.0
      %2827 = vmatpush2.msra.mxu0 0.0
      %2828 = vmatprep.subr.mxu0 0.0
      %2829 = vmatpush2.msra.mxu0 0.0
      %2830 = vmatprep.subr.mxu0 0.0
      %2831 = vmatpush2.msra.mxu0 0.0
      %2832 = vmatprep.subr.mxu0 0.0
      %2833 = vmatpush2.msra.mxu0 0.0
      %2834 = vmatprep.subr.mxu0 0.0
      %2835 = vmatpush2.msra.mxu0 0.0
      %2836 = vmatprep.subr.mxu0 0.0
      %2837 = vmatpush2.msra.mxu0 0.0
      %2838 = vmatprep.mubr.f32.mxu0 0.0
      %2839 = vmatmul.mubr.f32.gmra.mxu0 %v2773
      %v2840 = vpop.f32.mrf.mxu0
      %v2841 = vadd.f32 %v62, %v2840
      %v2842 = vpop.f32.mrf.mxu0
      %2843 = vdwg.mxu0
      %v2844 = vtanh.pop %v2841
      %v2845 = vmul.f32 %v247, %v2771
      %v2846 = vadd.f32 %v2483, %v2845
      %2847 = vmatprep.subr.mxu0 0.0
      %2848 = vmatpush1.msra.mxu0 %v104
      %2849 = vmatprep.subr.mxu0 0.0
      %2850 = vmatpush1.msra.mxu0 %v103
      %2851 = vmatprep.subr.mxu0 0.0
      %2852 = vmatpush1.msra.mxu0 %v102
      %2853 = vmatprep.subr.mxu0 0.0
      %2854 = vmatpush1.msra.mxu0 %v101
      %2855 = vmatprep.subr.mxu0 0.0
      %2856 = vmatpush1.msra.mxu0 %v100
      %2857 = vmatprep.subr.mxu0 0.0
      %2858 = vmatpush1.msra.mxu0 %v99
      %2859 = vmatprep.subr.mxu0 0.0
      %2860 = vmatpush1.msra.mxu0 %v98
      %2861 = vmatprep.subr.mxu0 0.0
      %2862 = vmatpush1.msra.mxu0 %v97
      %2863 = vmatprep.subr.mxu0 0.0
      %2864 = vmatpush1.msra.mxu0 %v96
      %2865 = vmatprep.subr.mxu0 0.0
      %2866 = vmatpush1.msra.mxu0 %v95
      %2867 = vmatprep.subr.mxu0 0.0
      %2868 = vmatpush1.msra.mxu0 %v94
      %2869 = vmatprep.subr.mxu0 0.0
      %2870 = vmatpush1.msra.mxu0 %v93
      %2871 = vmatprep.subr.mxu0 0.0
      %2872 = vmatpush1.msra.mxu0 %v92
      %2873 = vmatprep.subr.mxu0 0.0
      %2874 = vmatpush1.msra.mxu0 %v91
      %2875 = vmatprep.subr.mxu0 0.0
      %2876 = vmatpush1.msra.mxu0 %v90
      %2877 = vmatprep.subr.mxu0 0.0
      %2878 = vmatpush1.msra.mxu0 %v89
      %2879 = vmatprep.subr.mxu0 0.0
      %2880 = vmatpush2.msra.mxu0 0.0
      %2881 = vmatprep.subr.mxu0 0.0
      %2882 = vmatpush2.msra.mxu0 0.0
      %2883 = vmatprep.subr.mxu0 0.0
      %2884 = vmatpush2.msra.mxu0 0.0
      %2885 = vmatprep.subr.mxu0 0.0
      %2886 = vmatpush2.msra.mxu0 0.0
      %2887 = vmatprep.subr.mxu0 0.0
      %2888 = vmatpush2.msra.mxu0 0.0
      %2889 = vmatprep.subr.mxu0 0.0
      %2890 = vmatpush2.msra.mxu0 0.0
      %2891 = vmatprep.subr.mxu0 0.0
      %2892 = vmatpush2.msra.mxu0 0.0
      %2893 = vmatprep.subr.mxu0 0.0
      %2894 = vmatpush2.msra.mxu0 0.0
      %2895 = vmatprep.subr.mxu0 0.0
      %2896 = vmatpush2.msra.mxu0 0.0
      %2897 = vmatprep.subr.mxu0 0.0
      %2898 = vmatpush2.msra.mxu0 0.0
      %2899 = vmatprep.subr.mxu0 0.0
      %2900 = vmatpush2.msra.mxu0 0.0
      %2901 = vmatprep.subr.mxu0 0.0
      %2902 = vmatpush2.msra.mxu0 0.0
      %2903 = vmatprep.subr.mxu0 0.0
      %2904 = vmatpush2.msra.mxu0 0.0
      %2905 = vmatprep.subr.mxu0 0.0
      %2906 = vmatpush2.msra.mxu0 0.0
      %2907 = vmatprep.subr.mxu0 0.0
      %2908 = vmatpush2.msra.mxu0 0.0
      %2909 = vmatprep.subr.mxu0 0.0
      %2910 = vmatpush2.msra.mxu0 0.0
      %2911 = vmatprep.mubr.f32.mxu0 0.0
      %2912 = vmatmul.mubr.f32.gmra.mxu0 %v2846
      %v2913 = vpop.f32.mrf.mxu0
      %v2914 = vadd.f32 %v62, %v2913
      %v2915 = vpop.f32.mrf.mxu0
      %2916 = vdwg.mxu0
      %v2917 = vtanh.pop %v2914
      %v2918 = vmul.f32 %v540, %v2844
      %v2919 = vadd.f32 %v2476, %v2918
      %2920 = vmatprep.subr.mxu0 0.0
      %2921 = vmatpush1.msra.mxu0 %v104
      %2922 = vmatprep.subr.mxu0 0.0
      %2923 = vmatpush1.msra.mxu0 %v103
      %2924 = vmatprep.subr.mxu0 0.0
      %2925 = vmatpush1.msra.mxu0 %v102
      %2926 = vmatprep.subr.mxu0 0.0
      %2927 = vmatpush1.msra.mxu0 %v101
      %2928 = vmatprep.subr.mxu0 0.0
      %2929 = vmatpush1.msra.mxu0 %v100
      %2930 = vmatprep.subr.mxu0 0.0
      %2931 = vmatpush1.msra.mxu0 %v99
      %2932 = vmatprep.subr.mxu0 0.0
      %2933 = vmatpush1.msra.mxu0 %v98
      %2934 = vmatprep.subr.mxu0 0.0
      %2935 = vmatpush1.msra.mxu0 %v97
      %2936 = vmatprep.subr.mxu0 0.0
      %2937 = vmatpush1.msra.mxu0 %v96
      %2938 = vmatprep.subr.mxu0 0.0
      %2939 = vmatpush1.msra.mxu0 %v95
      %2940 = vmatprep.subr.mxu0 0.0
      %2941 = vmatpush1.msra.mxu0 %v94
      %2942 = vmatprep.subr.mxu0 0.0
      %2943 = vmatpush1.msra.mxu0 %v93
      %2944 = vmatprep.subr.mxu0 0.0
      %2945 = vmatpush1.msra.mxu0 %v92
      %2946 = vmatprep.subr.mxu0 0.0
      %2947 = vmatpush1.msra.mxu0 %v91
      %2948 = vmatprep.subr.mxu0 0.0
      %2949 = vmatpush1.msra.mxu0 %v90
      %2950 = vmatprep.subr.mxu0 0.0
      %2951 = vmatpush1.msra.mxu0 %v89
      %2952 = vmatprep.subr.mxu0 0.0
      %2953 = vmatpush2.msra.mxu0 0.0
      %2954 = vmatprep.subr.mxu0 0.0
      %2955 = vmatpush2.msra.mxu0 0.0
      %2956 = vmatprep.subr.mxu0 0.0
      %2957 = vmatpush2.msra.mxu0 0.0
      %2958 = vmatprep.subr.mxu0 0.0
      %2959 = vmatpush2.msra.mxu0 0.0
      %2960 = vmatprep.subr.mxu0 0.0
      %2961 = vmatpush2.msra.mxu0 0.0
      %2962 = vmatprep.subr.mxu0 0.0
      %2963 = vmatpush2.msra.mxu0 0.0
      %2964 = vmatprep.subr.mxu0 0.0
      %2965 = vmatpush2.msra.mxu0 0.0
      %2966 = vmatprep.subr.mxu0 0.0
      %2967 = vmatpush2.msra.mxu0 0.0
      %2968 = vmatprep.subr.mxu0 0.0
      %2969 = vmatpush2.msra.mxu0 0.0
      %2970 = vmatprep.subr.mxu0 0.0
      %2971 = vmatpush2.msra.mxu0 0.0
      %2972 = vmatprep.subr.mxu0 0.0
      %2973 = vmatpush2.msra.mxu0 0.0
      %2974 = vmatprep.subr.mxu0 0.0
      %2975 = vmatpush2.msra.mxu0 0.0
      %2976 = vmatprep.subr.mxu0 0.0
      %2977 = vmatpush2.msra.mxu0 0.0
      %2978 = vmatprep.subr.mxu0 0.0
      %2979 = vmatpush2.msra.mxu0 0.0
      %2980 = vmatprep.subr.mxu0 0.0
      %2981 = vmatpush2.msra.mxu0 0.0
      %2982 = vmatprep.subr.mxu0 0.0
      %2983 = vmatpush2.msra.mxu0 0.0
      %2984 = vmatprep.mubr.f32.mxu0 0.0
      %2985 = vmatmul.mubr.f32.gmra.mxu0 %v2919
      %v2986 = vpop.f32.mrf.mxu0
      %v2987 = vadd.f32 %v62, %v2986
      %v2988 = vpop.f32.mrf.mxu0
      %2989 = vdwg.mxu0
      %v2990 = vtanh.pop %v2987
      %v2991 = vmul.f32 %v540, %v2917
      %v2992 = vadd.f32 %v2483, %v2991
      %2993 = vmatprep.subr.mxu0 0.0
      %2994 = vmatpush1.msra.mxu0 %v104
      %2995 = vmatprep.subr.mxu0 0.0
      %2996 = vmatpush1.msra.mxu0 %v103
      %2997 = vmatprep.subr.mxu0 0.0
      %2998 = vmatpush1.msra.mxu0 %v102
      %2999 = vmatprep.subr.mxu0 0.0
      %3000 = vmatpush1.msra.mxu0 %v101
      %3001 = vmatprep.subr.mxu0 0.0
      %3002 = vmatpush1.msra.mxu0 %v100
      %3003 = vmatprep.subr.mxu0 0.0
      %3004 = vmatpush1.msra.mxu0 %v99
      %3005 = vmatprep.subr.mxu0 0.0
      %3006 = vmatpush1.msra.mxu0 %v98
      %3007 = vmatprep.subr.mxu0 0.0
      %3008 = vmatpush1.msra.mxu0 %v97
      %3009 = vmatprep.subr.mxu0 0.0
      %3010 = vmatpush1.msra.mxu0 %v96
      %3011 = vmatprep.subr.mxu0 0.0
      %3012 = vmatpush1.msra.mxu0 %v95
      %3013 = vmatprep.subr.mxu0 0.0
      %3014 = vmatpush1.msra.mxu0 %v94
      %3015 = vmatprep.subr.mxu0 0.0
      %3016 = vmatpush1.msra.mxu0 %v93
      %3017 = vmatprep.subr.mxu0 0.0
      %3018 = vmatpush1.msra.mxu0 %v92
      %3019 = vmatprep.subr.mxu0 0.0
      %3020 = vmatpush1.msra.mxu0 %v91
      %3021 = vmatprep.subr.mxu0 0.0
      %3022 = vmatpush1.msra.mxu0 %v90
      %3023 = vmatprep.subr.mxu0 0.0
      %3024 = vmatpush1.msra.mxu0 %v89
      %3025 = vmatprep.subr.mxu0 0.0
      %3026 = vmatpush2.msra.mxu0 0.0
      %3027 = vmatprep.subr.mxu0 0.0
      %3028 = vmatpush2.msra.mxu0 0.0
      %3029 = vmatprep.subr.mxu0 0.0
      %3030 = vmatpush2.msra.mxu0 0.0
      %3031 = vmatprep.subr.mxu0 0.0
      %3032 = vmatpush2.msra.mxu0 0.0
      %3033 = vmatprep.subr.mxu0 0.0
      %3034 = vmatpush2.msra.mxu0 0.0
      %3035 = vmatprep.subr.mxu0 0.0
      %3036 = vmatpush2.msra.mxu0 0.0
      %3037 = vmatprep.subr.mxu0 0.0
      %3038 = vmatpush2.msra.mxu0 0.0
      %3039 = vmatprep.subr.mxu0 0.0
      %3040 = vmatpush2.msra.mxu0 0.0
      %3041 = vmatprep.subr.mxu0 0.0
      %3042 = vmatpush2.msra.mxu0 0.0
      %3043 = vmatprep.subr.mxu0 0.0
      %3044 = vmatpush2.msra.mxu0 0.0
      %3045 = vmatprep.subr.mxu0 0.0
      %3046 = vmatpush2.msra.mxu0 0.0
      %3047 = vmatprep.subr.mxu0 0.0
      %3048 = vmatpush2.msra.mxu0 0.0
      %3049 = vmatprep.subr.mxu0 0.0
      %3050 = vmatpush2.msra.mxu0 0.0
      %3051 = vmatprep.subr.mxu0 0.0
      %3052 = vmatpush2.msra.mxu0 0.0
      %3053 = vmatprep.subr.mxu0 0.0
      %3054 = vmatpush2.msra.mxu0 0.0
      %3055 = vmatprep.subr.mxu0 0.0
      %3056 = vmatpush2.msra.mxu0 0.0
      %3057 = vmatprep.mubr.f32.mxu0 0.0
      %3058 = vmatmul.mubr.f32.gmra.mxu0 %v2992
      %v3059 = vpop.f32.mrf.mxu0
      %v3060 = vadd.f32 %v62, %v3059
      %v3061 = vpop.f32.mrf.mxu0
      %3062 = vdwg.mxu0
      %v3063 = vtanh.pop %v3060
      %v3064 = vmul.f32 %v2698, 2.0
      %v3065 = vadd.f32 %v2554, %v3064
      %v3066 = vmul.f32 %v2844, 2.0
      %v3067 = vadd.f32 %v3065, %v3066
      %v3068 = vadd.f32 %v3067, %v2990
      %v3069 = vmul.f32 %v692, %v3068
      %v3070 = vadd.f32 %v2476, %v3069
      %v3071 = vmul.f32 %v2771, 2.0
      %v3072 = vadd.f32 %v2625, %v3071
      %v3073 = vmul.f32 %v2917, 2.0
      %v3074 = vadd.f32 %v3072, %v3073
      %v3075 = vadd.f32 %v3074, %v3063
      %v3076 = vmul.f32 %v692, %v3075
      %v3077 = vadd.f32 %v2483, %v3076
      %3078 = vmatprep.subr.mxu0 0.0
      %3079 = vmatpush1.msra.mxu0 %v104
      %3080 = vmatprep.subr.mxu0 0.0
      %3081 = vmatpush1.msra.mxu0 %v103
      %3082 = vmatprep.subr.mxu0 0.0
      %3083 = vmatpush1.msra.mxu0 %v102
      %3084 = vmatprep.subr.mxu0 0.0
      %3085 = vmatpush1.msra.mxu0 %v101
      %3086 = vmatprep.subr.mxu0 0.0
      %3087 = vmatpush1.msra.mxu0 %v100
      %3088 = vmatprep.subr.mxu0 0.0
      %3089 = vmatpush1.msra.mxu0 %v99
      %3090 = vmatprep.subr.mxu0 0.0
      %3091 = vmatpush1.msra.mxu0 %v98
      %3092 = vmatprep.subr.mxu0 0.0
      %3093 = vmatpush1.msra.mxu0 %v97
      %3094 = vmatprep.subr.mxu0 0.0
      %3095 = vmatpush1.msra.mxu0 %v96
      %3096 = vmatprep.subr.mxu0 0.0
      %3097 = vmatpush1.msra.mxu0 %v95
      %3098 = vmatprep.subr.mxu0 0.0
      %3099 = vmatpush1.msra.mxu0 %v94
      %3100 = vmatprep.subr.mxu0 0.0
      %3101 = vmatpush1.msra.mxu0 %v93
      %3102 = vmatprep.subr.mxu0 0.0
      %3103 = vmatpush1.msra.mxu0 %v92
      %3104 = vmatprep.subr.mxu0 0.0
      %3105 = vmatpush1.msra.mxu0 %v91
      %3106 = vmatprep.subr.mxu0 0.0
      %3107 = vmatpush1.msra.mxu0 %v90
      %3108 = vmatprep.subr.mxu0 0.0
      %3109 = vmatpush1.msra.mxu0 %v89
      %3110 = vmatprep.subr.mxu0 0.0
      %3111 = vmatpush2.msra.mxu0 0.0
      %3112 = vmatprep.subr.mxu0 0.0
      %3113 = vmatpush2.msra.mxu0 0.0
      %3114 = vmatprep.subr.mxu0 0.0
      %3115 = vmatpush2.msra.mxu0 0.0
      %3116 = vmatprep.subr.mxu0 0.0
      %3117 = vmatpush2.msra.mxu0 0.0
      %3118 = vmatprep.subr.mxu0 0.0
      %3119 = vmatpush2.msra.mxu0 0.0
      %3120 = vmatprep.subr.mxu0 0.0
      %3121 = vmatpush2.msra.mxu0 0.0
      %3122 = vmatprep.subr.mxu0 0.0
      %3123 = vmatpush2.msra.mxu0 0.0
      %3124 = vmatprep.subr.mxu0 0.0
      %3125 = vmatpush2.msra.mxu0 0.0
      %3126 = vmatprep.subr.mxu0 0.0
      %3127 = vmatpush2.msra.mxu0 0.0
      %3128 = vmatprep.subr.mxu0 0.0
      %3129 = vmatpush2.msra.mxu0 0.0
      %3130 = vmatprep.subr.mxu0 0.0
      %3131 = vmatpush2.msra.mxu0 0.0
      %3132 = vmatprep.subr.mxu0 0.0
      %3133 = vmatpush2.msra.mxu0 0.0
      %3134 = vmatprep.subr.mxu0 0.0
      %3135 = vmatpush2.msra.mxu0 0.0
      %3136 = vmatprep.subr.mxu0 0.0
      %3137 = vmatpush2.msra.mxu0 0.0
      %3138 = vmatprep.subr.mxu0 0.0
      %3139 = vmatpush2.msra.mxu0 0.0
      %3140 = vmatprep.subr.mxu0 0.0
      %3141 = vmatpush2.msra.mxu0 0.0
      %3142 = vmatprep.mubr.f32.mxu0 0.0
      %3143 = vmatmul.mubr.f32.gmra.mxu0 %v3070
      %v3144 = vpop.f32.mrf.mxu0
      %v3145 = vadd.f32 %v62, %v3144
      %v3146 = vpop.f32.mrf.mxu0
      %3147 = vdwg.mxu0
      %v3148 = vtanh.pop %v3145
      %3149 = vmatprep.subr.mxu0 0.0
      %3150 = vmatpush1.msra.mxu0 %v104
      %3151 = vmatprep.subr.mxu0 0.0
      %3152 = vmatpush1.msra.mxu0 %v103
      %3153 = vmatprep.subr.mxu0 0.0
      %3154 = vmatpush1.msra.mxu0 %v102
      %3155 = vmatprep.subr.mxu0 0.0
      %3156 = vmatpush1.msra.mxu0 %v101
      %3157 = vmatprep.subr.mxu0 0.0
      %3158 = vmatpush1.msra.mxu0 %v100
      %3159 = vmatprep.subr.mxu0 0.0
      %3160 = vmatpush1.msra.mxu0 %v99
      %3161 = vmatprep.subr.mxu0 0.0
      %3162 = vmatpush1.msra.mxu0 %v98
      %3163 = vmatprep.subr.mxu0 0.0
      %3164 = vmatpush1.msra.mxu0 %v97
      %3165 = vmatprep.subr.mxu0 0.0
      %3166 = vmatpush1.msra.mxu0 %v96
      %3167 = vmatprep.subr.mxu0 0.0
      %3168 = vmatpush1.msra.mxu0 %v95
      %3169 = vmatprep.subr.mxu0 0.0
      %3170 = vmatpush1.msra.mxu0 %v94
      %3171 = vmatprep.subr.mxu0 0.0
      %3172 = vmatpush1.msra.mxu0 %v93
      %3173 = vmatprep.subr.mxu0 0.0
      %3174 = vmatpush1.msra.mxu0 %v92
      %3175 = vmatprep.subr.mxu0 0.0
      %3176 = vmatpush1.msra.mxu0 %v91
      %3177 = vmatprep.subr.mxu0 0.0
      %3178 = vmatpush1.msra.mxu0 %v90
      %3179 = vmatprep.subr.mxu0 0.0
      %3180 = vmatpush1.msra.mxu0 %v89
      %3181 = vmatprep.subr.mxu0 0.0
      %3182 = vmatpush2.msra.mxu0 0.0
      %3183 = vmatprep.subr.mxu0 0.0
      %3184 = vmatpush2.msra.mxu0 0.0
      %3185 = vmatprep.subr.mxu0 0.0
      %3186 = vmatpush2.msra.mxu0 0.0
      %3187 = vmatprep.subr.mxu0 0.0
      %3188 = vmatpush2.msra.mxu0 0.0
      %3189 = vmatprep.subr.mxu0 0.0
      %3190 = vmatpush2.msra.mxu0 0.0
      %3191 = vmatprep.subr.mxu0 0.0
      %3192 = vmatpush2.msra.mxu0 0.0
      %3193 = vmatprep.subr.mxu0 0.0
      %3194 = vmatpush2.msra.mxu0 0.0
      %3195 = vmatprep.subr.mxu0 0.0
      %3196 = vmatpush2.msra.mxu0 0.0
      %3197 = vmatprep.subr.mxu0 0.0
      %3198 = vmatpush2.msra.mxu0 0.0
      %3199 = vmatprep.subr.mxu0 0.0
      %3200 = vmatpush2.msra.mxu0 0.0
      %3201 = vmatprep.subr.mxu0 0.0
      %3202 = vmatpush2.msra.mxu0 0.0
      %3203 = vmatprep.subr.mxu0 0.0
      %3204 = vmatpush2.msra.mxu0 0.0
      %3205 = vmatprep.subr.mxu0 0.0
      %3206 = vmatpush2.msra.mxu0 0.0
      %3207 = vmatprep.subr.mxu0 0.0
      %3208 = vmatpush2.msra.mxu0 0.0
      %3209 = vmatprep.subr.mxu0 0.0
      %3210 = vmatpush2.msra.mxu0 0.0
      %3211 = vmatprep.subr.mxu0 0.0
      %3212 = vmatpush2.msra.mxu0 0.0
      %3213 = vmatprep.mubr.f32.mxu0 0.0
      %3214 = vmatmul.mubr.f32.gmra.mxu0 %v3077
      %v3215 = vpop.f32.mrf.mxu0
      %v3216 = vadd.f32 %v62, %v3215
      %v3217 = vpop.f32.mrf.mxu0
      %3218 = vdwg.mxu0
      %v3219 = vtanh.pop %v3216
      %v3220 = vmul.f32 %v247, %v3148
      %v3221 = vadd.f32 %v3070, %v3220
      %3222 = vmatprep.subr.mxu0 0.0
      %3223 = vmatpush1.msra.mxu0 %v104
      %3224 = vmatprep.subr.mxu0 0.0
      %3225 = vmatpush1.msra.mxu0 %v103
      %3226 = vmatprep.subr.mxu0 0.0
      %3227 = vmatpush1.msra.mxu0 %v102
      %3228 = vmatprep.subr.mxu0 0.0
      %3229 = vmatpush1.msra.mxu0 %v101
      %3230 = vmatprep.subr.mxu0 0.0
      %3231 = vmatpush1.msra.mxu0 %v100
      %3232 = vmatprep.subr.mxu0 0.0
      %3233 = vmatpush1.msra.mxu0 %v99
      %3234 = vmatprep.subr.mxu0 0.0
      %3235 = vmatpush1.msra.mxu0 %v98
      %3236 = vmatprep.subr.mxu0 0.0
      %3237 = vmatpush1.msra.mxu0 %v97
      %3238 = vmatprep.subr.mxu0 0.0
      %3239 = vmatpush1.msra.mxu0 %v96
      %3240 = vmatprep.subr.mxu0 0.0
      %3241 = vmatpush1.msra.mxu0 %v95
      %3242 = vmatprep.subr.mxu0 0.0
      %3243 = vmatpush1.msra.mxu0 %v94
      %3244 = vmatprep.subr.mxu0 0.0
      %3245 = vmatpush1.msra.mxu0 %v93
      %3246 = vmatprep.subr.mxu0 0.0
      %3247 = vmatpush1.msra.mxu0 %v92
      %3248 = vmatprep.subr.mxu0 0.0
      %3249 = vmatpush1.msra.mxu0 %v91
      %3250 = vmatprep.subr.mxu0 0.0
      %3251 = vmatpush1.msra.mxu0 %v90
      %3252 = vmatprep.subr.mxu0 0.0
      %3253 = vmatpush1.msra.mxu0 %v89
      %3254 = vmatprep.subr.mxu0 0.0
      %3255 = vmatpush2.msra.mxu0 0.0
      %3256 = vmatprep.subr.mxu0 0.0
      %3257 = vmatpush2.msra.mxu0 0.0
      %3258 = vmatprep.subr.mxu0 0.0
      %3259 = vmatpush2.msra.mxu0 0.0
      %3260 = vmatprep.subr.mxu0 0.0
      %3261 = vmatpush2.msra.mxu0 0.0
      %3262 = vmatprep.subr.mxu0 0.0
      %3263 = vmatpush2.msra.mxu0 0.0
      %3264 = vmatprep.subr.mxu0 0.0
      %3265 = vmatpush2.msra.mxu0 0.0
      %3266 = vmatprep.subr.mxu0 0.0
      %3267 = vmatpush2.msra.mxu0 0.0
      %3268 = vmatprep.subr.mxu0 0.0
      %3269 = vmatpush2.msra.mxu0 0.0
      %3270 = vmatprep.subr.mxu0 0.0
      %3271 = vmatpush2.msra.mxu0 0.0
      %3272 = vmatprep.subr.mxu0 0.0
      %3273 = vmatpush2.msra.mxu0 0.0
      %3274 = vmatprep.subr.mxu0 0.0
      %3275 = vmatpush2.msra.mxu0 0.0
      %3276 = vmatprep.subr.mxu0 0.0
      %3277 = vmatpush2.msra.mxu0 0.0
      %3278 = vmatprep.subr.mxu0 0.0
      %3279 = vmatpush2.msra.mxu0 0.0
      %3280 = vmatprep.subr.mxu0 0.0
      %3281 = vmatpush2.msra.mxu0 0.0
      %3282 = vmatprep.subr.mxu0 0.0
      %3283 = vmatpush2.msra.mxu0 0.0
      %3284 = vmatprep.subr.mxu0 0.0
      %3285 = vmatpush2.msra.mxu0 0.0
      %3286 = vmatprep.mubr.f32.mxu0 0.0
      %3287 = vmatmul.mubr.f32.gmra.mxu0 %v3221
      %v3288 = vpop.f32.mrf.mxu0
      %v3289 = vadd.f32 %v62, %v3288
      %v3290 = vpop.f32.mrf.mxu0
      %3291 = vdwg.mxu0
      %v3292 = vtanh.pop %v3289
      %v3293 = vmul.f32 %v247, %v3219
      %v3294 = vadd.f32 %v3077, %v3293
      %3295 = vmatprep.subr.mxu0 0.0
      %3296 = vmatpush1.msra.mxu0 %v104
      %3297 = vmatprep.subr.mxu0 0.0
      %3298 = vmatpush1.msra.mxu0 %v103
      %3299 = vmatprep.subr.mxu0 0.0
      %3300 = vmatpush1.msra.mxu0 %v102
      %3301 = vmatprep.subr.mxu0 0.0
      %3302 = vmatpush1.msra.mxu0 %v101
      %3303 = vmatprep.subr.mxu0 0.0
      %3304 = vmatpush1.msra.mxu0 %v100
      %3305 = vmatprep.subr.mxu0 0.0
      %3306 = vmatpush1.msra.mxu0 %v99
      %3307 = vmatprep.subr.mxu0 0.0
      %3308 = vmatpush1.msra.mxu0 %v98
      %3309 = vmatprep.subr.mxu0 0.0
      %3310 = vmatpush1.msra.mxu0 %v97
      %3311 = vmatprep.subr.mxu0 0.0
      %3312 = vmatpush1.msra.mxu0 %v96
      %3313 = vmatprep.subr.mxu0 0.0
      %3314 = vmatpush1.msra.mxu0 %v95
      %3315 = vmatprep.subr.mxu0 0.0
      %3316 = vmatpush1.msra.mxu0 %v94
      %3317 = vmatprep.subr.mxu0 0.0
      %3318 = vmatpush1.msra.mxu0 %v93
      %3319 = vmatprep.subr.mxu0 0.0
      %3320 = vmatpush1.msra.mxu0 %v92
      %3321 = vmatprep.subr.mxu0 0.0
      %3322 = vmatpush1.msra.mxu0 %v91
      %3323 = vmatprep.subr.mxu0 0.0
      %3324 = vmatpush1.msra.mxu0 %v90
      %3325 = vmatprep.subr.mxu0 0.0
      %3326 = vmatpush1.msra.mxu0 %v89
      %3327 = vmatprep.subr.mxu0 0.0
      %3328 = vmatpush2.msra.mxu0 0.0
      %3329 = vmatprep.subr.mxu0 0.0
      %3330 = vmatpush2.msra.mxu0 0.0
      %3331 = vmatprep.subr.mxu0 0.0
      %3332 = vmatpush2.msra.mxu0 0.0
      %3333 = vmatprep.subr.mxu0 0.0
      %3334 = vmatpush2.msra.mxu0 0.0
      %3335 = vmatprep.subr.mxu0 0.0
      %3336 = vmatpush2.msra.mxu0 0.0
      %3337 = vmatprep.subr.mxu0 0.0
      %3338 = vmatpush2.msra.mxu0 0.0
      %3339 = vmatprep.subr.mxu0 0.0
      %3340 = vmatpush2.msra.mxu0 0.0
      %3341 = vmatprep.subr.mxu0 0.0
      %3342 = vmatpush2.msra.mxu0 0.0
      %3343 = vmatprep.subr.mxu0 0.0
      %3344 = vmatpush2.msra.mxu0 0.0
      %3345 = vmatprep.subr.mxu0 0.0
      %3346 = vmatpush2.msra.mxu0 0.0
      %3347 = vmatprep.subr.mxu0 0.0
      %3348 = vmatpush2.msra.mxu0 0.0
      %3349 = vmatprep.subr.mxu0 0.0
      %3350 = vmatpush2.msra.mxu0 0.0
      %3351 = vmatprep.subr.mxu0 0.0
      %3352 = vmatpush2.msra.mxu0 0.0
      %3353 = vmatprep.subr.mxu0 0.0
      %3354 = vmatpush2.msra.mxu0 0.0
      %3355 = vmatprep.subr.mxu0 0.0
      %3356 = vmatpush2.msra.mxu0 0.0
      %3357 = vmatprep.subr.mxu0 0.0
      %3358 = vmatpush2.msra.mxu0 0.0
      %3359 = vmatprep.mubr.f32.mxu0 0.0
      %3360 = vmatmul.mubr.f32.gmra.mxu0 %v3294
      %v3361 = vpop.f32.mrf.mxu0
      %v3362 = vadd.f32 %v62, %v3361
      %v3363 = vpop.f32.mrf.mxu0
      %3364 = vdwg.mxu0
      %v3365 = vtanh.pop %v3362
      %v3366 = vmul.f32 %v247, %v3292
      %v3367 = vadd.f32 %v3070, %v3366
      %3368 = vmatprep.subr.mxu0 0.0
      %3369 = vmatpush1.msra.mxu0 %v104
      %3370 = vmatprep.subr.mxu0 0.0
      %3371 = vmatpush1.msra.mxu0 %v103
      %3372 = vmatprep.subr.mxu0 0.0
      %3373 = vmatpush1.msra.mxu0 %v102
      %3374 = vmatprep.subr.mxu0 0.0
      %3375 = vmatpush1.msra.mxu0 %v101
      %3376 = vmatprep.subr.mxu0 0.0
      %3377 = vmatpush1.msra.mxu0 %v100
      %3378 = vmatprep.subr.mxu0 0.0
      %3379 = vmatpush1.msra.mxu0 %v99
      %3380 = vmatprep.subr.mxu0 0.0
      %3381 = vmatpush1.msra.mxu0 %v98
      %3382 = vmatprep.subr.mxu0 0.0
      %3383 = vmatpush1.msra.mxu0 %v97
      %3384 = vmatprep.subr.mxu0 0.0
      %3385 = vmatpush1.msra.mxu0 %v96
      %3386 = vmatprep.subr.mxu0 0.0
      %3387 = vmatpush1.msra.mxu0 %v95
      %3388 = vmatprep.subr.mxu0 0.0
      %3389 = vmatpush1.msra.mxu0 %v94
      %3390 = vmatprep.subr.mxu0 0.0
      %3391 = vmatpush1.msra.mxu0 %v93
      %3392 = vmatprep.subr.mxu0 0.0
      %3393 = vmatpush1.msra.mxu0 %v92
      %3394 = vmatprep.subr.mxu0 0.0
      %3395 = vmatpush1.msra.mxu0 %v91
      %3396 = vmatprep.subr.mxu0 0.0
      %3397 = vmatpush1.msra.mxu0 %v90
      %3398 = vmatprep.subr.mxu0 0.0
      %3399 = vmatpush1.msra.mxu0 %v89
      %3400 = vmatprep.subr.mxu0 0.0
      %3401 = vmatpush2.msra.mxu0 0.0
      %3402 = vmatprep.subr.mxu0 0.0
      %3403 = vmatpush2.msra.mxu0 0.0
      %3404 = vmatprep.subr.mxu0 0.0
      %3405 = vmatpush2.msra.mxu0 0.0
      %3406 = vmatprep.subr.mxu0 0.0
      %3407 = vmatpush2.msra.mxu0 0.0
      %3408 = vmatprep.subr.mxu0 0.0
      %3409 = vmatpush2.msra.mxu0 0.0
      %3410 = vmatprep.subr.mxu0 0.0
      %3411 = vmatpush2.msra.mxu0 0.0
      %3412 = vmatprep.subr.mxu0 0.0
      %3413 = vmatpush2.msra.mxu0 0.0
      %3414 = vmatprep.subr.mxu0 0.0
      %3415 = vmatpush2.msra.mxu0 0.0
      %3416 = vmatprep.subr.mxu0 0.0
      %3417 = vmatpush2.msra.mxu0 0.0
      %3418 = vmatprep.subr.mxu0 0.0
      %3419 = vmatpush2.msra.mxu0 0.0
      %3420 = vmatprep.subr.mxu0 0.0
      %3421 = vmatpush2.msra.mxu0 0.0
      %3422 = vmatprep.subr.mxu0 0.0
      %3423 = vmatpush2.msra.mxu0 0.0
      %3424 = vmatprep.subr.mxu0 0.0
      %3425 = vmatpush2.msra.mxu0 0.0
      %3426 = vmatprep.subr.mxu0 0.0
      %3427 = vmatpush2.msra.mxu0 0.0
      %3428 = vmatprep.subr.mxu0 0.0
      %3429 = vmatpush2.msra.mxu0 0.0
      %3430 = vmatprep.subr.mxu0 0.0
      %3431 = vmatpush2.msra.mxu0 0.0
      %3432 = vmatprep.mubr.f32.mxu0 0.0
      %3433 = vmatmul.mubr.f32.gmra.mxu0 %v3367
      %v3434 = vpop.f32.mrf.mxu0
      %v3435 = vadd.f32 %v62, %v3434
      %v3436 = vpop.f32.mrf.mxu0
      %3437 = vdwg.mxu0
      %v3438 = vtanh.pop %v3435
      %v3439 = vmul.f32 %v247, %v3365
      %v3440 = vadd.f32 %v3077, %v3439
      %3441 = vmatprep.subr.mxu0 0.0
      %3442 = vmatpush1.msra.mxu0 %v104
      %3443 = vmatprep.subr.mxu0 0.0
      %3444 = vmatpush1.msra.mxu0 %v103
      %3445 = vmatprep.subr.mxu0 0.0
      %3446 = vmatpush1.msra.mxu0 %v102
      %3447 = vmatprep.subr.mxu0 0.0
      %3448 = vmatpush1.msra.mxu0 %v101
      %3449 = vmatprep.subr.mxu0 0.0
      %3450 = vmatpush1.msra.mxu0 %v100
      %3451 = vmatprep.subr.mxu0 0.0
      %3452 = vmatpush1.msra.mxu0 %v99
      %3453 = vmatprep.subr.mxu0 0.0
      %3454 = vmatpush1.msra.mxu0 %v98
      %3455 = vmatprep.subr.mxu0 0.0
      %3456 = vmatpush1.msra.mxu0 %v97
      %3457 = vmatprep.subr.mxu0 0.0
      %3458 = vmatpush1.msra.mxu0 %v96
      %3459 = vmatprep.subr.mxu0 0.0
      %3460 = vmatpush1.msra.mxu0 %v95
      %3461 = vmatprep.subr.mxu0 0.0
      %3462 = vmatpush1.msra.mxu0 %v94
      %3463 = vmatprep.subr.mxu0 0.0
      %3464 = vmatpush1.msra.mxu0 %v93
      %3465 = vmatprep.subr.mxu0 0.0
      %3466 = vmatpush1.msra.mxu0 %v92
      %3467 = vmatprep.subr.mxu0 0.0
      %3468 = vmatpush1.msra.mxu0 %v91
      %3469 = vmatprep.subr.mxu0 0.0
      %3470 = vmatpush1.msra.mxu0 %v90
      %3471 = vmatprep.subr.mxu0 0.0
      %3472 = vmatpush1.msra.mxu0 %v89
      %3473 = vmatprep.subr.mxu0 0.0
      %3474 = vmatpush2.msra.mxu0 0.0
      %3475 = vmatprep.subr.mxu0 0.0
      %3476 = vmatpush2.msra.mxu0 0.0
      %3477 = vmatprep.subr.mxu0 0.0
      %3478 = vmatpush2.msra.mxu0 0.0
      %3479 = vmatprep.subr.mxu0 0.0
      %3480 = vmatpush2.msra.mxu0 0.0
      %3481 = vmatprep.subr.mxu0 0.0
      %3482 = vmatpush2.msra.mxu0 0.0
      %3483 = vmatprep.subr.mxu0 0.0
      %3484 = vmatpush2.msra.mxu0 0.0
      %3485 = vmatprep.subr.mxu0 0.0
      %3486 = vmatpush2.msra.mxu0 0.0
      %3487 = vmatprep.subr.mxu0 0.0
      %3488 = vmatpush2.msra.mxu0 0.0
      %3489 = vmatprep.subr.mxu0 0.0
      %3490 = vmatpush2.msra.mxu0 0.0
      %3491 = vmatprep.subr.mxu0 0.0
      %3492 = vmatpush2.msra.mxu0 0.0
      %3493 = vmatprep.subr.mxu0 0.0
      %3494 = vmatpush2.msra.mxu0 0.0
      %3495 = vmatprep.subr.mxu0 0.0
      %3496 = vmatpush2.msra.mxu0 0.0
      %3497 = vmatprep.subr.mxu0 0.0
      %3498 = vmatpush2.msra.mxu0 0.0
      %3499 = vmatprep.subr.mxu0 0.0
      %3500 = vmatpush2.msra.mxu0 0.0
      %3501 = vmatprep.subr.mxu0 0.0
      %3502 = vmatpush2.msra.mxu0 0.0
      %3503 = vmatprep.subr.mxu0 0.0
      %3504 = vmatpush2.msra.mxu0 0.0
      %3505 = vmatprep.mubr.f32.mxu0 0.0
      %3506 = vmatmul.mubr.f32.gmra.mxu0 %v3440
      %v3507 = vpop.f32.mrf.mxu0
      %v3508 = vadd.f32 %v62, %v3507
      %v3509 = vpop.f32.mrf.mxu0
      %3510 = vdwg.mxu0
      %v3511 = vtanh.pop %v3508
      %v3512 = vmul.f32 %v540, %v3438
      %v3513 = vadd.f32 %v3070, %v3512
      %3514 = vmatprep.subr.mxu0 0.0
      %3515 = vmatpush1.msra.mxu0 %v104
      %3516 = vmatprep.subr.mxu0 0.0
      %3517 = vmatpush1.msra.mxu0 %v103
      %3518 = vmatprep.subr.mxu0 0.0
      %3519 = vmatpush1.msra.mxu0 %v102
      %3520 = vmatprep.subr.mxu0 0.0
      %3521 = vmatpush1.msra.mxu0 %v101
      %3522 = vmatprep.subr.mxu0 0.0
      %3523 = vmatpush1.msra.mxu0 %v100
      %3524 = vmatprep.subr.mxu0 0.0
      %3525 = vmatpush1.msra.mxu0 %v99
      %3526 = vmatprep.subr.mxu0 0.0
      %3527 = vmatpush1.msra.mxu0 %v98
      %3528 = vmatprep.subr.mxu0 0.0
      %3529 = vmatpush1.msra.mxu0 %v97
      %3530 = vmatprep.subr.mxu0 0.0
      %3531 = vmatpush1.msra.mxu0 %v96
      %3532 = vmatprep.subr.mxu0 0.0
      %3533 = vmatpush1.msra.mxu0 %v95
      %3534 = vmatprep.subr.mxu0 0.0
      %3535 = vmatpush1.msra.mxu0 %v94
      %3536 = vmatprep.subr.mxu0 0.0
      %3537 = vmatpush1.msra.mxu0 %v93
      %3538 = vmatprep.subr.mxu0 0.0
      %3539 = vmatpush1.msra.mxu0 %v92
      %3540 = vmatprep.subr.mxu0 0.0
      %3541 = vmatpush1.msra.mxu0 %v91
      %3542 = vmatprep.subr.mxu0 0.0
      %3543 = vmatpush1.msra.mxu0 %v90
      %3544 = vmatprep.subr.mxu0 0.0
      %3545 = vmatpush1.msra.mxu0 %v89
      %3546 = vmatprep.subr.mxu0 0.0
      %3547 = vmatpush2.msra.mxu0 0.0
      %3548 = vmatprep.subr.mxu0 0.0
      %3549 = vmatpush2.msra.mxu0 0.0
      %3550 = vmatprep.subr.mxu0 0.0
      %3551 = vmatpush2.msra.mxu0 0.0
      %3552 = vmatprep.subr.mxu0 0.0
      %3553 = vmatpush2.msra.mxu0 0.0
      %3554 = vmatprep.subr.mxu0 0.0
      %3555 = vmatpush2.msra.mxu0 0.0
      %3556 = vmatprep.subr.mxu0 0.0
      %3557 = vmatpush2.msra.mxu0 0.0
      %3558 = vmatprep.subr.mxu0 0.0
      %3559 = vmatpush2.msra.mxu0 0.0
      %3560 = vmatprep.subr.mxu0 0.0
      %3561 = vmatpush2.msra.mxu0 0.0
      %3562 = vmatprep.subr.mxu0 0.0
      %3563 = vmatpush2.msra.mxu0 0.0
      %3564 = vmatprep.subr.mxu0 0.0
      %3565 = vmatpush2.msra.mxu0 0.0
      %3566 = vmatprep.subr.mxu0 0.0
      %3567 = vmatpush2.msra.mxu0 0.0
      %3568 = vmatprep.subr.mxu0 0.0
      %3569 = vmatpush2.msra.mxu0 0.0
      %3570 = vmatprep.subr.mxu0 0.0
      %3571 = vmatpush2.msra.mxu0 0.0
      %3572 = vmatprep.subr.mxu0 0.0
      %3573 = vmatpush2.msra.mxu0 0.0
      %3574 = vmatprep.subr.mxu0 0.0
      %3575 = vmatpush2.msra.mxu0 0.0
      %3576 = vmatprep.subr.mxu0 0.0
      %3577 = vmatpush2.msra.mxu0 0.0
      %3578 = vmatprep.mubr.f32.mxu0 0.0
      %3579 = vmatmul.mubr.f32.gmra.mxu0 %v3513
      %v3580 = vpop.f32.mrf.mxu0
      %v3581 = vadd.f32 %v62, %v3580
      %v3582 = vpop.f32.mrf.mxu0
      %3583 = vdwg.mxu0
      %v3584 = vtanh.pop %v3581
      %v3585 = vmul.f32 %v540, %v3511
      %v3586 = vadd.f32 %v3077, %v3585
      %3587 = vmatprep.subr.mxu0 0.0
      %3588 = vmatpush1.msra.mxu0 %v104
      %3589 = vmatprep.subr.mxu0 0.0
      %3590 = vmatpush1.msra.mxu0 %v103
      %3591 = vmatprep.subr.mxu0 0.0
      %3592 = vmatpush1.msra.mxu0 %v102
      %3593 = vmatprep.subr.mxu0 0.0
      %3594 = vmatpush1.msra.mxu0 %v101
      %3595 = vmatprep.subr.mxu0 0.0
      %3596 = vmatpush1.msra.mxu0 %v100
      %3597 = vmatprep.subr.mxu0 0.0
      %3598 = vmatpush1.msra.mxu0 %v99
      %3599 = vmatprep.subr.mxu0 0.0
      %3600 = vmatpush1.msra.mxu0 %v98
      %3601 = vmatprep.subr.mxu0 0.0
      %3602 = vmatpush1.msra.mxu0 %v97
      %3603 = vmatprep.subr.mxu0 0.0
      %3604 = vmatpush1.msra.mxu0 %v96
      %3605 = vmatprep.subr.mxu0 0.0
      %3606 = vmatpush1.msra.mxu0 %v95
      %3607 = vmatprep.subr.mxu0 0.0
      %3608 = vmatpush1.msra.mxu0 %v94
      %3609 = vmatprep.subr.mxu0 0.0
      %3610 = vmatpush1.msra.mxu0 %v93
      %3611 = vmatprep.subr.mxu0 0.0
      %3612 = vmatpush1.msra.mxu0 %v92
      %3613 = vmatprep.subr.mxu0 0.0
      %3614 = vmatpush1.msra.mxu0 %v91
      %3615 = vmatprep.subr.mxu0 0.0
      %3616 = vmatpush1.msra.mxu0 %v90
      %3617 = vmatprep.subr.mxu0 0.0
      %3618 = vmatpush1.msra.mxu0 %v89
      %3619 = vmatprep.subr.mxu0 0.0
      %3620 = vmatpush2.msra.mxu0 0.0
      %3621 = vmatprep.subr.mxu0 0.0
      %3622 = vmatpush2.msra.mxu0 0.0
      %3623 = vmatprep.subr.mxu0 0.0
      %3624 = vmatpush2.msra.mxu0 0.0
      %3625 = vmatprep.subr.mxu0 0.0
      %3626 = vmatpush2.msra.mxu0 0.0
      %3627 = vmatprep.subr.mxu0 0.0
      %3628 = vmatpush2.msra.mxu0 0.0
      %3629 = vmatprep.subr.mxu0 0.0
      %3630 = vmatpush2.msra.mxu0 0.0
      %3631 = vmatprep.subr.mxu0 0.0
      %3632 = vmatpush2.msra.mxu0 0.0
      %3633 = vmatprep.subr.mxu0 0.0
      %3634 = vmatpush2.msra.mxu0 0.0
      %3635 = vmatprep.subr.mxu0 0.0
      %3636 = vmatpush2.msra.mxu0 0.0
      %3637 = vmatprep.subr.mxu0 0.0
      %3638 = vmatpush2.msra.mxu0 0.0
      %3639 = vmatprep.subr.mxu0 0.0
      %3640 = vmatpush2.msra.mxu0 0.0
      %3641 = vmatprep.subr.mxu0 0.0
      %3642 = vmatpush2.msra.mxu0 0.0
      %3643 = vmatprep.subr.mxu0 0.0
      %3644 = vmatpush2.msra.mxu0 0.0
      %3645 = vmatprep.subr.mxu0 0.0
      %3646 = vmatpush2.msra.mxu0 0.0
      %3647 = vmatprep.subr.mxu0 0.0
      %3648 = vmatpush2.msra.mxu0 0.0
      %3649 = vmatprep.subr.mxu0 0.0
      %3650 = vmatpush2.msra.mxu0 0.0
      %3651 = vmatprep.mubr.f32.mxu0 0.0
      %3652 = vmatmul.mubr.f32.gmra.mxu0 %v3586
      %v3653 = vpop.f32.mrf.mxu0
      %v3654 = vadd.f32 %v62, %v3653
      %v3655 = vpop.f32.mrf.mxu0
      %3656 = vdwg.mxu0
      %v3657 = vtanh.pop %v3654
      %v3658 = vmul.f32 %v3292, 2.0
      %v3659 = vadd.f32 %v3148, %v3658
      %v3660 = vmul.f32 %v3438, 2.0
      %v3661 = vadd.f32 %v3659, %v3660
      %v3662 = vadd.f32 %v3661, %v3584
      %v3663 = vmul.f32 %v692, %v3662
      %v3664 = vadd.f32 %v3070, %v3663
      %v3665 = vmul.f32 %v3365, 2.0
      %v3666 = vadd.f32 %v3219, %v3665
      %v3667 = vmul.f32 %v3511, 2.0
      %v3668 = vadd.f32 %v3666, %v3667
      %v3669 = vadd.f32 %v3668, %v3657
      %v3670 = vmul.f32 %v692, %v3669
      %v3671 = vadd.f32 %v3077, %v3670
      %3672 = vmatprep.subr.mxu0 0.0
      %3673 = vmatpush1.msra.mxu0 %v104
      %3674 = vmatprep.subr.mxu0 0.0
      %3675 = vmatpush1.msra.mxu0 %v103
      %3676 = vmatprep.subr.mxu0 0.0
      %3677 = vmatpush1.msra.mxu0 %v102
      %3678 = vmatprep.subr.mxu0 0.0
      %3679 = vmatpush1.msra.mxu0 %v101
      %3680 = vmatprep.subr.mxu0 0.0
      %3681 = vmatpush1.msra.mxu0 %v100
      %3682 = vmatprep.subr.mxu0 0.0
      %3683 = vmatpush1.msra.mxu0 %v99
      %3684 = vmatprep.subr.mxu0 0.0
      %3685 = vmatpush1.msra.mxu0 %v98
      %3686 = vmatprep.subr.mxu0 0.0
      %3687 = vmatpush1.msra.mxu0 %v97
      %3688 = vmatprep.subr.mxu0 0.0
      %3689 = vmatpush1.msra.mxu0 %v96
      %3690 = vmatprep.subr.mxu0 0.0
      %3691 = vmatpush1.msra.mxu0 %v95
      %3692 = vmatprep.subr.mxu0 0.0
      %3693 = vmatpush1.msra.mxu0 %v94
      %3694 = vmatprep.subr.mxu0 0.0
      %3695 = vmatpush1.msra.mxu0 %v93
      %3696 = vmatprep.subr.mxu0 0.0
      %3697 = vmatpush1.msra.mxu0 %v92
      %3698 = vmatprep.subr.mxu0 0.0
      %3699 = vmatpush1.msra.mxu0 %v91
      %3700 = vmatprep.subr.mxu0 0.0
      %3701 = vmatpush1.msra.mxu0 %v90
      %3702 = vmatprep.subr.mxu0 0.0
      %3703 = vmatpush1.msra.mxu0 %v89
      %3704 = vmatprep.subr.mxu0 0.0
      %3705 = vmatpush2.msra.mxu0 0.0
      %3706 = vmatprep.subr.mxu0 0.0
      %3707 = vmatpush2.msra.mxu0 0.0
      %3708 = vmatprep.subr.mxu0 0.0
      %3709 = vmatpush2.msra.mxu0 0.0
      %3710 = vmatprep.subr.mxu0 0.0
      %3711 = vmatpush2.msra.mxu0 0.0
      %3712 = vmatprep.subr.mxu0 0.0
      %3713 = vmatpush2.msra.mxu0 0.0
      %3714 = vmatprep.subr.mxu0 0.0
      %3715 = vmatpush2.msra.mxu0 0.0
      %3716 = vmatprep.subr.mxu0 0.0
      %3717 = vmatpush2.msra.mxu0 0.0
      %3718 = vmatprep.subr.mxu0 0.0
      %3719 = vmatpush2.msra.mxu0 0.0
      %3720 = vmatprep.subr.mxu0 0.0
      %3721 = vmatpush2.msra.mxu0 0.0
      %3722 = vmatprep.subr.mxu0 0.0
      %3723 = vmatpush2.msra.mxu0 0.0
      %3724 = vmatprep.subr.mxu0 0.0
      %3725 = vmatpush2.msra.mxu0 0.0
      %3726 = vmatprep.subr.mxu0 0.0
      %3727 = vmatpush2.msra.mxu0 0.0
      %3728 = vmatprep.subr.mxu0 0.0
      %3729 = vmatpush2.msra.mxu0 0.0
      %3730 = vmatprep.subr.mxu0 0.0
      %3731 = vmatpush2.msra.mxu0 0.0
      %3732 = vmatprep.subr.mxu0 0.0
      %3733 = vmatpush2.msra.mxu0 0.0
      %3734 = vmatprep.subr.mxu0 0.0
      %3735 = vmatpush2.msra.mxu0 0.0
      %3736 = vmatprep.mubr.f32.mxu0 0.0
      %3737 = vmatmul.mubr.f32.gmra.mxu0 %v3664
      %v3738 = vpop.f32.mrf.mxu0
      %v3739 = vadd.f32 %v62, %v3738
      %v3740 = vpop.f32.mrf.mxu0
      %3741 = vdwg.mxu0
      %v3742 = vtanh.pop %v3739
      %3743 = vmatprep.subr.mxu0 0.0
      %3744 = vmatpush1.msra.mxu0 %v104
      %3745 = vmatprep.subr.mxu0 0.0
      %3746 = vmatpush1.msra.mxu0 %v103
      %3747 = vmatprep.subr.mxu0 0.0
      %3748 = vmatpush1.msra.mxu0 %v102
      %3749 = vmatprep.subr.mxu0 0.0
      %3750 = vmatpush1.msra.mxu0 %v101
      %3751 = vmatprep.subr.mxu0 0.0
      %3752 = vmatpush1.msra.mxu0 %v100
      %3753 = vmatprep.subr.mxu0 0.0
      %3754 = vmatpush1.msra.mxu0 %v99
      %3755 = vmatprep.subr.mxu0 0.0
      %3756 = vmatpush1.msra.mxu0 %v98
      %3757 = vmatprep.subr.mxu0 0.0
      %3758 = vmatpush1.msra.mxu0 %v97
      %3759 = vmatprep.subr.mxu0 0.0
      %3760 = vmatpush1.msra.mxu0 %v96
      %3761 = vmatprep.subr.mxu0 0.0
      %3762 = vmatpush1.msra.mxu0 %v95
      %3763 = vmatprep.subr.mxu0 0.0
      %3764 = vmatpush1.msra.mxu0 %v94
      %3765 = vmatprep.subr.mxu0 0.0
      %3766 = vmatpush1.msra.mxu0 %v93
      %3767 = vmatprep.subr.mxu0 0.0
      %3768 = vmatpush1.msra.mxu0 %v92
      %3769 = vmatprep.subr.mxu0 0.0
      %3770 = vmatpush1.msra.mxu0 %v91
      %3771 = vmatprep.subr.mxu0 0.0
      %3772 = vmatpush1.msra.mxu0 %v90
      %3773 = vmatprep.subr.mxu0 0.0
      %3774 = vmatpush1.msra.mxu0 %v89
      %3775 = vmatprep.subr.mxu0 0.0
      %3776 = vmatpush2.msra.mxu0 0.0
      %3777 = vmatprep.subr.mxu0 0.0
      %3778 = vmatpush2.msra.mxu0 0.0
      %3779 = vmatprep.subr.mxu0 0.0
      %3780 = vmatpush2.msra.mxu0 0.0
      %3781 = vmatprep.subr.mxu0 0.0
      %3782 = vmatpush2.msra.mxu0 0.0
      %3783 = vmatprep.subr.mxu0 0.0
      %3784 = vmatpush2.msra.mxu0 0.0
      %3785 = vmatprep.subr.mxu0 0.0
      %3786 = vmatpush2.msra.mxu0 0.0
      %3787 = vmatprep.subr.mxu0 0.0
      %3788 = vmatpush2.msra.mxu0 0.0
      %3789 = vmatprep.subr.mxu0 0.0
      %3790 = vmatpush2.msra.mxu0 0.0
      %3791 = vmatprep.subr.mxu0 0.0
      %3792 = vmatpush2.msra.mxu0 0.0
      %3793 = vmatprep.subr.mxu0 0.0
      %3794 = vmatpush2.msra.mxu0 0.0
      %3795 = vmatprep.subr.mxu0 0.0
      %3796 = vmatpush2.msra.mxu0 0.0
      %3797 = vmatprep.subr.mxu0 0.0
      %3798 = vmatpush2.msra.mxu0 0.0
      %3799 = vmatprep.subr.mxu0 0.0
      %3800 = vmatpush2.msra.mxu0 0.0
      %3801 = vmatprep.subr.mxu0 0.0
      %3802 = vmatpush2.msra.mxu0 0.0
      %3803 = vmatprep.subr.mxu0 0.0
      %3804 = vmatpush2.msra.mxu0 0.0
      %3805 = vmatprep.subr.mxu0 0.0
      %3806 = vmatpush2.msra.mxu0 0.0
      %3807 = vmatprep.mubr.f32.mxu0 0.0
      %3808 = vmatmul.mubr.f32.gmra.mxu0 %v3671
      %v3809 = vpop.f32.mrf.mxu0
      %v3810 = vadd.f32 %v62, %v3809
      %v3811 = vpop.f32.mrf.mxu0
      %3812 = vdwg.mxu0
      %v3813 = vtanh.pop %v3810
      %v3814 = vmul.f32 %v247, %v3742
      %v3815 = vadd.f32 %v3664, %v3814
      %3816 = vmatprep.subr.mxu0 0.0
      %3817 = vmatpush1.msra.mxu0 %v104
      %3818 = vmatprep.subr.mxu0 0.0
      %3819 = vmatpush1.msra.mxu0 %v103
      %3820 = vmatprep.subr.mxu0 0.0
      %3821 = vmatpush1.msra.mxu0 %v102
      %3822 = vmatprep.subr.mxu0 0.0
      %3823 = vmatpush1.msra.mxu0 %v101
      %3824 = vmatprep.subr.mxu0 0.0
      %3825 = vmatpush1.msra.mxu0 %v100
      %3826 = vmatprep.subr.mxu0 0.0
      %3827 = vmatpush1.msra.mxu0 %v99
      %3828 = vmatprep.subr.mxu0 0.0
      %3829 = vmatpush1.msra.mxu0 %v98
      %3830 = vmatprep.subr.mxu0 0.0
      %3831 = vmatpush1.msra.mxu0 %v97
      %3832 = vmatprep.subr.mxu0 0.0
      %3833 = vmatpush1.msra.mxu0 %v96
      %3834 = vmatprep.subr.mxu0 0.0
      %3835 = vmatpush1.msra.mxu0 %v95
      %3836 = vmatprep.subr.mxu0 0.0
      %3837 = vmatpush1.msra.mxu0 %v94
      %3838 = vmatprep.subr.mxu0 0.0
      %3839 = vmatpush1.msra.mxu0 %v93
      %3840 = vmatprep.subr.mxu0 0.0
      %3841 = vmatpush1.msra.mxu0 %v92
      %3842 = vmatprep.subr.mxu0 0.0
      %3843 = vmatpush1.msra.mxu0 %v91
      %3844 = vmatprep.subr.mxu0 0.0
      %3845 = vmatpush1.msra.mxu0 %v90
      %3846 = vmatprep.subr.mxu0 0.0
      %3847 = vmatpush1.msra.mxu0 %v89
      %3848 = vmatprep.subr.mxu0 0.0
      %3849 = vmatpush2.msra.mxu0 0.0
      %3850 = vmatprep.subr.mxu0 0.0
      %3851 = vmatpush2.msra.mxu0 0.0
      %3852 = vmatprep.subr.mxu0 0.0
      %3853 = vmatpush2.msra.mxu0 0.0
      %3854 = vmatprep.subr.mxu0 0.0
      %3855 = vmatpush2.msra.mxu0 0.0
      %3856 = vmatprep.subr.mxu0 0.0
      %3857 = vmatpush2.msra.mxu0 0.0
      %3858 = vmatprep.subr.mxu0 0.0
      %3859 = vmatpush2.msra.mxu0 0.0
      %3860 = vmatprep.subr.mxu0 0.0
      %3861 = vmatpush2.msra.mxu0 0.0
      %3862 = vmatprep.subr.mxu0 0.0
      %3863 = vmatpush2.msra.mxu0 0.0
      %3864 = vmatprep.subr.mxu0 0.0
      %3865 = vmatpush2.msra.mxu0 0.0
      %3866 = vmatprep.subr.mxu0 0.0
      %3867 = vmatpush2.msra.mxu0 0.0
      %3868 = vmatprep.subr.mxu0 0.0
      %3869 = vmatpush2.msra.mxu0 0.0
      %3870 = vmatprep.subr.mxu0 0.0
      %3871 = vmatpush2.msra.mxu0 0.0
      %3872 = vmatprep.subr.mxu0 0.0
      %3873 = vmatpush2.msra.mxu0 0.0
      %3874 = vmatprep.subr.mxu0 0.0
      %3875 = vmatpush2.msra.mxu0 0.0
      %3876 = vmatprep.subr.mxu0 0.0
      %3877 = vmatpush2.msra.mxu0 0.0
      %3878 = vmatprep.subr.mxu0 0.0
      %3879 = vmatpush2.msra.mxu0 0.0
      %3880 = vmatprep.mubr.f32.mxu0 0.0
      %3881 = vmatmul.mubr.f32.gmra.mxu0 %v3815
      %v3882 = vpop.f32.mrf.mxu0
      %v3883 = vadd.f32 %v62, %v3882
      %v3884 = vpop.f32.mrf.mxu0
      %3885 = vdwg.mxu0
      %v3886 = vtanh.pop %v3883
      %v3887 = vmul.f32 %v247, %v3813
      %v3888 = vadd.f32 %v3671, %v3887
      %3889 = vmatprep.subr.mxu0 0.0
      %3890 = vmatpush1.msra.mxu0 %v104
      %3891 = vmatprep.subr.mxu0 0.0
      %3892 = vmatpush1.msra.mxu0 %v103
      %3893 = vmatprep.subr.mxu0 0.0
      %3894 = vmatpush1.msra.mxu0 %v102
      %3895 = vmatprep.subr.mxu0 0.0
      %3896 = vmatpush1.msra.mxu0 %v101
      %3897 = vmatprep.subr.mxu0 0.0
      %3898 = vmatpush1.msra.mxu0 %v100
      %3899 = vmatprep.subr.mxu0 0.0
      %3900 = vmatpush1.msra.mxu0 %v99
      %3901 = vmatprep.subr.mxu0 0.0
      %3902 = vmatpush1.msra.mxu0 %v98
      %3903 = vmatprep.subr.mxu0 0.0
      %3904 = vmatpush1.msra.mxu0 %v97
      %3905 = vmatprep.subr.mxu0 0.0
      %3906 = vmatpush1.msra.mxu0 %v96
      %3907 = vmatprep.subr.mxu0 0.0
      %3908 = vmatpush1.msra.mxu0 %v95
      %3909 = vmatprep.subr.mxu0 0.0
      %3910 = vmatpush1.msra.mxu0 %v94
      %3911 = vmatprep.subr.mxu0 0.0
      %3912 = vmatpush1.msra.mxu0 %v93
      %3913 = vmatprep.subr.mxu0 0.0
      %3914 = vmatpush1.msra.mxu0 %v92
      %3915 = vmatprep.subr.mxu0 0.0
      %3916 = vmatpush1.msra.mxu0 %v91
      %3917 = vmatprep.subr.mxu0 0.0
      %3918 = vmatpush1.msra.mxu0 %v90
      %3919 = vmatprep.subr.mxu0 0.0
      %3920 = vmatpush1.msra.mxu0 %v89
      %3921 = vmatprep.subr.mxu0 0.0
      %3922 = vmatpush2.msra.mxu0 0.0
      %3923 = vmatprep.subr.mxu0 0.0
      %3924 = vmatpush2.msra.mxu0 0.0
      %3925 = vmatprep.subr.mxu0 0.0
      %3926 = vmatpush2.msra.mxu0 0.0
      %3927 = vmatprep.subr.mxu0 0.0
      %3928 = vmatpush2.msra.mxu0 0.0
      %3929 = vmatprep.subr.mxu0 0.0
      %3930 = vmatpush2.msra.mxu0 0.0
      %3931 = vmatprep.subr.mxu0 0.0
      %3932 = vmatpush2.msra.mxu0 0.0
      %3933 = vmatprep.subr.mxu0 0.0
      %3934 = vmatpush2.msra.mxu0 0.0
      %3935 = vmatprep.subr.mxu0 0.0
      %3936 = vmatpush2.msra.mxu0 0.0
      %3937 = vmatprep.subr.mxu0 0.0
      %3938 = vmatpush2.msra.mxu0 0.0
      %3939 = vmatprep.subr.mxu0 0.0
      %3940 = vmatpush2.msra.mxu0 0.0
      %3941 = vmatprep.subr.mxu0 0.0
      %3942 = vmatpush2.msra.mxu0 0.0
      %3943 = vmatprep.subr.mxu0 0.0
      %3944 = vmatpush2.msra.mxu0 0.0
      %3945 = vmatprep.subr.mxu0 0.0
      %3946 = vmatpush2.msra.mxu0 0.0
      %3947 = vmatprep.subr.mxu0 0.0
      %3948 = vmatpush2.msra.mxu0 0.0
      %3949 = vmatprep.subr.mxu0 0.0
      %3950 = vmatpush2.msra.mxu0 0.0
      %3951 = vmatprep.subr.mxu0 0.0
      %3952 = vmatpush2.msra.mxu0 0.0
      %3953 = vmatprep.mubr.f32.mxu0 0.0
      %3954 = vmatmul.mubr.f32.gmra.mxu0 %v3888
      %v3955 = vpop.f32.mrf.mxu0
      %v3956 = vadd.f32 %v62, %v3955
      %v3957 = vpop.f32.mrf.mxu0
      %3958 = vdwg.mxu0
      %v3959 = vtanh.pop %v3956
      %v3960 = vmul.f32 %v247, %v3886
      %v3961 = vadd.f32 %v3664, %v3960
      %3962 = vmatprep.subr.mxu0 0.0
      %3963 = vmatpush1.msra.mxu0 %v104
      %3964 = vmatprep.subr.mxu0 0.0
      %3965 = vmatpush1.msra.mxu0 %v103
      %3966 = vmatprep.subr.mxu0 0.0
      %3967 = vmatpush1.msra.mxu0 %v102
      %3968 = vmatprep.subr.mxu0 0.0
      %3969 = vmatpush1.msra.mxu0 %v101
      %3970 = vmatprep.subr.mxu0 0.0
      %3971 = vmatpush1.msra.mxu0 %v100
      %3972 = vmatprep.subr.mxu0 0.0
      %3973 = vmatpush1.msra.mxu0 %v99
      %3974 = vmatprep.subr.mxu0 0.0
      %3975 = vmatpush1.msra.mxu0 %v98
      %3976 = vmatprep.subr.mxu0 0.0
      %3977 = vmatpush1.msra.mxu0 %v97
      %3978 = vmatprep.subr.mxu0 0.0
      %3979 = vmatpush1.msra.mxu0 %v96
      %3980 = vmatprep.subr.mxu0 0.0
      %3981 = vmatpush1.msra.mxu0 %v95
      %3982 = vmatprep.subr.mxu0 0.0
      %3983 = vmatpush1.msra.mxu0 %v94
      %3984 = vmatprep.subr.mxu0 0.0
      %3985 = vmatpush1.msra.mxu0 %v93
      %3986 = vmatprep.subr.mxu0 0.0
      %3987 = vmatpush1.msra.mxu0 %v92
      %3988 = vmatprep.subr.mxu0 0.0
      %3989 = vmatpush1.msra.mxu0 %v91
      %3990 = vmatprep.subr.mxu0 0.0
      %3991 = vmatpush1.msra.mxu0 %v90
      %3992 = vmatprep.subr.mxu0 0.0
      %3993 = vmatpush1.msra.mxu0 %v89
      %3994 = vmatprep.subr.mxu0 0.0
      %3995 = vmatpush2.msra.mxu0 0.0
      %3996 = vmatprep.subr.mxu0 0.0
      %3997 = vmatpush2.msra.mxu0 0.0
      %3998 = vmatprep.subr.mxu0 0.0
      %3999 = vmatpush2.msra.mxu0 0.0
      %4000 = vmatprep.subr.mxu0 0.0
      %4001 = vmatpush2.msra.mxu0 0.0
      %4002 = vmatprep.subr.mxu0 0.0
      %4003 = vmatpush2.msra.mxu0 0.0
      %4004 = vmatprep.subr.mxu0 0.0
      %4005 = vmatpush2.msra.mxu0 0.0
      %4006 = vmatprep.subr.mxu0 0.0
      %4007 = vmatpush2.msra.mxu0 0.0
      %4008 = vmatprep.subr.mxu0 0.0
      %4009 = vmatpush2.msra.mxu0 0.0
      %4010 = vmatprep.subr.mxu0 0.0
      %4011 = vmatpush2.msra.mxu0 0.0
      %4012 = vmatprep.subr.mxu0 0.0
      %4013 = vmatpush2.msra.mxu0 0.0
      %4014 = vmatprep.subr.mxu0 0.0
      %4015 = vmatpush2.msra.mxu0 0.0
      %4016 = vmatprep.subr.mxu0 0.0
      %4017 = vmatpush2.msra.mxu0 0.0
      %4018 = vmatprep.subr.mxu0 0.0
      %4019 = vmatpush2.msra.mxu0 0.0
      %4020 = vmatprep.subr.mxu0 0.0
      %4021 = vmatpush2.msra.mxu0 0.0
      %4022 = vmatprep.subr.mxu0 0.0
      %4023 = vmatpush2.msra.mxu0 0.0
      %4024 = vmatprep.subr.mxu0 0.0
      %4025 = vmatpush2.msra.mxu0 0.0
      %4026 = vmatprep.mubr.f32.mxu0 0.0
      %4027 = vmatmul.mubr.f32.gmra.mxu0 %v3961
      %v4028 = vpop.f32.mrf.mxu0
      %v4029 = vadd.f32 %v62, %v4028
      %v4030 = vpop.f32.mrf.mxu0
      %4031 = vdwg.mxu0
      %v4032 = vtanh.pop %v4029
      %v4033 = vmul.f32 %v247, %v3959
      %v4034 = vadd.f32 %v3671, %v4033
      %4035 = vmatprep.subr.mxu0 0.0
      %4036 = vmatpush1.msra.mxu0 %v104
      %4037 = vmatprep.subr.mxu0 0.0
      %4038 = vmatpush1.msra.mxu0 %v103
      %4039 = vmatprep.subr.mxu0 0.0
      %4040 = vmatpush1.msra.mxu0 %v102
      %4041 = vmatprep.subr.mxu0 0.0
      %4042 = vmatpush1.msra.mxu0 %v101
      %4043 = vmatprep.subr.mxu0 0.0
      %4044 = vmatpush1.msra.mxu0 %v100
      %4045 = vmatprep.subr.mxu0 0.0
      %4046 = vmatpush1.msra.mxu0 %v99
      %4047 = vmatprep.subr.mxu0 0.0
      %4048 = vmatpush1.msra.mxu0 %v98
      %4049 = vmatprep.subr.mxu0 0.0
      %4050 = vmatpush1.msra.mxu0 %v97
      %4051 = vmatprep.subr.mxu0 0.0
      %4052 = vmatpush1.msra.mxu0 %v96
      %4053 = vmatprep.subr.mxu0 0.0
      %4054 = vmatpush1.msra.mxu0 %v95
      %4055 = vmatprep.subr.mxu0 0.0
      %4056 = vmatpush1.msra.mxu0 %v94
      %4057 = vmatprep.subr.mxu0 0.0
      %4058 = vmatpush1.msra.mxu0 %v93
      %4059 = vmatprep.subr.mxu0 0.0
      %4060 = vmatpush1.msra.mxu0 %v92
      %4061 = vmatprep.subr.mxu0 0.0
      %4062 = vmatpush1.msra.mxu0 %v91
      %4063 = vmatprep.subr.mxu0 0.0
      %4064 = vmatpush1.msra.mxu0 %v90
      %4065 = vmatprep.subr.mxu0 0.0
      %4066 = vmatpush1.msra.mxu0 %v89
      %4067 = vmatprep.subr.mxu0 0.0
      %4068 = vmatpush2.msra.mxu0 0.0
      %4069 = vmatprep.subr.mxu0 0.0
      %4070 = vmatpush2.msra.mxu0 0.0
      %4071 = vmatprep.subr.mxu0 0.0
      %4072 = vmatpush2.msra.mxu0 0.0
      %4073 = vmatprep.subr.mxu0 0.0
      %4074 = vmatpush2.msra.mxu0 0.0
      %4075 = vmatprep.subr.mxu0 0.0
      %4076 = vmatpush2.msra.mxu0 0.0
      %4077 = vmatprep.subr.mxu0 0.0
      %4078 = vmatpush2.msra.mxu0 0.0
      %4079 = vmatprep.subr.mxu0 0.0
      %4080 = vmatpush2.msra.mxu0 0.0
      %4081 = vmatprep.subr.mxu0 0.0
      %4082 = vmatpush2.msra.mxu0 0.0
      %4083 = vmatprep.subr.mxu0 0.0
      %4084 = vmatpush2.msra.mxu0 0.0
      %4085 = vmatprep.subr.mxu0 0.0
      %4086 = vmatpush2.msra.mxu0 0.0
      %4087 = vmatprep.subr.mxu0 0.0
      %4088 = vmatpush2.msra.mxu0 0.0
      %4089 = vmatprep.subr.mxu0 0.0
      %4090 = vmatpush2.msra.mxu0 0.0
      %4091 = vmatprep.subr.mxu0 0.0
      %4092 = vmatpush2.msra.mxu0 0.0
      %4093 = vmatprep.subr.mxu0 0.0
      %4094 = vmatpush2.msra.mxu0 0.0
      %4095 = vmatprep.subr.mxu0 0.0
      %4096 = vmatpush2.msra.mxu0 0.0
      %4097 = vmatprep.subr.mxu0 0.0
      %4098 = vmatpush2.msra.mxu0 0.0
      %4099 = vmatprep.mubr.f32.mxu0 0.0
      %4100 = vmatmul.mubr.f32.gmra.mxu0 %v4034
      %v4101 = vpop.f32.mrf.mxu0
      %v4102 = vadd.f32 %v62, %v4101
      %v4103 = vpop.f32.mrf.mxu0
      %4104 = vdwg.mxu0
      %v4105 = vtanh.pop %v4102
      %v4106 = vmul.f32 %v540, %v4032
      %v4107 = vadd.f32 %v3664, %v4106
      %4108 = vmatprep.subr.mxu0 0.0
      %4109 = vmatpush1.msra.mxu0 %v104
      %4110 = vmatprep.subr.mxu0 0.0
      %4111 = vmatpush1.msra.mxu0 %v103
      %4112 = vmatprep.subr.mxu0 0.0
      %4113 = vmatpush1.msra.mxu0 %v102
      %4114 = vmatprep.subr.mxu0 0.0
      %4115 = vmatpush1.msra.mxu0 %v101
      %4116 = vmatprep.subr.mxu0 0.0
      %4117 = vmatpush1.msra.mxu0 %v100
      %4118 = vmatprep.subr.mxu0 0.0
      %4119 = vmatpush1.msra.mxu0 %v99
      %4120 = vmatprep.subr.mxu0 0.0
      %4121 = vmatpush1.msra.mxu0 %v98
      %4122 = vmatprep.subr.mxu0 0.0
      %4123 = vmatpush1.msra.mxu0 %v97
      %4124 = vmatprep.subr.mxu0 0.0
      %4125 = vmatpush1.msra.mxu0 %v96
      %4126 = vmatprep.subr.mxu0 0.0
      %4127 = vmatpush1.msra.mxu0 %v95
      %4128 = vmatprep.subr.mxu0 0.0
      %4129 = vmatpush1.msra.mxu0 %v94
      %4130 = vmatprep.subr.mxu0 0.0
      %4131 = vmatpush1.msra.mxu0 %v93
      %4132 = vmatprep.subr.mxu0 0.0
      %4133 = vmatpush1.msra.mxu0 %v92
      %4134 = vmatprep.subr.mxu0 0.0
      %4135 = vmatpush1.msra.mxu0 %v91
      %4136 = vmatprep.subr.mxu0 0.0
      %4137 = vmatpush1.msra.mxu0 %v90
      %4138 = vmatprep.subr.mxu0 0.0
      %4139 = vmatpush1.msra.mxu0 %v89
      %4140 = vmatprep.subr.mxu0 0.0
      %4141 = vmatpush2.msra.mxu0 0.0
      %4142 = vmatprep.subr.mxu0 0.0
      %4143 = vmatpush2.msra.mxu0 0.0
      %4144 = vmatprep.subr.mxu0 0.0
      %4145 = vmatpush2.msra.mxu0 0.0
      %4146 = vmatprep.subr.mxu0 0.0
      %4147 = vmatpush2.msra.mxu0 0.0
      %4148 = vmatprep.subr.mxu0 0.0
      %4149 = vmatpush2.msra.mxu0 0.0
      %4150 = vmatprep.subr.mxu0 0.0
      %4151 = vmatpush2.msra.mxu0 0.0
      %4152 = vmatprep.subr.mxu0 0.0
      %4153 = vmatpush2.msra.mxu0 0.0
      %4154 = vmatprep.subr.mxu0 0.0
      %4155 = vmatpush2.msra.mxu0 0.0
      %4156 = vmatprep.subr.mxu0 0.0
      %4157 = vmatpush2.msra.mxu0 0.0
      %4158 = vmatprep.subr.mxu0 0.0
      %4159 = vmatpush2.msra.mxu0 0.0
      %4160 = vmatprep.subr.mxu0 0.0
      %4161 = vmatpush2.msra.mxu0 0.0
      %4162 = vmatprep.subr.mxu0 0.0
      %4163 = vmatpush2.msra.mxu0 0.0
      %4164 = vmatprep.subr.mxu0 0.0
      %4165 = vmatpush2.msra.mxu0 0.0
      %4166 = vmatprep.subr.mxu0 0.0
      %4167 = vmatpush2.msra.mxu0 0.0
      %4168 = vmatprep.subr.mxu0 0.0
      %4169 = vmatpush2.msra.mxu0 0.0
      %4170 = vmatprep.subr.mxu0 0.0
      %4171 = vmatpush2.msra.mxu0 0.0
      %4172 = vmatprep.mubr.f32.mxu0 0.0
      %4173 = vmatmul.mubr.f32.gmra.mxu0 %v4107
      %v4174 = vpop.f32.mrf.mxu0
      %v4175 = vadd.f32 %v62, %v4174
      %v4176 = vpop.f32.mrf.mxu0
      %4177 = vdwg.mxu0
      %v4178 = vtanh.pop %v4175
      %v4179 = vmul.f32 %v540, %v4105
      %v4180 = vadd.f32 %v3671, %v4179
      %4181 = vmatprep.subr.mxu0 0.0
      %4182 = vmatpush1.msra.mxu0 %v104
      %4183 = vmatprep.subr.mxu0 0.0
      %4184 = vmatpush1.msra.mxu0 %v103
      %4185 = vmatprep.subr.mxu0 0.0
      %4186 = vmatpush1.msra.mxu0 %v102
      %4187 = vmatprep.subr.mxu0 0.0
      %4188 = vmatpush1.msra.mxu0 %v101
      %4189 = vmatprep.subr.mxu0 0.0
      %4190 = vmatpush1.msra.mxu0 %v100
      %4191 = vmatprep.subr.mxu0 0.0
      %4192 = vmatpush1.msra.mxu0 %v99
      %4193 = vmatprep.subr.mxu0 0.0
      %4194 = vmatpush1.msra.mxu0 %v98
      %4195 = vmatprep.subr.mxu0 0.0
      %4196 = vmatpush1.msra.mxu0 %v97
      %4197 = vmatprep.subr.mxu0 0.0
      %4198 = vmatpush1.msra.mxu0 %v96
      %4199 = vmatprep.subr.mxu0 0.0
      %4200 = vmatpush1.msra.mxu0 %v95
      %4201 = vmatprep.subr.mxu0 0.0
      %4202 = vmatpush1.msra.mxu0 %v94
      %4203 = vmatprep.subr.mxu0 0.0
      %4204 = vmatpush1.msra.mxu0 %v93
      %4205 = vmatprep.subr.mxu0 0.0
      %4206 = vmatpush1.msra.mxu0 %v92
      %4207 = vmatprep.subr.mxu0 0.0
      %4208 = vmatpush1.msra.mxu0 %v91
      %4209 = vmatprep.subr.mxu0 0.0
      %4210 = vmatpush1.msra.mxu0 %v90
      %4211 = vmatprep.subr.mxu0 0.0
      %4212 = vmatpush1.msra.mxu0 %v89
      %4213 = vmatprep.subr.mxu0 0.0
      %4214 = vmatpush2.msra.mxu0 0.0
      %4215 = vmatprep.subr.mxu0 0.0
      %4216 = vmatpush2.msra.mxu0 0.0
      %4217 = vmatprep.subr.mxu0 0.0
      %4218 = vmatpush2.msra.mxu0 0.0
      %4219 = vmatprep.subr.mxu0 0.0
      %4220 = vmatpush2.msra.mxu0 0.0
      %4221 = vmatprep.subr.mxu0 0.0
      %4222 = vmatpush2.msra.mxu0 0.0
      %4223 = vmatprep.subr.mxu0 0.0
      %4224 = vmatpush2.msra.mxu0 0.0
      %4225 = vmatprep.subr.mxu0 0.0
      %4226 = vmatpush2.msra.mxu0 0.0
      %4227 = vmatprep.subr.mxu0 0.0
      %4228 = vmatpush2.msra.mxu0 0.0
      %4229 = vmatprep.subr.mxu0 0.0
      %4230 = vmatpush2.msra.mxu0 0.0
      %4231 = vmatprep.subr.mxu0 0.0
      %4232 = vmatpush2.msra.mxu0 0.0
      %4233 = vmatprep.subr.mxu0 0.0
      %4234 = vmatpush2.msra.mxu0 0.0
      %4235 = vmatprep.subr.mxu0 0.0
      %4236 = vmatpush2.msra.mxu0 0.0
      %4237 = vmatprep.subr.mxu0 0.0
      %4238 = vmatpush2.msra.mxu0 0.0
      %4239 = vmatprep.subr.mxu0 0.0
      %4240 = vmatpush2.msra.mxu0 0.0
      %4241 = vmatprep.subr.mxu0 0.0
      %4242 = vmatpush2.msra.mxu0 0.0
      %4243 = vmatprep.subr.mxu0 0.0
      %4244 = vmatpush2.msra.mxu0 0.0
      %4245 = vmatprep.mubr.f32.mxu0 0.0
      %4246 = vmatmul.mubr.f32.gmra.mxu0 %v4180
      %v4247 = vpop.f32.mrf.mxu0
      %v4248 = vadd.f32 %v62, %v4247
      %v4249 = vpop.f32.mrf.mxu0
      %4250 = vdwg.mxu0
      %v4251 = vtanh.pop %v4248
      %v4252 = vmul.f32 %v3886, 2.0
      %v4253 = vadd.f32 %v3742, %v4252
      %v4254 = vmul.f32 %v4032, 2.0
      %v4255 = vadd.f32 %v4253, %v4254
      %v4256 = vadd.f32 %v4255, %v4178
      %v4257 = vmul.f32 %v692, %v4256
      %v4258 = vadd.f32 %v3664, %v4257
      %v4259 = vmul.f32 %v3959, 2.0
      %v4260 = vadd.f32 %v3813, %v4259
      %v4261 = vmul.f32 %v4105, 2.0
      %v4262 = vadd.f32 %v4260, %v4261
      %v4263 = vadd.f32 %v4262, %v4251
      %v4264 = vmul.f32 %v692, %v4263
      %v4265 = vadd.f32 %v3671, %v4264
      %4266 = vmatprep.subr.mxu0 0.0
      %4267 = vmatpush1.msra.mxu0 %v104
      %4268 = vmatprep.subr.mxu0 0.0
      %4269 = vmatpush1.msra.mxu0 %v103
      %4270 = vmatprep.subr.mxu0 0.0
      %4271 = vmatpush1.msra.mxu0 %v102
      %4272 = vmatprep.subr.mxu0 0.0
      %4273 = vmatpush1.msra.mxu0 %v101
      %4274 = vmatprep.subr.mxu0 0.0
      %4275 = vmatpush1.msra.mxu0 %v100
      %4276 = vmatprep.subr.mxu0 0.0
      %4277 = vmatpush1.msra.mxu0 %v99
      %4278 = vmatprep.subr.mxu0 0.0
      %4279 = vmatpush1.msra.mxu0 %v98
      %4280 = vmatprep.subr.mxu0 0.0
      %4281 = vmatpush1.msra.mxu0 %v97
      %4282 = vmatprep.subr.mxu0 0.0
      %4283 = vmatpush1.msra.mxu0 %v96
      %4284 = vmatprep.subr.mxu0 0.0
      %4285 = vmatpush1.msra.mxu0 %v95
      %4286 = vmatprep.subr.mxu0 0.0
      %4287 = vmatpush1.msra.mxu0 %v94
      %4288 = vmatprep.subr.mxu0 0.0
      %4289 = vmatpush1.msra.mxu0 %v93
      %4290 = vmatprep.subr.mxu0 0.0
      %4291 = vmatpush1.msra.mxu0 %v92
      %4292 = vmatprep.subr.mxu0 0.0
      %4293 = vmatpush1.msra.mxu0 %v91
      %4294 = vmatprep.subr.mxu0 0.0
      %4295 = vmatpush1.msra.mxu0 %v90
      %4296 = vmatprep.subr.mxu0 0.0
      %4297 = vmatpush1.msra.mxu0 %v89
      %4298 = vmatprep.subr.mxu0 0.0
      %4299 = vmatpush2.msra.mxu0 0.0
      %4300 = vmatprep.subr.mxu0 0.0
      %4301 = vmatpush2.msra.mxu0 0.0
      %4302 = vmatprep.subr.mxu0 0.0
      %4303 = vmatpush2.msra.mxu0 0.0
      %4304 = vmatprep.subr.mxu0 0.0
      %4305 = vmatpush2.msra.mxu0 0.0
      %4306 = vmatprep.subr.mxu0 0.0
      %4307 = vmatpush2.msra.mxu0 0.0
      %4308 = vmatprep.subr.mxu0 0.0
      %4309 = vmatpush2.msra.mxu0 0.0
      %4310 = vmatprep.subr.mxu0 0.0
      %4311 = vmatpush2.msra.mxu0 0.0
      %4312 = vmatprep.subr.mxu0 0.0
      %4313 = vmatpush2.msra.mxu0 0.0
      %4314 = vmatprep.subr.mxu0 0.0
      %4315 = vmatpush2.msra.mxu0 0.0
      %4316 = vmatprep.subr.mxu0 0.0
      %4317 = vmatpush2.msra.mxu0 0.0
      %4318 = vmatprep.subr.mxu0 0.0
      %4319 = vmatpush2.msra.mxu0 0.0
      %4320 = vmatprep.subr.mxu0 0.0
      %4321 = vmatpush2.msra.mxu0 0.0
      %4322 = vmatprep.subr.mxu0 0.0
      %4323 = vmatpush2.msra.mxu0 0.0
      %4324 = vmatprep.subr.mxu0 0.0
      %4325 = vmatpush2.msra.mxu0 0.0
      %4326 = vmatprep.subr.mxu0 0.0
      %4327 = vmatpush2.msra.mxu0 0.0
      %4328 = vmatprep.subr.mxu0 0.0
      %4329 = vmatpush2.msra.mxu0 0.0
      %4330 = vmatprep.mubr.f32.mxu0 0.0
      %4331 = vmatmul.mubr.f32.gmra.mxu0 %v4258
      %v4332 = vpop.f32.mrf.mxu0
      %v4333 = vadd.f32 %v62, %v4332
      %v4334 = vpop.f32.mrf.mxu0
      %4335 = vdwg.mxu0
      %v4336 = vtanh.pop %v4333
      %4337 = vmatprep.subr.mxu0 0.0
      %4338 = vmatpush1.msra.mxu0 %v104
      %4339 = vmatprep.subr.mxu0 0.0
      %4340 = vmatpush1.msra.mxu0 %v103
      %4341 = vmatprep.subr.mxu0 0.0
      %4342 = vmatpush1.msra.mxu0 %v102
      %4343 = vmatprep.subr.mxu0 0.0
      %4344 = vmatpush1.msra.mxu0 %v101
      %4345 = vmatprep.subr.mxu0 0.0
      %4346 = vmatpush1.msra.mxu0 %v100
      %4347 = vmatprep.subr.mxu0 0.0
      %4348 = vmatpush1.msra.mxu0 %v99
      %4349 = vmatprep.subr.mxu0 0.0
      %4350 = vmatpush1.msra.mxu0 %v98
      %4351 = vmatprep.subr.mxu0 0.0
      %4352 = vmatpush1.msra.mxu0 %v97
      %4353 = vmatprep.subr.mxu0 0.0
      %4354 = vmatpush1.msra.mxu0 %v96
      %4355 = vmatprep.subr.mxu0 0.0
      %4356 = vmatpush1.msra.mxu0 %v95
      %4357 = vmatprep.subr.mxu0 0.0
      %4358 = vmatpush1.msra.mxu0 %v94
      %4359 = vmatprep.subr.mxu0 0.0
      %4360 = vmatpush1.msra.mxu0 %v93
      %4361 = vmatprep.subr.mxu0 0.0
      %4362 = vmatpush1.msra.mxu0 %v92
      %4363 = vmatprep.subr.mxu0 0.0
      %4364 = vmatpush1.msra.mxu0 %v91
      %4365 = vmatprep.subr.mxu0 0.0
      %4366 = vmatpush1.msra.mxu0 %v90
      %4367 = vmatprep.subr.mxu0 0.0
      %4368 = vmatpush1.msra.mxu0 %v89
      %4369 = vmatprep.subr.mxu0 0.0
      %4370 = vmatpush2.msra.mxu0 0.0
      %4371 = vmatprep.subr.mxu0 0.0
      %4372 = vmatpush2.msra.mxu0 0.0
      %4373 = vmatprep.subr.mxu0 0.0
      %4374 = vmatpush2.msra.mxu0 0.0
      %4375 = vmatprep.subr.mxu0 0.0
      %4376 = vmatpush2.msra.mxu0 0.0
      %4377 = vmatprep.subr.mxu0 0.0
      %4378 = vmatpush2.msra.mxu0 0.0
      %4379 = vmatprep.subr.mxu0 0.0
      %4380 = vmatpush2.msra.mxu0 0.0
      %4381 = vmatprep.subr.mxu0 0.0
      %4382 = vmatpush2.msra.mxu0 0.0
      %4383 = vmatprep.subr.mxu0 0.0
      %4384 = vmatpush2.msra.mxu0 0.0
      %4385 = vmatprep.subr.mxu0 0.0
      %4386 = vmatpush2.msra.mxu0 0.0
      %4387 = vmatprep.subr.mxu0 0.0
      %4388 = vmatpush2.msra.mxu0 0.0
      %4389 = vmatprep.subr.mxu0 0.0
      %4390 = vmatpush2.msra.mxu0 0.0
      %4391 = vmatprep.subr.mxu0 0.0
      %4392 = vmatpush2.msra.mxu0 0.0
      %4393 = vmatprep.subr.mxu0 0.0
      %4394 = vmatpush2.msra.mxu0 0.0
      %4395 = vmatprep.subr.mxu0 0.0
      %4396 = vmatpush2.msra.mxu0 0.0
      %4397 = vmatprep.subr.mxu0 0.0
      %4398 = vmatpush2.msra.mxu0 0.0
      %4399 = vmatprep.subr.mxu0 0.0
      %4400 = vmatpush2.msra.mxu0 0.0
      %4401 = vmatprep.mubr.f32.mxu0 0.0
      %4402 = vmatmul.mubr.f32.gmra.mxu0 %v4265
      %v4403 = vpop.f32.mrf.mxu0
      %v4404 = vadd.f32 %v62, %v4403
      %v4405 = vpop.f32.mrf.mxu0
      %4406 = vdwg.mxu0
      %v4407 = vtanh.pop %v4404
      %v4408 = vmul.f32 %v247, %v4336
      %v4409 = vadd.f32 %v4258, %v4408
      %4410 = vmatprep.subr.mxu0 0.0
      %4411 = vmatpush1.msra.mxu0 %v104
      %4412 = vmatprep.subr.mxu0 0.0
      %4413 = vmatpush1.msra.mxu0 %v103
      %4414 = vmatprep.subr.mxu0 0.0
      %4415 = vmatpush1.msra.mxu0 %v102
      %4416 = vmatprep.subr.mxu0 0.0
      %4417 = vmatpush1.msra.mxu0 %v101
      %4418 = vmatprep.subr.mxu0 0.0
      %4419 = vmatpush1.msra.mxu0 %v100
      %4420 = vmatprep.subr.mxu0 0.0
      %4421 = vmatpush1.msra.mxu0 %v99
      %4422 = vmatprep.subr.mxu0 0.0
      %4423 = vmatpush1.msra.mxu0 %v98
      %4424 = vmatprep.subr.mxu0 0.0
      %4425 = vmatpush1.msra.mxu0 %v97
      %4426 = vmatprep.subr.mxu0 0.0
      %4427 = vmatpush1.msra.mxu0 %v96
      %4428 = vmatprep.subr.mxu0 0.0
      %4429 = vmatpush1.msra.mxu0 %v95
      %4430 = vmatprep.subr.mxu0 0.0
      %4431 = vmatpush1.msra.mxu0 %v94
      %4432 = vmatprep.subr.mxu0 0.0
      %4433 = vmatpush1.msra.mxu0 %v93
      %4434 = vmatprep.subr.mxu0 0.0
      %4435 = vmatpush1.msra.mxu0 %v92
      %4436 = vmatprep.subr.mxu0 0.0
      %4437 = vmatpush1.msra.mxu0 %v91
      %4438 = vmatprep.subr.mxu0 0.0
      %4439 = vmatpush1.msra.mxu0 %v90
      %4440 = vmatprep.subr.mxu0 0.0
      %4441 = vmatpush1.msra.mxu0 %v89
      %4442 = vmatprep.subr.mxu0 0.0
      %4443 = vmatpush2.msra.mxu0 0.0
      %4444 = vmatprep.subr.mxu0 0.0
      %4445 = vmatpush2.msra.mxu0 0.0
      %4446 = vmatprep.subr.mxu0 0.0
      %4447 = vmatpush2.msra.mxu0 0.0
      %4448 = vmatprep.subr.mxu0 0.0
      %4449 = vmatpush2.msra.mxu0 0.0
      %4450 = vmatprep.subr.mxu0 0.0
      %4451 = vmatpush2.msra.mxu0 0.0
      %4452 = vmatprep.subr.mxu0 0.0
      %4453 = vmatpush2.msra.mxu0 0.0
      %4454 = vmatprep.subr.mxu0 0.0
      %4455 = vmatpush2.msra.mxu0 0.0
      %4456 = vmatprep.subr.mxu0 0.0
      %4457 = vmatpush2.msra.mxu0 0.0
      %4458 = vmatprep.subr.mxu0 0.0
      %4459 = vmatpush2.msra.mxu0 0.0
      %4460 = vmatprep.subr.mxu0 0.0
      %4461 = vmatpush2.msra.mxu0 0.0
      %4462 = vmatprep.subr.mxu0 0.0
      %4463 = vmatpush2.msra.mxu0 0.0
      %4464 = vmatprep.subr.mxu0 0.0
      %4465 = vmatpush2.msra.mxu0 0.0
      %4466 = vmatprep.subr.mxu0 0.0
      %4467 = vmatpush2.msra.mxu0 0.0
      %4468 = vmatprep.subr.mxu0 0.0
      %4469 = vmatpush2.msra.mxu0 0.0
      %4470 = vmatprep.subr.mxu0 0.0
      %4471 = vmatpush2.msra.mxu0 0.0
      %4472 = vmatprep.subr.mxu0 0.0
      %4473 = vmatpush2.msra.mxu0 0.0
      %4474 = vmatprep.mubr.f32.mxu0 0.0
      %4475 = vmatmul.mubr.f32.gmra.mxu0 %v4409
      %v4476 = vpop.f32.mrf.mxu0
      %v4477 = vadd.f32 %v62, %v4476
      %v4478 = vpop.f32.mrf.mxu0
      %4479 = vdwg.mxu0
      %v4480 = vtanh.pop %v4477
      %v4481 = vmul.f32 %v247, %v4407
      %v4482 = vadd.f32 %v4265, %v4481
      %4483 = vmatprep.subr.mxu0 0.0
      %4484 = vmatpush1.msra.mxu0 %v104
      %4485 = vmatprep.subr.mxu0 0.0
      %4486 = vmatpush1.msra.mxu0 %v103
      %4487 = vmatprep.subr.mxu0 0.0
      %4488 = vmatpush1.msra.mxu0 %v102
      %4489 = vmatprep.subr.mxu0 0.0
      %4490 = vmatpush1.msra.mxu0 %v101
      %4491 = vmatprep.subr.mxu0 0.0
      %4492 = vmatpush1.msra.mxu0 %v100
      %4493 = vmatprep.subr.mxu0 0.0
      %4494 = vmatpush1.msra.mxu0 %v99
      %4495 = vmatprep.subr.mxu0 0.0
      %4496 = vmatpush1.msra.mxu0 %v98
      %4497 = vmatprep.subr.mxu0 0.0
      %4498 = vmatpush1.msra.mxu0 %v97
      %4499 = vmatprep.subr.mxu0 0.0
      %4500 = vmatpush1.msra.mxu0 %v96
      %4501 = vmatprep.subr.mxu0 0.0
      %4502 = vmatpush1.msra.mxu0 %v95
      %4503 = vmatprep.subr.mxu0 0.0
      %4504 = vmatpush1.msra.mxu0 %v94
      %4505 = vmatprep.subr.mxu0 0.0
      %4506 = vmatpush1.msra.mxu0 %v93
      %4507 = vmatprep.subr.mxu0 0.0
      %4508 = vmatpush1.msra.mxu0 %v92
      %4509 = vmatprep.subr.mxu0 0.0
      %4510 = vmatpush1.msra.mxu0 %v91
      %4511 = vmatprep.subr.mxu0 0.0
      %4512 = vmatpush1.msra.mxu0 %v90
      %4513 = vmatprep.subr.mxu0 0.0
      %4514 = vmatpush1.msra.mxu0 %v89
      %4515 = vmatprep.subr.mxu0 0.0
      %4516 = vmatpush2.msra.mxu0 0.0
      %4517 = vmatprep.subr.mxu0 0.0
      %4518 = vmatpush2.msra.mxu0 0.0
      %4519 = vmatprep.subr.mxu0 0.0
      %4520 = vmatpush2.msra.mxu0 0.0
      %4521 = vmatprep.subr.mxu0 0.0
      %4522 = vmatpush2.msra.mxu0 0.0
      %4523 = vmatprep.subr.mxu0 0.0
      %4524 = vmatpush2.msra.mxu0 0.0
      %4525 = vmatprep.subr.mxu0 0.0
      %4526 = vmatpush2.msra.mxu0 0.0
      %4527 = vmatprep.subr.mxu0 0.0
      %4528 = vmatpush2.msra.mxu0 0.0
      %4529 = vmatprep.subr.mxu0 0.0
      %4530 = vmatpush2.msra.mxu0 0.0
      %4531 = vmatprep.subr.mxu0 0.0
      %4532 = vmatpush2.msra.mxu0 0.0
      %4533 = vmatprep.subr.mxu0 0.0
      %4534 = vmatpush2.msra.mxu0 0.0
      %4535 = vmatprep.subr.mxu0 0.0
      %4536 = vmatpush2.msra.mxu0 0.0
      %4537 = vmatprep.subr.mxu0 0.0
      %4538 = vmatpush2.msra.mxu0 0.0
      %4539 = vmatprep.subr.mxu0 0.0
      %4540 = vmatpush2.msra.mxu0 0.0
      %4541 = vmatprep.subr.mxu0 0.0
      %4542 = vmatpush2.msra.mxu0 0.0
      %4543 = vmatprep.subr.mxu0 0.0
      %4544 = vmatpush2.msra.mxu0 0.0
      %4545 = vmatprep.subr.mxu0 0.0
      %4546 = vmatpush2.msra.mxu0 0.0
      %4547 = vmatprep.mubr.f32.mxu0 0.0
      %4548 = vmatmul.mubr.f32.gmra.mxu0 %v4482
      %v4549 = vpop.f32.mrf.mxu0
      %v4550 = vadd.f32 %v62, %v4549
      %v4551 = vpop.f32.mrf.mxu0
      %4552 = vdwg.mxu0
      %v4553 = vtanh.pop %v4550
      %v4554 = vmul.f32 %v247, %v4480
      %v4555 = vadd.f32 %v4258, %v4554
      %4556 = vmatprep.subr.mxu0 0.0
      %4557 = vmatpush1.msra.mxu0 %v104
      %4558 = vmatprep.subr.mxu0 0.0
      %4559 = vmatpush1.msra.mxu0 %v103
      %4560 = vmatprep.subr.mxu0 0.0
      %4561 = vmatpush1.msra.mxu0 %v102
      %4562 = vmatprep.subr.mxu0 0.0
      %4563 = vmatpush1.msra.mxu0 %v101
      %4564 = vmatprep.subr.mxu0 0.0
      %4565 = vmatpush1.msra.mxu0 %v100
      %4566 = vmatprep.subr.mxu0 0.0
      %4567 = vmatpush1.msra.mxu0 %v99
      %4568 = vmatprep.subr.mxu0 0.0
      %4569 = vmatpush1.msra.mxu0 %v98
      %4570 = vmatprep.subr.mxu0 0.0
      %4571 = vmatpush1.msra.mxu0 %v97
      %4572 = vmatprep.subr.mxu0 0.0
      %4573 = vmatpush1.msra.mxu0 %v96
      %4574 = vmatprep.subr.mxu0 0.0
      %4575 = vmatpush1.msra.mxu0 %v95
      %4576 = vmatprep.subr.mxu0 0.0
      %4577 = vmatpush1.msra.mxu0 %v94
      %4578 = vmatprep.subr.mxu0 0.0
      %4579 = vmatpush1.msra.mxu0 %v93
      %4580 = vmatprep.subr.mxu0 0.0
      %4581 = vmatpush1.msra.mxu0 %v92
      %4582 = vmatprep.subr.mxu0 0.0
      %4583 = vmatpush1.msra.mxu0 %v91
      %4584 = vmatprep.subr.mxu0 0.0
      %4585 = vmatpush1.msra.mxu0 %v90
      %4586 = vmatprep.subr.mxu0 0.0
      %4587 = vmatpush1.msra.mxu0 %v89
      %4588 = vmatprep.subr.mxu0 0.0
      %4589 = vmatpush2.msra.mxu0 0.0
      %4590 = vmatprep.subr.mxu0 0.0
      %4591 = vmatpush2.msra.mxu0 0.0
      %4592 = vmatprep.subr.mxu0 0.0
      %4593 = vmatpush2.msra.mxu0 0.0
      %4594 = vmatprep.subr.mxu0 0.0
      %4595 = vmatpush2.msra.mxu0 0.0
      %4596 = vmatprep.subr.mxu0 0.0
      %4597 = vmatpush2.msra.mxu0 0.0
      %4598 = vmatprep.subr.mxu0 0.0
      %4599 = vmatpush2.msra.mxu0 0.0
      %4600 = vmatprep.subr.mxu0 0.0
      %4601 = vmatpush2.msra.mxu0 0.0
      %4602 = vmatprep.subr.mxu0 0.0
      %4603 = vmatpush2.msra.mxu0 0.0
      %4604 = vmatprep.subr.mxu0 0.0
      %4605 = vmatpush2.msra.mxu0 0.0
      %4606 = vmatprep.subr.mxu0 0.0
      %4607 = vmatpush2.msra.mxu0 0.0
      %4608 = vmatprep.subr.mxu0 0.0
      %4609 = vmatpush2.msra.mxu0 0.0
      %4610 = vmatprep.subr.mxu0 0.0
      %4611 = vmatpush2.msra.mxu0 0.0
      %4612 = vmatprep.subr.mxu0 0.0
      %4613 = vmatpush2.msra.mxu0 0.0
      %4614 = vmatprep.subr.mxu0 0.0
      %4615 = vmatpush2.msra.mxu0 0.0
      %4616 = vmatprep.subr.mxu0 0.0
      %4617 = vmatpush2.msra.mxu0 0.0
      %4618 = vmatprep.subr.mxu0 0.0
      %4619 = vmatpush2.msra.mxu0 0.0
      %4620 = vmatprep.mubr.f32.mxu0 0.0
      %4621 = vmatmul.mubr.f32.gmra.mxu0 %v4555
      %v4622 = vpop.f32.mrf.mxu0
      %v4623 = vadd.f32 %v62, %v4622
      %v4624 = vpop.f32.mrf.mxu0
      %4625 = vdwg.mxu0
      %v4626 = vtanh.pop %v4623
      %v4627 = vmul.f32 %v247, %v4553
      %v4628 = vadd.f32 %v4265, %v4627
      %4629 = vmatprep.subr.mxu0 0.0
      %4630 = vmatpush1.msra.mxu0 %v104
      %4631 = vmatprep.subr.mxu0 0.0
      %4632 = vmatpush1.msra.mxu0 %v103
      %4633 = vmatprep.subr.mxu0 0.0
      %4634 = vmatpush1.msra.mxu0 %v102
      %4635 = vmatprep.subr.mxu0 0.0
      %4636 = vmatpush1.msra.mxu0 %v101
      %4637 = vmatprep.subr.mxu0 0.0
      %4638 = vmatpush1.msra.mxu0 %v100
      %4639 = vmatprep.subr.mxu0 0.0
      %4640 = vmatpush1.msra.mxu0 %v99
      %4641 = vmatprep.subr.mxu0 0.0
      %4642 = vmatpush1.msra.mxu0 %v98
      %4643 = vmatprep.subr.mxu0 0.0
      %4644 = vmatpush1.msra.mxu0 %v97
      %4645 = vmatprep.subr.mxu0 0.0
      %4646 = vmatpush1.msra.mxu0 %v96
      %4647 = vmatprep.subr.mxu0 0.0
      %4648 = vmatpush1.msra.mxu0 %v95
      %4649 = vmatprep.subr.mxu0 0.0
      %4650 = vmatpush1.msra.mxu0 %v94
      %4651 = vmatprep.subr.mxu0 0.0
      %4652 = vmatpush1.msra.mxu0 %v93
      %4653 = vmatprep.subr.mxu0 0.0
      %4654 = vmatpush1.msra.mxu0 %v92
      %4655 = vmatprep.subr.mxu0 0.0
      %4656 = vmatpush1.msra.mxu0 %v91
      %4657 = vmatprep.subr.mxu0 0.0
      %4658 = vmatpush1.msra.mxu0 %v90
      %4659 = vmatprep.subr.mxu0 0.0
      %4660 = vmatpush1.msra.mxu0 %v89
      %4661 = vmatprep.subr.mxu0 0.0
      %4662 = vmatpush2.msra.mxu0 0.0
      %4663 = vmatprep.subr.mxu0 0.0
      %4664 = vmatpush2.msra.mxu0 0.0
      %4665 = vmatprep.subr.mxu0 0.0
      %4666 = vmatpush2.msra.mxu0 0.0
      %4667 = vmatprep.subr.mxu0 0.0
      %4668 = vmatpush2.msra.mxu0 0.0
      %4669 = vmatprep.subr.mxu0 0.0
      %4670 = vmatpush2.msra.mxu0 0.0
      %4671 = vmatprep.subr.mxu0 0.0
      %4672 = vmatpush2.msra.mxu0 0.0
      %4673 = vmatprep.subr.mxu0 0.0
      %4674 = vmatpush2.msra.mxu0 0.0
      %4675 = vmatprep.subr.mxu0 0.0
      %4676 = vmatpush2.msra.mxu0 0.0
      %4677 = vmatprep.subr.mxu0 0.0
      %4678 = vmatpush2.msra.mxu0 0.0
      %4679 = vmatprep.subr.mxu0 0.0
      %4680 = vmatpush2.msra.mxu0 0.0
      %4681 = vmatprep.subr.mxu0 0.0
      %4682 = vmatpush2.msra.mxu0 0.0
      %4683 = vmatprep.subr.mxu0 0.0
      %4684 = vmatpush2.msra.mxu0 0.0
      %4685 = vmatprep.subr.mxu0 0.0
      %4686 = vmatpush2.msra.mxu0 0.0
      %4687 = vmatprep.subr.mxu0 0.0
      %4688 = vmatpush2.msra.mxu0 0.0
      %4689 = vmatprep.subr.mxu0 0.0
      %4690 = vmatpush2.msra.mxu0 0.0
      %4691 = vmatprep.subr.mxu0 0.0
      %4692 = vmatpush2.msra.mxu0 0.0
      %4693 = vmatprep.mubr.f32.mxu0 0.0
      %4694 = vmatmul.mubr.f32.gmra.mxu0 %v4628
      %v4695 = vpop.f32.mrf.mxu0
      %v4696 = vadd.f32 %v62, %v4695
      %v4697 = vpop.f32.mrf.mxu0
      %4698 = vdwg.mxu0
      %v4699 = vtanh.pop %v4696
      %v4700 = vmul.f32 %v540, %v4626
      %v4701 = vadd.f32 %v4258, %v4700
      %4702 = vmatprep.subr.mxu0 0.0
      %4703 = vmatpush1.msra.mxu0 %v104
      %4704 = vmatprep.subr.mxu0 0.0
      %4705 = vmatpush1.msra.mxu0 %v103
      %4706 = vmatprep.subr.mxu0 0.0
      %4707 = vmatpush1.msra.mxu0 %v102
      %4708 = vmatprep.subr.mxu0 0.0
      %4709 = vmatpush1.msra.mxu0 %v101
      %4710 = vmatprep.subr.mxu0 0.0
      %4711 = vmatpush1.msra.mxu0 %v100
      %4712 = vmatprep.subr.mxu0 0.0
      %4713 = vmatpush1.msra.mxu0 %v99
      %4714 = vmatprep.subr.mxu0 0.0
      %4715 = vmatpush1.msra.mxu0 %v98
      %4716 = vmatprep.subr.mxu0 0.0
      %4717 = vmatpush1.msra.mxu0 %v97
      %4718 = vmatprep.subr.mxu0 0.0
      %4719 = vmatpush1.msra.mxu0 %v96
      %4720 = vmatprep.subr.mxu0 0.0
      %4721 = vmatpush1.msra.mxu0 %v95
      %4722 = vmatprep.subr.mxu0 0.0
      %4723 = vmatpush1.msra.mxu0 %v94
      %4724 = vmatprep.subr.mxu0 0.0
      %4725 = vmatpush1.msra.mxu0 %v93
      %4726 = vmatprep.subr.mxu0 0.0
      %4727 = vmatpush1.msra.mxu0 %v92
      %4728 = vmatprep.subr.mxu0 0.0
      %4729 = vmatpush1.msra.mxu0 %v91
      %4730 = vmatprep.subr.mxu0 0.0
      %4731 = vmatpush1.msra.mxu0 %v90
      %4732 = vmatprep.subr.mxu0 0.0
      %4733 = vmatpush1.msra.mxu0 %v89
      %4734 = vmatprep.subr.mxu0 0.0
      %4735 = vmatpush2.msra.mxu0 0.0
      %4736 = vmatprep.subr.mxu0 0.0
      %4737 = vmatpush2.msra.mxu0 0.0
      %4738 = vmatprep.subr.mxu0 0.0
      %4739 = vmatpush2.msra.mxu0 0.0
      %4740 = vmatprep.subr.mxu0 0.0
      %4741 = vmatpush2.msra.mxu0 0.0
      %4742 = vmatprep.subr.mxu0 0.0
      %4743 = vmatpush2.msra.mxu0 0.0
      %4744 = vmatprep.subr.mxu0 0.0
      %4745 = vmatpush2.msra.mxu0 0.0
      %4746 = vmatprep.subr.mxu0 0.0
      %4747 = vmatpush2.msra.mxu0 0.0
      %4748 = vmatprep.subr.mxu0 0.0
      %4749 = vmatpush2.msra.mxu0 0.0
      %4750 = vmatprep.subr.mxu0 0.0
      %4751 = vmatpush2.msra.mxu0 0.0
      %4752 = vmatprep.subr.mxu0 0.0
      %4753 = vmatpush2.msra.mxu0 0.0
      %4754 = vmatprep.subr.mxu0 0.0
      %4755 = vmatpush2.msra.mxu0 0.0
      %4756 = vmatprep.subr.mxu0 0.0
      %4757 = vmatpush2.msra.mxu0 0.0
      %4758 = vmatprep.subr.mxu0 0.0
      %4759 = vmatpush2.msra.mxu0 0.0
      %4760 = vmatprep.subr.mxu0 0.0
      %4761 = vmatpush2.msra.mxu0 0.0
      %4762 = vmatprep.subr.mxu0 0.0
      %4763 = vmatpush2.msra.mxu0 0.0
      %4764 = vmatprep.subr.mxu0 0.0
      %4765 = vmatpush2.msra.mxu0 0.0
      %4766 = vmatprep.mubr.f32.mxu0 0.0
      %4767 = vmatmul.mubr.f32.gmra.mxu0 %v4701
      %v4768 = vpop.f32.mrf.mxu0
      %v4769 = vadd.f32 %v62, %v4768
      %v4770 = vpop.f32.mrf.mxu0
      %4771 = vdwg.mxu0
      %v4772 = vtanh.pop %v4769
      %v4773 = vmul.f32 %v540, %v4699
      %v4774 = vadd.f32 %v4265, %v4773
      %4775 = vmatprep.subr.mxu0 0.0
      %4776 = vmatpush1.msra.mxu0 %v104
      %4777 = vmatprep.subr.mxu0 0.0
      %4778 = vmatpush1.msra.mxu0 %v103
      %4779 = vmatprep.subr.mxu0 0.0
      %4780 = vmatpush1.msra.mxu0 %v102
      %4781 = vmatprep.subr.mxu0 0.0
      %4782 = vmatpush1.msra.mxu0 %v101
      %4783 = vmatprep.subr.mxu0 0.0
      %4784 = vmatpush1.msra.mxu0 %v100
      %4785 = vmatprep.subr.mxu0 0.0
      %4786 = vmatpush1.msra.mxu0 %v99
      %4787 = vmatprep.subr.mxu0 0.0
      %4788 = vmatpush1.msra.mxu0 %v98
      %4789 = vmatprep.subr.mxu0 0.0
      %4790 = vmatpush1.msra.mxu0 %v97
      %4791 = vmatprep.subr.mxu0 0.0
      %4792 = vmatpush1.msra.mxu0 %v96
      %4793 = vmatprep.subr.mxu0 0.0
      %4794 = vmatpush1.msra.mxu0 %v95
      %4795 = vmatprep.subr.mxu0 0.0
      %4796 = vmatpush1.msra.mxu0 %v94
      %4797 = vmatprep.subr.mxu0 0.0
      %4798 = vmatpush1.msra.mxu0 %v93
      %4799 = vmatprep.subr.mxu0 0.0
      %4800 = vmatpush1.msra.mxu0 %v92
      %4801 = vmatprep.subr.mxu0 0.0
      %4802 = vmatpush1.msra.mxu0 %v91
      %4803 = vmatprep.subr.mxu0 0.0
      %4804 = vmatpush1.msra.mxu0 %v90
      %4805 = vmatprep.subr.mxu0 0.0
      %4806 = vmatpush1.msra.mxu0 %v89
      %4807 = vmatprep.subr.mxu0 0.0
      %4808 = vmatpush2.msra.mxu0 0.0
      %4809 = vmatprep.subr.mxu0 0.0
      %4810 = vmatpush2.msra.mxu0 0.0
      %4811 = vmatprep.subr.mxu0 0.0
      %4812 = vmatpush2.msra.mxu0 0.0
      %4813 = vmatprep.subr.mxu0 0.0
      %4814 = vmatpush2.msra.mxu0 0.0
      %4815 = vmatprep.subr.mxu0 0.0
      %4816 = vmatpush2.msra.mxu0 0.0
      %4817 = vmatprep.subr.mxu0 0.0
      %4818 = vmatpush2.msra.mxu0 0.0
      %4819 = vmatprep.subr.mxu0 0.0
      %4820 = vmatpush2.msra.mxu0 0.0
      %4821 = vmatprep.subr.mxu0 0.0
      %4822 = vmatpush2.msra.mxu0 0.0
      %4823 = vmatprep.subr.mxu0 0.0
      %4824 = vmatpush2.msra.mxu0 0.0
      %4825 = vmatprep.subr.mxu0 0.0
      %4826 = vmatpush2.msra.mxu0 0.0
      %4827 = vmatprep.subr.mxu0 0.0
      %4828 = vmatpush2.msra.mxu0 0.0
      %4829 = vmatprep.subr.mxu0 0.0
      %4830 = vmatpush2.msra.mxu0 0.0
      %4831 = vmatprep.subr.mxu0 0.0
      %4832 = vmatpush2.msra.mxu0 0.0
      %4833 = vmatprep.subr.mxu0 0.0
      %4834 = vmatpush2.msra.mxu0 0.0
      %4835 = vmatprep.subr.mxu0 0.0
      %4836 = vmatpush2.msra.mxu0 0.0
      %4837 = vmatprep.subr.mxu0 0.0
      %4838 = vmatpush2.msra.mxu0 0.0
      %4839 = vmatprep.mubr.f32.mxu0 0.0
      %4840 = vmatmul.mubr.f32.gmra.mxu0 %v4774
      %v4841 = vpop.f32.mrf.mxu0
      %v4842 = vadd.f32 %v62, %v4841
      %v4843 = vpop.f32.mrf.mxu0
      %4844 = vdwg.mxu0
      %v4845 = vtanh.pop %v4842
      %v4846 = vmul.f32 %v4480, 2.0
      %v4847 = vadd.f32 %v4336, %v4846
      %v4848 = vmul.f32 %v4626, 2.0
      %v4849 = vadd.f32 %v4847, %v4848
      %v4850 = vadd.f32 %v4849, %v4772
      %v4851 = vmul.f32 %v692, %v4850
      %v4852 = vadd.f32 %v4258, %v4851
      %v4853 = vmul.f32 %v4553, 2.0
      %v4854 = vadd.f32 %v4407, %v4853
      %v4855 = vmul.f32 %v4699, 2.0
      %v4856 = vadd.f32 %v4854, %v4855
      %v4857 = vadd.f32 %v4856, %v4845
      %v4858 = vmul.f32 %v692, %v4857
      %v4859 = vadd.f32 %v4265, %v4858
      %s4860 = smul.u32 %s79, 16
      %s4861 = scalar_lea.vmem [#allocation9], %s4860
      %4862 = vst [vmem:[%s4861] sm:$0xff] %v4852
      %4863 = vst [vmem:[%s4861 + $0x8] sm:$0xff] %v4859
    $region34: #{tpu_custom_call.1} parent=1 // loop_footer
      %s75 = sadd.s32 1, %s71
    $region35: #{tpu_custom_call.1} parent=1 // loop_footer_branch
      %70 = sbr.rel target = $region31
    $region36: #{tpu_custom_call.1} parent=1 // loop_exit
      _
    // Predicated region
    $region37: #{tpu_custom_call.1} parent=1 // pred_check
      _
    $region38: #{tpu_custom_call.1} parent=1 // pred_check_branch
      %4865 = sbr.rel (0) target = $region40
    $region39: #{tpu_custom_call.1} parent=1 // pred_region
      %s4867 = ssub.s32 2048, 2048
      %4868 = vsyncadd [#allocation4], %s4867
      %s4869 = sshll.u32 [#allocation9], 4
      %s4870 = int_to_ptr.vmem [resolvable:$true] %s4869
      %4875 = dma.vmem_to_hbm [thread:$0]  %s4870, 2048, %s4, [#allocation4], 128, 128, 8
    $region40: #{tpu_custom_call.1} parent=1 // pred_fallthru
      _
    // Predicated region
    $region41: #{tpu_custom_call.1} parent=1 // pred_check
      _
    $region42: #{tpu_custom_call.1} parent=1 // pred_check_branch
      %4877 = sbr.rel (0) target = $region44
    $region43: #{tpu_custom_call.1} parent=1 // pred_region
      %4878 = dma.done [#allocation4], 2048
    $region44: #{tpu_custom_call.1} parent=1 // pred_fallthru
      _
    %4879 = vsyncpa [#allocation3], 1
    %4880 = vsyncpa [#allocation8], 1
    %4881 = vsyncpa [#allocation4], 1
    %4882 = vsyncpa [#allocation5], 1

</llo_original>
